<compile_context>
chip_gen: v6e
topology: v6e:2x2x1
jax: 0.10.0
libtpu: 0.0.40
codegen_flags: <defaults>
</compile_context>

<pallas_src>
import jax
import jax.numpy as jnp
from jax import lax
from jax.experimental import pallas as pl
from jax.experimental.pallas import tpu as pltpu


# ------------------------------ fused kernel --------------------------------

def _fused_gcn_kernel(src_ref, dst_ref, x_ref,
                      w1_ref, b1_ref, w2_ref, b2_ref, w3_ref, b3_ref,
                      wc_ref, bc_ref, o_ref):
    f32 = jnp.float32
    e = src_ref.shape[0]
    n = x_ref.shape[0]

    # ---- one-hot edge matrices built in VMEM from index vectors -------------
    col_node = lax.broadcasted_iota(jnp.int32, (e, n), 1)   # node id along lanes
    row_node = lax.broadcasted_iota(jnp.int32, (n, e), 0)   # node id along sublanes
    oh_src = (src_ref[...] == col_node).astype(f32)         # [E, N]
    oh_dst_t = (dst_ref[...] == row_node).astype(f32)       # [N, E]

    # ---- adjacency on the MXU (no scatter) -----------------------------------
    # A_edges[dst, src] = multiplicity of edge src -> dst
    a_edges = jnp.dot(oh_dst_t, oh_src, preferred_element_type=f32)   # [N, N]
    row_ids = lax.broadcasted_iota(jnp.int32, (n, n), 0)
    col_ids = lax.broadcasted_iota(jnp.int32, (n, n), 1)
    eye = (row_ids == col_ids).astype(f32)
    # PyG add_remaining_self_loops: drop existing self loops, add one per node.
    a_un = a_edges * (1.0 - eye) + eye

    # ---- symmetric normalization, folded into each layer ---------------------
    deg = jnp.sum(a_un, axis=1, keepdims=True)               # [N, 1], >= 1 (self loop)
    dis = lax.rsqrt(deg)                                     # deg^{-1/2}

    def aggregate(z):
        # A_norm @ z  ==  dis * (A_unnorm @ (dis * z))   (no [1,N] transpose needed)
        return dis * jnp.dot(a_un, dis * z, preferred_element_type=f32)

    # ---- layer 1: relu((A_norm @ X) @ W1 + b1)   (aggregate first: 32 << 1024)
    h = jnp.maximum(
        jnp.dot(aggregate(x_ref[...]), w1_ref[...], preferred_element_type=f32)
        + b1_ref[...], 0.0)

    # ---- layer 2: relu(A_norm @ (H @ W2) + b2) --------------------------------
    h = jnp.maximum(
        aggregate(jnp.dot(h, w2_ref[...], preferred_element_type=f32))
        + b2_ref[...], 0.0)

    # ---- layer 3: relu(A_norm @ (H @ W3) + b3) --------------------------------
    h = jnp.maximum(
        aggregate(jnp.dot(h, w3_ref[...], preferred_element_type=f32))
        + b3_ref[...], 0.0)

    # ---- classifier (padded to 128 lanes -> unmasked full-lane stores) -------
    o_ref[...] = jnp.dot(h, wc_ref[...], preferred_element_type=f32) + bc_ref[...]


# ------------------------------ glue (plain JAX) -----------------------------

def _round_up(x, m):
    return -(-x // m) * m


def init_params(key, num_features, num_classes):
    """Weights stored ready-to-use: f32, classifier pre-padded to 128 columns."""
    dims = [(num_features, 1024), (1024, 512), (512, 128)]
    params = {}
    keys = jax.random.split(key, 8)
    for i, (din, dout) in enumerate(dims):
        scale = 1.0 / jnp.sqrt(jnp.float32(din))
        params[f"w{i + 1}"] = (
            jax.random.normal(keys[2 * i], (din, dout), jnp.float32) * scale
        )
        params[f"b{i + 1}"] = jnp.zeros((1, dout), jnp.float32)
    scale = 1.0 / jnp.sqrt(jnp.float32(128))
    w_cls = jax.random.normal(keys[6], (128, num_classes), jnp.float32) * scale
    b_cls = jax.random.normal(keys[7], (1, num_classes), jnp.float32) * scale
    params["w_cls"] = w_cls
    params["b_cls"] = b_cls
    c_pad = _round_up(num_classes, 128)
    params["w_cls_pad"] = jnp.pad(w_cls, ((0, 0), (0, c_pad - num_classes)))
    params["b_cls_pad"] = jnp.pad(b_cls, ((0, 0), (0, c_pad - num_classes)))
    return params


def simple_gcn_forward(params, x, edge_index):
    n = x.shape[0]
    num_classes = params["w_cls"].shape[1]
    c_pad = params["w_cls_pad"].shape[1]

    # Only ~2 KiB of per-call edge preprocessing: two tiny reshapes.
    src_col = edge_index[0].astype(jnp.int32).reshape(-1, 1)   # [E, 1]
    dst_row = edge_index[1].astype(jnp.int32).reshape(1, -1)   # [1, E]

    vmem = pl.BlockSpec(memory_space=pltpu.MemorySpace.VMEM)
    out = pl.pallas_call(
        _fused_gcn_kernel,
        out_shape=jax.ShapeDtypeStruct((n, c_pad), jnp.float32),
        in_specs=[vmem] * 11,
        out_specs=vmem,
    )(
        src_col, dst_row, x,
        params["w1"], params["b1"],
        params["w2"], params["b2"],
        params["w3"], params["b3"],
        params["w_cls_pad"], params["b_cls_pad"],
    )
    return out[:, :num_classes]


def simple_gcn_reference(params, x, edge_index):
    """Independent f32 dense reference (scatter-built normalized adjacency)."""
    n = x.shape[0]
    src, dst = edge_index[0], edge_index[1]
    keep = (src != dst).astype(jnp.float32)                    # drop existing self loops
    a = jnp.zeros((n, n), jnp.float32).at[dst, src].add(keep)
    a = a + jnp.eye(n, dtype=jnp.float32)                      # one self loop per node
    dinv = 1.0 / jnp.sqrt(a.sum(axis=1))
    a_norm = dinv[:, None] * a * dinv[None, :]
    h = jax.nn.relu(a_norm @ (x @ params["w1"]) + params["b1"])
    h = jax.nn.relu(a_norm @ (h @ params["w2"]) + params["b2"])
    h = jax.nn.relu(a_norm @ (h @ params["w3"]) + params["b3"])
    return h @ params["w_cls"] + params["b_cls"]


# ---------------------------------- main -------------------------------------

if __name__ == "__main__":
    num_nodes = 64
    num_features = 32
    num_classes = 8
    num_edges = 256

    key = jax.random.PRNGKey(0)
    k_x, k_e, k_p = jax.random.split(key, 3)

    x = jax.random.normal(k_x, (num_nodes, num_features), jnp.float32)
    edge_index = jax.random.randint(
        k_e, (2, num_edges), minval=0, maxval=num_nodes, dtype=jnp.int32
    )
    params = init_params(k_p, num_features, num_classes)

    fwd = jax.jit(simple_gcn_forward)
    out = jax.block_until_ready(fwd(params, x, edge_index))
    ref = jax.block_until_ready(simple_gcn_reference(params, x, edge_index))

    assert out.shape == (num_nodes, num_classes)
    assert jnp.allclose(out, ref, atol=1e-2, rtol=1e-2), float(
        jnp.max(jnp.abs(out - ref))
    )

    print("KERNEL_OK")
</pallas_src>

<mosaic_0001>
module attributes {stable_mosaic.version = 11 : i64} {
  func.func @_fused_gcn_kernel(%arg0: memref<256x1xi32, #tpu.memory_space<vmem>>, %arg1: memref<1x256xi32, #tpu.memory_space<vmem>>, %arg2: memref<64x32xf32, #tpu.memory_space<vmem>>, %arg3: memref<32x1024xf32, #tpu.memory_space<vmem>>, %arg4: memref<1x1024xf32, #tpu.memory_space<vmem>>, %arg5: memref<1024x512xf32, #tpu.memory_space<vmem>>, %arg6: memref<1x512xf32, #tpu.memory_space<vmem>>, %arg7: memref<512x128xf32, #tpu.memory_space<vmem>>, %arg8: memref<1x128xf32, #tpu.memory_space<vmem>>, %arg9: memref<128x128xf32, #tpu.memory_space<vmem>>, %arg10: memref<1x128xf32, #tpu.memory_space<vmem>>, %arg11: memref<64x128xf32, #tpu.memory_space<vmem>>) attributes {dimension_semantics = [], scalar_prefetch = 0 : i64, scratch_operands = 0 : i64, tpu.core_type = #tpu.core_type<tc>} {
    %0 = tpu.iota {dimensions = array<i32: 1>} : vector<256x64xi32>
    %1 = tpu.iota {dimensions = array<i32: 0>} : vector<64x256xi32>
    %c0 = arith.constant 0 : index
    %c0_0 = arith.constant 0 : index
    %2 = vector.load %arg0[%c0, %c0_0] : memref<256x1xi32, #tpu.memory_space<vmem>>, vector<256x1xi32>
    %3 = vector.broadcast %2 : vector<256x1xi32> to vector<256x64xi32>
    %4 = arith.cmpi eq, %3, %0 : vector<256x64xi32>
    %5 = arith.extui %4 : vector<256x64xi1> to vector<256x64xi32>
    %6 = arith.sitofp %5 : vector<256x64xi32> to vector<256x64xf32>
    %c0_1 = arith.constant 0 : index
    %c0_2 = arith.constant 0 : index
    %7 = vector.load %arg1[%c0_1, %c0_2] : memref<1x256xi32, #tpu.memory_space<vmem>>, vector<1x256xi32>
    %8 = vector.broadcast %7 : vector<1x256xi32> to vector<64x256xi32>
    %9 = arith.cmpi eq, %8, %1 : vector<64x256xi32>
    %10 = arith.extui %9 : vector<64x256xi1> to vector<64x256xi32>
    %11 = arith.sitofp %10 : vector<64x256xi32> to vector<64x256xf32>
    %cst = arith.constant dense<0.000000e+00> : vector<64x64xf32>
    %12 = tpu.matmul %11, %6, %cst {dimension_numbers = #tpu.dot_dimension_numbers<[1], [0], [0], [1], [0, 0, 1, 1], [], []>} : vector<64x256xf32>, vector<256x64xf32>, vector<64x64xf32> -> vector<64x64xf32>
    %13 = tpu.iota {dimensions = array<i32: 0>} : vector<64x64xi32>
    %14 = tpu.iota {dimensions = array<i32: 1>} : vector<64x64xi32>
    %15 = arith.cmpi eq, %13, %14 : vector<64x64xi32>
    %16 = arith.extui %15 : vector<64x64xi1> to vector<64x64xi32>
    %17 = arith.sitofp %16 : vector<64x64xi32> to vector<64x64xf32>
    %cst_3 = arith.constant 1.000000e+00 : f32
    %18 = vector.broadcast %cst_3 : f32 to vector<64x64xf32>
    %19 = arith.subf %18, %17 : vector<64x64xf32>
    %20 = arith.mulf %12, %19 : vector<64x64xf32>
    %21 = arith.addf %20, %17 : vector<64x64xf32>
    %cst_4 = arith.constant dense<0.000000e+00> : vector<64xf32>
    %22 = vector.multi_reduction <add>, %21, %cst_4 [1] : vector<64x64xf32> to vector<64xf32>
    %23 = vector.shape_cast %22 : vector<64xf32> to vector<64x1xf32>
    %24 = math.rsqrt %23 : vector<64x1xf32>
    %c0_5 = arith.constant 0 : index
    %c0_6 = arith.constant 0 : index
    %25 = vector.load %arg2[%c0_5, %c0_6] : memref<64x32xf32, #tpu.memory_space<vmem>>, vector<64x32xf32>
    %26 = vector.broadcast %24 : vector<64x1xf32> to vector<64x32xf32>
    %27 = arith.mulf %26, %25 : vector<64x32xf32>
    %cst_7 = arith.constant dense<0.000000e+00> : vector<64x32xf32>
    %28 = tpu.matmul %21, %27, %cst_7 {dimension_numbers = #tpu.dot_dimension_numbers<[1], [0], [0], [1], [0, 0, 1, 1], [], []>} : vector<64x64xf32>, vector<64x32xf32>, vector<64x32xf32> -> vector<64x32xf32>
    %29 = vector.broadcast %24 : vector<64x1xf32> to vector<64x32xf32>
    %30 = arith.mulf %29, %28 : vector<64x32xf32>
    %c0_8 = arith.constant 0 : index
    %c0_9 = arith.constant 0 : index
    %31 = vector.load %arg3[%c0_8, %c0_9] : memref<32x1024xf32, #tpu.memory_space<vmem>>, vector<32x1024xf32>
    %cst_10 = arith.constant dense<0.000000e+00> : vector<64x1024xf32>
    %32 = tpu.matmul %30, %31, %cst_10 {dimension_numbers = #tpu.dot_dimension_numbers<[1], [0], [0], [1], [0, 0, 1, 1], [], []>} : vector<64x32xf32>, vector<32x1024xf32>, vector<64x1024xf32> -> vector<64x1024xf32>
    %c0_11 = arith.constant 0 : index
    %c0_12 = arith.constant 0 : index
    %33 = vector.load %arg4[%c0_11, %c0_12] : memref<1x1024xf32, #tpu.memory_space<vmem>>, vector<1x1024xf32>
    %34 = vector.broadcast %33 : vector<1x1024xf32> to vector<64x1024xf32>
    %35 = arith.addf %32, %34 : vector<64x1024xf32>
    %cst_13 = arith.constant 0.000000e+00 : f32
    %36 = vector.broadcast %cst_13 : f32 to vector<64x1024xf32>
    %37 = arith.maximumf %35, %36 : vector<64x1024xf32>
    %c0_14 = arith.constant 0 : index
    %c0_15 = arith.constant 0 : index
    %38 = vector.load %arg5[%c0_14, %c0_15] : memref<1024x512xf32, #tpu.memory_space<vmem>>, vector<1024x512xf32>
    %cst_16 = arith.constant dense<0.000000e+00> : vector<64x512xf32>
    %39 = tpu.matmul %37, %38, %cst_16 {dimension_numbers = #tpu.dot_dimension_numbers<[1], [0], [0], [1], [0, 0, 1, 1], [], []>} : vector<64x1024xf32>, vector<1024x512xf32>, vector<64x512xf32> -> vector<64x512xf32>
    %40 = vector.broadcast %24 : vector<64x1xf32> to vector<64x512xf32>
    %41 = arith.mulf %40, %39 : vector<64x512xf32>
    %cst_17 = arith.constant dense<0.000000e+00> : vector<64x512xf32>
    %42 = tpu.matmul %21, %41, %cst_17 {dimension_numbers = #tpu.dot_dimension_numbers<[1], [0], [0], [1], [0, 0, 1, 1], [], []>} : vector<64x64xf32>, vector<64x512xf32>, vector<64x512xf32> -> vector<64x512xf32>
    %43 = vector.broadcast %24 : vector<64x1xf32> to vector<64x512xf32>
    %44 = arith.mulf %43, %42 : vector<64x512xf32>
    %c0_18 = arith.constant 0 : index
    %c0_19 = arith.constant 0 : index
    %45 = vector.load %arg6[%c0_18, %c0_19] : memref<1x512xf32, #tpu.memory_space<vmem>>, vector<1x512xf32>
    %46 = vector.broadcast %45 : vector<1x512xf32> to vector<64x512xf32>
    %47 = arith.addf %44, %46 : vector<64x512xf32>
    %cst_20 = arith.constant 0.000000e+00 : f32
    %48 = vector.broadcast %cst_20 : f32 to vector<64x512xf32>
    %49 = arith.maximumf %47, %48 : vector<64x512xf32>
    %c0_21 = arith.constant 0 : index
    %c0_22 = arith.constant 0 : index
    %50 = vector.load %arg7[%c0_21, %c0_22] : memref<512x128xf32, #tpu.memory_space<vmem>>, vector<512x128xf32>
    %cst_23 = arith.constant dense<0.000000e+00> : vector<64x128xf32>
    %51 = tpu.matmul %49, %50, %cst_23 {dimension_numbers = #tpu.dot_dimension_numbers<[1], [0], [0], [1], [0, 0, 1, 1], [], []>} : vector<64x512xf32>, vector<512x128xf32>, vector<64x128xf32> -> vector<64x128xf32>
    %52 = vector.broadcast %24 : vector<64x1xf32> to vector<64x128xf32>
    %53 = arith.mulf %52, %51 : vector<64x128xf32>
    %cst_24 = arith.constant dense<0.000000e+00> : vector<64x128xf32>
    %54 = tpu.matmul %21, %53, %cst_24 {dimension_numbers = #tpu.dot_dimension_numbers<[1], [0], [0], [1], [0, 0, 1, 1], [], []>} : vector<64x64xf32>, vector<64x128xf32>, vector<64x128xf32> -> vector<64x128xf32>
    %55 = vector.broadcast %24 : vector<64x1xf32> to vector<64x128xf32>
    %56 = arith.mulf %55, %54 : vector<64x128xf32>
    %c0_25 = arith.constant 0 : index
    %c0_26 = arith.constant 0 : index
    %57 = vector.load %arg8[%c0_25, %c0_26] : memref<1x128xf32, #tpu.memory_space<vmem>>, vector<1x128xf32>
    %58 = vector.broadcast %57 : vector<1x128xf32> to vector<64x128xf32>
    %59 = arith.addf %56, %58 : vector<64x128xf32>
    %cst_27 = arith.constant 0.000000e+00 : f32
    %60 = vector.broadcast %cst_27 : f32 to vector<64x128xf32>
    %61 = arith.maximumf %59, %60 : vector<64x128xf32>
    %c0_28 = arith.constant 0 : index
    %c0_29 = arith.constant 0 : index
    %62 = vector.load %arg9[%c0_28, %c0_29] : memref<128x128xf32, #tpu.memory_space<vmem>>, vector<128x128xf32>
    %cst_30 = arith.constant dense<0.000000e+00> : vector<64x128xf32>
    %63 = tpu.matmul %61, %62, %cst_30 {dimension_numbers = #tpu.dot_dimension_numbers<[1], [0], [0], [1], [0, 0, 1, 1], [], []>} : vector<64x128xf32>, vector<128x128xf32>, vector<64x128xf32> -> vector<64x128xf32>
    %c0_31 = arith.constant 0 : index
    %c0_32 = arith.constant 0 : index
    %64 = vector.load %arg10[%c0_31, %c0_32] : memref<1x128xf32, #tpu.memory_space<vmem>>, vector<1x128xf32>
    %65 = vector.broadcast %64 : vector<1x128xf32> to vector<64x128xf32>
    %66 = arith.addf %63, %65 : vector<64x128xf32>
    %c0_33 = arith.constant 0 : index
    %c0_34 = arith.constant 0 : index
    %67 = vector.load %arg11[%c0_33, %c0_34] : memref<64x128xf32, #tpu.memory_space<vmem>>, vector<64x128xf32>
    tpu.vector_store %arg11[%c0_33, %c0_34], %66 {strides = array<i32>} : memref<64x128xf32, #tpu.memory_space<vmem>>, vector<64x128xf32>,
    return
  }
}

</mosaic_0001>

<llo_original>
// kernel: simple_gcn_forward.1
$region0: #{simple_gcn_forward.1}
  #allocation0 [shape = 'u32[]', space=smem, size = 0x4, offset = 0x4, fixed_abs, tag = 'smem constant byte address 0x4 - core index']
  #allocation1 [shape = 'u32[144,128]{1,0:T(1,128)}', space=vmem, size = 0x12000, scoped, tag = 'internal scratch']
  %s0 = inlined_call_operand.vmem [shape: s32[256,1], index: 0, kind: input, shape index: {}]
  %s1 = inlined_call_operand.vmem [shape: s32[1,256], index: 1, kind: input, shape index: {}]
  %s2 = inlined_call_operand.vmem [shape: f32[64,32], index: 2, kind: input, shape index: {}]
  %s3 = inlined_call_operand.hbm [shape: f32[32,1024], index: 3, kind: input, shape index: {}]
  %s4 = inlined_call_operand.hbm [shape: f32[1,1024], index: 4, kind: input, shape index: {}]
  %s5 = inlined_call_operand.hbm [shape: f32[1024,512], index: 5, kind: input, shape index: {}]
  %s6 = inlined_call_operand.hbm [shape: f32[1,512], index: 6, kind: input, shape index: {}]
  %s7 = inlined_call_operand.hbm [shape: f32[512,128], index: 7, kind: input, shape index: {}]
  %s8 = inlined_call_operand.hbm [shape: f32[1,128], index: 8, kind: input, shape index: {}]
  %s9 = inlined_call_operand.hbm [shape: f32[128,128], index: 9, kind: input, shape index: {}]
  %s10 = inlined_call_operand.hbm [shape: f32[1,128], index: 10, kind: input, shape index: {}]
  %s11 = inlined_call_operand.vmem [shape: f32[64,128], index: 11, kind: output, shape index: {}]
  %s12 = sld [smem:[#allocation0]]
  $region86: #{simple_gcn_forward.1} parent=0
    _
  %s14 = ssub.s32 1, %s12
  %s15 = scalar_select 0, %s14, %s12
  $region1: #{simple_gcn_forward.1} parent=0
    #allocation2 [shape = 'u8[131072]{0}', space=vmem, size = 0x20000, scoped, tag = 'input window, operand 3, single buffered']
    #allocation3 [shape = 's32[1]{0}', space=sflag, size = 0x4, scoped, tag = 'scoped memory for simple_gcn_forward.1']
    #allocation4 [shape = 'u8[4096]{0}', space=vmem, size = 0x1000, scoped, tag = 'input window, operand 4, single buffered']
    #allocation5 [shape = 's32[1]{0}', space=sflag, size = 0x4, scoped, tag = 'scoped memory for simple_gcn_forward.1']
    #allocation6 [shape = 'u8[2097152]{0}', space=vmem, size = 0x200000, scoped, tag = 'input window, operand 5, single buffered']
    #allocation7 [shape = 'u8[2048]{0}', space=vmem, size = 0x800, scoped, tag = 'input window, operand 6, single buffered']
    #allocation8 [shape = 's32[1]{0}', space=sflag, size = 0x4, scoped, tag = 'scoped memory for simple_gcn_forward.1']
    #allocation9 [shape = 'u8[262144]{0}', space=vmem, size = 0x40000, scoped, tag = 'input window, operand 7, single buffered']
    #allocation10 [shape = 'u8[512]{0}', space=vmem, size = 0x400, scoped, tag = 'input window, operand 8, single buffered']
    #allocation11 [shape = 's32[1]{0}', space=sflag, size = 0x4, scoped, tag = 'scoped memory for simple_gcn_forward.1']
    #allocation12 [shape = 'u8[65536]{0}', space=vmem, size = 0x10000, scoped, tag = 'input window, operand 9, single buffered']
    #allocation13 [shape = 'u8[512]{0}', space=vmem, size = 0x400, scoped, tag = 'input window, operand 10, single buffered']
    #allocation14 [shape = 's32[1]{0}', space=sflag, size = 0x4, scoped, tag = 'scoped memory for simple_gcn_forward.1']
    %16 = vsyncpa [#allocation3], 0
    %17 = vsyncpa [#allocation5], 0
    %18 = vsyncpa [#allocation8], 0
    %19 = vsyncpa [#allocation11], 0
    %20 = vsyncpa [#allocation14], 0
    // Predicated region
    $region2: #{simple_gcn_forward.1} parent=1 // pred_check
      _
    $region3: #{simple_gcn_forward.1} parent=1 // pred_check_branch
      %22 = sbr.rel (0) target = $region5
    $region4: #{simple_gcn_forward.1} parent=1 // pred_region
      _
    $region5: #{simple_gcn_forward.1} parent=1 // pred_fallthru
      _
    // Predicated region
    $region6: #{simple_gcn_forward.1} parent=1 // pred_check
      _
    $region7: #{simple_gcn_forward.1} parent=1 // pred_check_branch
      %24 = sbr.rel (0) target = $region9
    $region8: #{simple_gcn_forward.1} parent=1 // pred_region
      _
    $region9: #{simple_gcn_forward.1} parent=1 // pred_fallthru
      _
    // Predicated region
    $region10: #{simple_gcn_forward.1} parent=1 // pred_check
      _
    $region11: #{simple_gcn_forward.1} parent=1 // pred_check_branch
      %26 = sbr.rel (0) target = $region13
    $region12: #{simple_gcn_forward.1} parent=1 // pred_region
      _
    $region13: #{simple_gcn_forward.1} parent=1 // pred_fallthru
      _
    // Predicated region
    $region14: #{simple_gcn_forward.1} parent=1 // pred_check
      _
    $region15: #{simple_gcn_forward.1} parent=1 // pred_check_branch
      %28 = sbr.rel (0) target = $region17
    $region16: #{simple_gcn_forward.1} parent=1 // pred_region
      %s30 = ssub.s32 4096, 4096
      %31 = vsyncadd [#allocation3], %s30
      %s32 = sshll.u32 [#allocation2], 4
      %s33 = int_to_ptr.vmem [resolvable:$true] %s32
      %38 = dma.hbm_to_vmem [thread:$0]  %s3, 4096, %s33, [#allocation3], 1024, 1024, 64
    $region17: #{simple_gcn_forward.1} parent=1 // pred_fallthru
      _
    // Predicated region
    $region18: #{simple_gcn_forward.1} parent=1 // pred_check
      _
    $region19: #{simple_gcn_forward.1} parent=1 // pred_check_branch
      %40 = sbr.rel (0) target = $region21
    $region20: #{simple_gcn_forward.1} parent=1 // pred_region
      %s42 = ssub.s32 128, 128
      %43 = vsyncadd [#allocation5], %s42
      %s45 = sshll.u32 [#allocation4], 4
      %s46 = int_to_ptr.vmem [resolvable:$true] %s45
      %48 = dma.hbm_to_vmem [thread:$0]  %s4, 128, %s46, [#allocation5]
    $region21: #{simple_gcn_forward.1} parent=1 // pred_fallthru
      _
    // Predicated region
    $region22: #{simple_gcn_forward.1} parent=1 // pred_check
      _
    $region23: #{simple_gcn_forward.1} parent=1 // pred_check_branch
      %50 = sbr.rel (0) target = $region25
    $region24: #{simple_gcn_forward.1} parent=1 // pred_region
      %s52 = ssub.s32 65536, 65536
      %53 = vsyncadd [#allocation5], %s52
      %s54 = sshll.u32 [#allocation6], 4
      %s55 = int_to_ptr.vmem [resolvable:$true] %s54
      %60 = dma.hbm_to_vmem [thread:$0]  %s5, 65536, %s55, [#allocation5], 512, 512, 32
    $region25: #{simple_gcn_forward.1} parent=1 // pred_fallthru
      _
    // Predicated region
    $region26: #{simple_gcn_forward.1} parent=1 // pred_check
      _
    $region27: #{simple_gcn_forward.1} parent=1 // pred_check_branch
      %62 = sbr.rel (0) target = $region29
    $region28: #{simple_gcn_forward.1} parent=1 // pred_region
      %s64 = ssub.s32 64, 64
      %65 = vsyncadd [#allocation8], %s64
      %s67 = sshll.u32 [#allocation7], 4
      %s68 = int_to_ptr.vmem [resolvable:$true] %s67
      %70 = dma.hbm_to_vmem [thread:$0]  %s6, 64, %s68, [#allocation8]
    $region29: #{simple_gcn_forward.1} parent=1 // pred_fallthru
      _
    // Predicated region
    $region30: #{simple_gcn_forward.1} parent=1 // pred_check
      _
    $region31: #{simple_gcn_forward.1} parent=1 // pred_check_branch
      %72 = sbr.rel (0) target = $region33
    $region32: #{simple_gcn_forward.1} parent=1 // pred_region
      %s74 = ssub.s32 8192, 8192
      %75 = vsyncadd [#allocation8], %s74
      %s76 = sshll.u32 [#allocation9], 4
      %s77 = int_to_ptr.vmem [resolvable:$true] %s76
      %82 = dma.hbm_to_vmem [thread:$0]  %s7, 8192, %s77, [#allocation8], 128, 128, 8
    $region33: #{simple_gcn_forward.1} parent=1 // pred_fallthru
      _
    // Predicated region
    $region34: #{simple_gcn_forward.1} parent=1 // pred_check
      _
    $region35: #{simple_gcn_forward.1} parent=1 // pred_check_branch
      %84 = sbr.rel (0) target = $region37
    $region36: #{simple_gcn_forward.1} parent=1 // pred_region
      %s86 = ssub.s32 16, 16
      %87 = vsyncadd [#allocation11], %s86
      %s89 = sshll.u32 [#allocation10], 4
      %s90 = int_to_ptr.vmem [resolvable:$true] %s89
      %92 = dma.hbm_to_vmem [thread:$0]  %s8, 16, %s90, [#allocation11]
    $region37: #{simple_gcn_forward.1} parent=1 // pred_fallthru
      _
    // Predicated region
    $region38: #{simple_gcn_forward.1} parent=1 // pred_check
      _
    $region39: #{simple_gcn_forward.1} parent=1 // pred_check_branch
      %94 = sbr.rel (0) target = $region41
    $region40: #{simple_gcn_forward.1} parent=1 // pred_region
      %s96 = ssub.s32 2048, 2048
      %97 = vsyncadd [#allocation11], %s96
      %s98 = sshll.u32 [#allocation12], 4
      %s99 = int_to_ptr.vmem [resolvable:$true] %s98
      %104 = dma.hbm_to_vmem [thread:$0]  %s9, 2048, %s99, [#allocation11], 128, 128, 8
    $region41: #{simple_gcn_forward.1} parent=1 // pred_fallthru
      _
    // Predicated region
    $region42: #{simple_gcn_forward.1} parent=1 // pred_check
      _
    $region43: #{simple_gcn_forward.1} parent=1 // pred_check_branch
      %106 = sbr.rel (0) target = $region45
    $region44: #{simple_gcn_forward.1} parent=1 // pred_region
      %s108 = ssub.s32 16, 16
      %109 = vsyncadd [#allocation14], %s108
      %s111 = sshll.u32 [#allocation13], 4
      %s112 = int_to_ptr.vmem [resolvable:$true] %s111
      %114 = dma.hbm_to_vmem [thread:$0]  %s10, 16, %s112, [#allocation14]
    $region45: #{simple_gcn_forward.1} parent=1 // pred_fallthru
      _
    // Predicated region
    $region46: #{simple_gcn_forward.1} parent=1 // pred_check
      _
    $region47: #{simple_gcn_forward.1} parent=1 // pred_check_branch
      %116 = sbr.rel (0) target = $region49
    $region48: #{simple_gcn_forward.1} parent=1 // pred_region
      %117 = dma.done [#allocation3], 4096
    $region49: #{simple_gcn_forward.1} parent=1 // pred_fallthru
      _
    // Predicated region
    $region50: #{simple_gcn_forward.1} parent=1 // pred_check
      _
    $region51: #{simple_gcn_forward.1} parent=1 // pred_check_branch
      %119 = sbr.rel (0) target = $region53
    $region52: #{simple_gcn_forward.1} parent=1 // pred_region
      %120 = dma.done [#allocation5], 128
    $region53: #{simple_gcn_forward.1} parent=1 // pred_fallthru
      _
    // Predicated region
    $region54: #{simple_gcn_forward.1} parent=1 // pred_check
      _
    $region55: #{simple_gcn_forward.1} parent=1 // pred_check_branch
      %122 = sbr.rel (0) target = $region57
    $region56: #{simple_gcn_forward.1} parent=1 // pred_region
      %123 = dma.done [#allocation5], 65536
    $region57: #{simple_gcn_forward.1} parent=1 // pred_fallthru
      _
    // Predicated region
    $region58: #{simple_gcn_forward.1} parent=1 // pred_check
      _
    $region59: #{simple_gcn_forward.1} parent=1 // pred_check_branch
      %125 = sbr.rel (0) target = $region61
    $region60: #{simple_gcn_forward.1} parent=1 // pred_region
      %126 = dma.done [#allocation8], 64
    $region61: #{simple_gcn_forward.1} parent=1 // pred_fallthru
      _
    // Predicated region
    $region62: #{simple_gcn_forward.1} parent=1 // pred_check
      _
    $region63: #{simple_gcn_forward.1} parent=1 // pred_check_branch
      %128 = sbr.rel (0) target = $region65
    $region64: #{simple_gcn_forward.1} parent=1 // pred_region
      %129 = dma.done [#allocation8], 8192
    $region65: #{simple_gcn_forward.1} parent=1 // pred_fallthru
      _
    // Predicated region
    $region66: #{simple_gcn_forward.1} parent=1 // pred_check
      _
    $region67: #{simple_gcn_forward.1} parent=1 // pred_check_branch
      %131 = sbr.rel (0) target = $region69
    $region68: #{simple_gcn_forward.1} parent=1 // pred_region
      %132 = dma.done [#allocation11], 16
    $region69: #{simple_gcn_forward.1} parent=1 // pred_fallthru
      _
    // Predicated region
    $region70: #{simple_gcn_forward.1} parent=1 // pred_check
      _
    $region71: #{simple_gcn_forward.1} parent=1 // pred_check_branch
      %134 = sbr.rel (0) target = $region73
    $region72: #{simple_gcn_forward.1} parent=1 // pred_region
      %135 = dma.done [#allocation11], 2048
    $region73: #{simple_gcn_forward.1} parent=1 // pred_fallthru
      _
    // Predicated region
    $region74: #{simple_gcn_forward.1} parent=1 // pred_check
      _
    $region75: #{simple_gcn_forward.1} parent=1 // pred_check_branch
      %137 = sbr.rel (0) target = $region77
    $region76: #{simple_gcn_forward.1} parent=1 // pred_region
      %138 = dma.done [#allocation14], 16
    $region77: #{simple_gcn_forward.1} parent=1 // pred_fallthru
      _
    %v139 = vlaneseq
    %v140 = vand.u32 %v139, 127
    %v141 = vlaneseq
    %v142 = vshrl.u32 %v141, 7
    %v143 = vadd.s32 %v142, 8
    %v144 = vadd.s32 %v142, 16
    %v145 = vadd.s32 %v142, 24
    %v146 = vadd.s32 %v142, 32
    %v147 = vadd.s32 %v142, 40
    %v148 = vadd.s32 %v142, 48
    %v149 = vadd.s32 %v142, 56
    %v150 = vld [vmem:[%s0] sm:$0xff]
    %v151 = vld [vmem:[%s0 + $0x8] sm:$0xff]
    %v152 = vld [vmem:[%s0 + $0x10] sm:$0xff]
    %v153 = vld [vmem:[%s0 + $0x18] sm:$0xff]
    %v154 = vld [vmem:[%s0 + $0x20] sm:$0xff]
    %v155 = vld [vmem:[%s0 + $0x28] sm:$0xff]
    %v156 = vld [vmem:[%s0 + $0x30] sm:$0xff]
    %v157 = vld [vmem:[%s0 + $0x38] sm:$0xff]
    %v158 = vld [vmem:[%s0 + $0x40] sm:$0xff]
    %v159 = vld [vmem:[%s0 + $0x48] sm:$0xff]
    %v160 = vld [vmem:[%s0 + $0x50] sm:$0xff]
    %v161 = vld [vmem:[%s0 + $0x58] sm:$0xff]
    %v162 = vld [vmem:[%s0 + $0x60] sm:$0xff]
    %v163 = vld [vmem:[%s0 + $0x68] sm:$0xff]
    %v164 = vld [vmem:[%s0 + $0x70] sm:$0xff]
    %v165 = vld [vmem:[%s0 + $0x78] sm:$0xff]
    %v166 = vld [vmem:[%s0 + $0x80] sm:$0xff]
    %v167 = vld [vmem:[%s0 + $0x88] sm:$0xff]
    %v168 = vld [vmem:[%s0 + $0x90] sm:$0xff]
    %v169 = vld [vmem:[%s0 + $0x98] sm:$0xff]
    %v170 = vld [vmem:[%s0 + $0xa0] sm:$0xff]
    %v171 = vld [vmem:[%s0 + $0xa8] sm:$0xff]
    %v172 = vld [vmem:[%s0 + $0xb0] sm:$0xff]
    %v173 = vld [vmem:[%s0 + $0xb8] sm:$0xff]
    %v174 = vld [vmem:[%s0 + $0xc0] sm:$0xff]
    %v175 = vld [vmem:[%s0 + $0xc8] sm:$0xff]
    %v176 = vld [vmem:[%s0 + $0xd0] sm:$0xff]
    %v177 = vld [vmem:[%s0 + $0xd8] sm:$0xff]
    %v178 = vld [vmem:[%s0 + $0xe0] sm:$0xff]
    %v179 = vld [vmem:[%s0 + $0xe8] sm:$0xff]
    %v180 = vld [vmem:[%s0 + $0xf0] sm:$0xff]
    %v181 = vld [vmem:[%s0 + $0xf8] sm:$0xff]
    %182 = vset.pattern.permute.xlu0 0
    %183 = vperm.xlu0 %182, %v150
    %v184 = vpop.permute.xlu0 %183
    %185 = vset.pattern.permute.xlu0 0
    %186 = vperm.xlu0 %185, %v151
    %v187 = vpop.permute.xlu0 %186
    %188 = vset.pattern.permute.xlu0 0
    %189 = vperm.xlu0 %188, %v152
    %v190 = vpop.permute.xlu0 %189
    %191 = vset.pattern.permute.xlu0 0
    %192 = vperm.xlu0 %191, %v153
    %v193 = vpop.permute.xlu0 %192
    %194 = vset.pattern.permute.xlu0 0
    %195 = vperm.xlu0 %194, %v154
    %v196 = vpop.permute.xlu0 %195
    %197 = vset.pattern.permute.xlu0 0
    %198 = vperm.xlu0 %197, %v155
    %v199 = vpop.permute.xlu0 %198
    %200 = vset.pattern.permute.xlu0 0
    %201 = vperm.xlu0 %200, %v156
    %v202 = vpop.permute.xlu0 %201
    %203 = vset.pattern.permute.xlu0 0
    %204 = vperm.xlu0 %203, %v157
    %v205 = vpop.permute.xlu0 %204
    %206 = vset.pattern.permute.xlu0 0
    %207 = vperm.xlu0 %206, %v158
    %v208 = vpop.permute.xlu0 %207
    %209 = vset.pattern.permute.xlu0 0
    %210 = vperm.xlu0 %209, %v159
    %v211 = vpop.permute.xlu0 %210
    %212 = vset.pattern.permute.xlu0 0
    %213 = vperm.xlu0 %212, %v160
    %v214 = vpop.permute.xlu0 %213
    %215 = vset.pattern.permute.xlu0 0
    %216 = vperm.xlu0 %215, %v161
    %v217 = vpop.permute.xlu0 %216
    %218 = vset.pattern.permute.xlu0 0
    %219 = vperm.xlu0 %218, %v162
    %v220 = vpop.permute.xlu0 %219
    %221 = vset.pattern.permute.xlu0 0
    %222 = vperm.xlu0 %221, %v163
    %v223 = vpop.permute.xlu0 %222
    %224 = vset.pattern.permute.xlu0 0
    %225 = vperm.xlu0 %224, %v164
    %v226 = vpop.permute.xlu0 %225
    %227 = vset.pattern.permute.xlu0 0
    %228 = vperm.xlu0 %227, %v165
    %v229 = vpop.permute.xlu0 %228
    %230 = vset.pattern.permute.xlu0 0
    %231 = vperm.xlu0 %230, %v166
    %v232 = vpop.permute.xlu0 %231
    %233 = vset.pattern.permute.xlu0 0
    %234 = vperm.xlu0 %233, %v167
    %v235 = vpop.permute.xlu0 %234
    %236 = vset.pattern.permute.xlu0 0
    %237 = vperm.xlu0 %236, %v168
    %v238 = vpop.permute.xlu0 %237
    %239 = vset.pattern.permute.xlu0 0
    %240 = vperm.xlu0 %239, %v169
    %v241 = vpop.permute.xlu0 %240
    %242 = vset.pattern.permute.xlu0 0
    %243 = vperm.xlu0 %242, %v170
    %v244 = vpop.permute.xlu0 %243
    %245 = vset.pattern.permute.xlu0 0
    %246 = vperm.xlu0 %245, %v171
    %v247 = vpop.permute.xlu0 %246
    %248 = vset.pattern.permute.xlu0 0
    %249 = vperm.xlu0 %248, %v172
    %v250 = vpop.permute.xlu0 %249
    %251 = vset.pattern.permute.xlu0 0
    %252 = vperm.xlu0 %251, %v173
    %v253 = vpop.permute.xlu0 %252
    %254 = vset.pattern.permute.xlu0 0
    %255 = vperm.xlu0 %254, %v174
    %v256 = vpop.permute.xlu0 %255
    %257 = vset.pattern.permute.xlu0 0
    %258 = vperm.xlu0 %257, %v175
    %v259 = vpop.permute.xlu0 %258
    %260 = vset.pattern.permute.xlu0 0
    %261 = vperm.xlu0 %260, %v176
    %v262 = vpop.permute.xlu0 %261
    %263 = vset.pattern.permute.xlu0 0
    %264 = vperm.xlu0 %263, %v177
    %v265 = vpop.permute.xlu0 %264
    %266 = vset.pattern.permute.xlu0 0
    %267 = vperm.xlu0 %266, %v178
    %v268 = vpop.permute.xlu0 %267
    %269 = vset.pattern.permute.xlu0 0
    %270 = vperm.xlu0 %269, %v179
    %v271 = vpop.permute.xlu0 %270
    %272 = vset.pattern.permute.xlu0 0
    %273 = vperm.xlu0 %272, %v180
    %v274 = vpop.permute.xlu0 %273
    %275 = vset.pattern.permute.xlu0 0
    %276 = vperm.xlu0 %275, %v181
    %v277 = vpop.permute.xlu0 %276
    %vm278 = vcmp.eq.s32.totalorder %v184, %v140
    %vm279 = vcmp.eq.s32.totalorder %v187, %v140
    %vm280 = vcmp.eq.s32.totalorder %v190, %v140
    %vm281 = vcmp.eq.s32.totalorder %v193, %v140
    %vm282 = vcmp.eq.s32.totalorder %v196, %v140
    %vm283 = vcmp.eq.s32.totalorder %v199, %v140
    %vm284 = vcmp.eq.s32.totalorder %v202, %v140
    %vm285 = vcmp.eq.s32.totalorder %v205, %v140
    %vm286 = vcmp.eq.s32.totalorder %v208, %v140
    %vm287 = vcmp.eq.s32.totalorder %v211, %v140
    %vm288 = vcmp.eq.s32.totalorder %v214, %v140
    %vm289 = vcmp.eq.s32.totalorder %v217, %v140
    %vm290 = vcmp.eq.s32.totalorder %v220, %v140
    %vm291 = vcmp.eq.s32.totalorder %v223, %v140
    %vm292 = vcmp.eq.s32.totalorder %v226, %v140
    %vm293 = vcmp.eq.s32.totalorder %v229, %v140
    %vm294 = vcmp.eq.s32.totalorder %v232, %v140
    %vm295 = vcmp.eq.s32.totalorder %v235, %v140
    %vm296 = vcmp.eq.s32.totalorder %v238, %v140
    %vm297 = vcmp.eq.s32.totalorder %v241, %v140
    %vm298 = vcmp.eq.s32.totalorder %v244, %v140
    %vm299 = vcmp.eq.s32.totalorder %v247, %v140
    %vm300 = vcmp.eq.s32.totalorder %v250, %v140
    %vm301 = vcmp.eq.s32.totalorder %v253, %v140
    %vm302 = vcmp.eq.s32.totalorder %v256, %v140
    %vm303 = vcmp.eq.s32.totalorder %v259, %v140
    %vm304 = vcmp.eq.s32.totalorder %v262, %v140
    %vm305 = vcmp.eq.s32.totalorder %v265, %v140
    %vm306 = vcmp.eq.s32.totalorder %v268, %v140
    %vm307 = vcmp.eq.s32.totalorder %v271, %v140
    %vm308 = vcmp.eq.s32.totalorder %v274, %v140
    %vm309 = vcmp.eq.s32.totalorder %v277, %v140
    %v310 = vsel %vm278, 1, 0
    %v311 = vsel %vm279, 1, 0
    %v312 = vsel %vm280, 1, 0
    %v313 = vsel %vm281, 1, 0
    %v314 = vsel %vm282, 1, 0
    %v315 = vsel %vm283, 1, 0
    %v316 = vsel %vm284, 1, 0
    %v317 = vsel %vm285, 1, 0
    %v318 = vsel %vm286, 1, 0
    %v319 = vsel %vm287, 1, 0
    %v320 = vsel %vm288, 1, 0
    %v321 = vsel %vm289, 1, 0
    %v322 = vsel %vm290, 1, 0
    %v323 = vsel %vm291, 1, 0
    %v324 = vsel %vm292, 1, 0
    %v325 = vsel %vm293, 1, 0
    %v326 = vsel %vm294, 1, 0
    %v327 = vsel %vm295, 1, 0
    %v328 = vsel %vm296, 1, 0
    %v329 = vsel %vm297, 1, 0
    %v330 = vsel %vm298, 1, 0
    %v331 = vsel %vm299, 1, 0
    %v332 = vsel %vm300, 1, 0
    %v333 = vsel %vm301, 1, 0
    %v334 = vsel %vm302, 1, 0
    %v335 = vsel %vm303, 1, 0
    %v336 = vsel %vm304, 1, 0
    %v337 = vsel %vm305, 1, 0
    %v338 = vsel %vm306, 1, 0
    %v339 = vsel %vm307, 1, 0
    %v340 = vsel %vm308, 1, 0
    %v341 = vsel %vm309, 1, 0
    %v342 = vcvt.s32.f32 %v310
    %v343 = vcvt.s32.f32 %v311
    %v344 = vcvt.s32.f32 %v312
    %v345 = vcvt.s32.f32 %v313
    %v346 = vcvt.s32.f32 %v314
    %v347 = vcvt.s32.f32 %v315
    %v348 = vcvt.s32.f32 %v316
    %v349 = vcvt.s32.f32 %v317
    %v350 = vcvt.s32.f32 %v318
    %v351 = vcvt.s32.f32 %v319
    %v352 = vcvt.s32.f32 %v320
    %v353 = vcvt.s32.f32 %v321
    %v354 = vcvt.s32.f32 %v322
    %v355 = vcvt.s32.f32 %v323
    %v356 = vcvt.s32.f32 %v324
    %v357 = vcvt.s32.f32 %v325
    %v358 = vcvt.s32.f32 %v326
    %v359 = vcvt.s32.f32 %v327
    %v360 = vcvt.s32.f32 %v328
    %v361 = vcvt.s32.f32 %v329
    %v362 = vcvt.s32.f32 %v330
    %v363 = vcvt.s32.f32 %v331
    %v364 = vcvt.s32.f32 %v332
    %v365 = vcvt.s32.f32 %v333
    %v366 = vcvt.s32.f32 %v334
    %v367 = vcvt.s32.f32 %v335
    %v368 = vcvt.s32.f32 %v336
    %v369 = vcvt.s32.f32 %v337
    %v370 = vcvt.s32.f32 %v338
    %v371 = vcvt.s32.f32 %v339
    %v372 = vcvt.s32.f32 %v340
    %v373 = vcvt.s32.f32 %v341
    %v374 = vld [vmem:[%s1] sm:$0x3]
    %v375 = vlaneseq
    %v376 = vshrl.u32 %v375, 7
    %v377 = vsub.s32 0, %v376
    %v378 = vrot.slane %v374, %v377
    %v379 = vlaneseq
    %v380 = vshrl.u32 %v379, 7
    %v381 = vsub.s32 1, %v380
    %v382 = vrot.slane %v374, %v381
    %vm383 = vcmp.eq.s32.totalorder %v378, %v142
    %vm384 = vcmp.eq.s32.totalorder %v382, %v142
    %vm385 = vcmp.eq.s32.totalorder %v378, %v143
    %vm386 = vcmp.eq.s32.totalorder %v382, %v143
    %vm387 = vcmp.eq.s32.totalorder %v378, %v144
    %vm388 = vcmp.eq.s32.totalorder %v382, %v144
    %vm389 = vcmp.eq.s32.totalorder %v378, %v145
    %vm390 = vcmp.eq.s32.totalorder %v382, %v145
    %vm391 = vcmp.eq.s32.totalorder %v378, %v146
    %vm392 = vcmp.eq.s32.totalorder %v382, %v146
    %vm393 = vcmp.eq.s32.totalorder %v378, %v147
    %vm394 = vcmp.eq.s32.totalorder %v382, %v147
    %vm395 = vcmp.eq.s32.totalorder %v378, %v148
    %vm396 = vcmp.eq.s32.totalorder %v382, %v148
    %vm397 = vcmp.eq.s32.totalorder %v378, %v149
    %vm398 = vcmp.eq.s32.totalorder %v382, %v149
    %v399 = vsel %vm383, 1, 0
    %v400 = vsel %vm384, 1, 0
    %v401 = vsel %vm385, 1, 0
    %v402 = vsel %vm386, 1, 0
    %v403 = vsel %vm387, 1, 0
    %v404 = vsel %vm388, 1, 0
    %v405 = vsel %vm389, 1, 0
    %v406 = vsel %vm390, 1, 0
    %v407 = vsel %vm391, 1, 0
    %v408 = vsel %vm392, 1, 0
    %v409 = vsel %vm393, 1, 0
    %v410 = vsel %vm394, 1, 0
    %v411 = vsel %vm395, 1, 0
    %v412 = vsel %vm396, 1, 0
    %v413 = vsel %vm397, 1, 0
    %v414 = vsel %vm398, 1, 0
    %v415 = vcvt.s32.f32 %v399
    %v416 = vcvt.s32.f32 %v400
    %v417 = vcvt.s32.f32 %v401
    %v418 = vcvt.s32.f32 %v402
    %v419 = vcvt.s32.f32 %v403
    %v420 = vcvt.s32.f32 %v404
    %v421 = vcvt.s32.f32 %v405
    %v422 = vcvt.s32.f32 %v406
    %v423 = vcvt.s32.f32 %v407
    %v424 = vcvt.s32.f32 %v408
    %v425 = vcvt.s32.f32 %v409
    %v426 = vcvt.s32.f32 %v410
    %v427 = vcvt.s32.f32 %v411
    %v428 = vcvt.s32.f32 %v412
    %v429 = vcvt.s32.f32 %v413
    %v430 = vcvt.s32.f32 %v414
    %431 = vmatprep.subr.mxu0 0.0
    %432 = vmatpush1.msra.mxu0 %v357
    %433 = vmatprep.subr.mxu0 0.0
    %434 = vmatpush1.msra.mxu0 %v356
    %435 = vmatprep.subr.mxu0 0.0
    %436 = vmatpush1.msra.mxu0 %v355
    %437 = vmatprep.subr.mxu0 0.0
    %438 = vmatpush1.msra.mxu0 %v354
    %439 = vmatprep.subr.mxu0 0.0
    %440 = vmatpush1.msra.mxu0 %v353
    %441 = vmatprep.subr.mxu0 0.0
    %442 = vmatpush1.msra.mxu0 %v352
    %443 = vmatprep.subr.mxu0 0.0
    %444 = vmatpush1.msra.mxu0 %v351
    %445 = vmatprep.subr.mxu0 0.0
    %446 = vmatpush1.msra.mxu0 %v350
    %447 = vmatprep.subr.mxu0 0.0
    %448 = vmatpush1.msra.mxu0 %v349
    %449 = vmatprep.subr.mxu0 0.0
    %450 = vmatpush1.msra.mxu0 %v348
    %451 = vmatprep.subr.mxu0 0.0
    %452 = vmatpush1.msra.mxu0 %v347
    %453 = vmatprep.subr.mxu0 0.0
    %454 = vmatpush1.msra.mxu0 %v346
    %455 = vmatprep.subr.mxu0 0.0
    %456 = vmatpush1.msra.mxu0 %v345
    %457 = vmatprep.subr.mxu0 0.0
    %458 = vmatpush1.msra.mxu0 %v344
    %459 = vmatprep.subr.mxu0 0.0
    %460 = vmatpush1.msra.mxu0 %v343
    %461 = vmatprep.subr.mxu0 0.0
    %462 = vmatpush1.msra.mxu0 %v342
    %463 = vmatprep.subr.mxu0 0.0
    %464 = vmatpush2.msra.mxu0 %v373
    %465 = vmatprep.subr.mxu0 0.0
    %466 = vmatpush2.msra.mxu0 %v372
    %467 = vmatprep.subr.mxu0 0.0
    %468 = vmatpush2.msra.mxu0 %v371
    %469 = vmatprep.subr.mxu0 0.0
    %470 = vmatpush2.msra.mxu0 %v370
    %471 = vmatprep.subr.mxu0 0.0
    %472 = vmatpush2.msra.mxu0 %v369
    %473 = vmatprep.subr.mxu0 0.0
    %474 = vmatpush2.msra.mxu0 %v368
    %475 = vmatprep.subr.mxu0 0.0
    %476 = vmatpush2.msra.mxu0 %v367
    %477 = vmatprep.subr.mxu0 0.0
    %478 = vmatpush2.msra.mxu0 %v366
    %479 = vmatprep.subr.mxu0 0.0
    %480 = vmatpush2.msra.mxu0 %v365
    %481 = vmatprep.subr.mxu0 0.0
    %482 = vmatpush2.msra.mxu0 %v364
    %483 = vmatprep.subr.mxu0 0.0
    %484 = vmatpush2.msra.mxu0 %v363
    %485 = vmatprep.subr.mxu0 0.0
    %486 = vmatpush2.msra.mxu0 %v362
    %487 = vmatprep.subr.mxu0 0.0
    %488 = vmatpush2.msra.mxu0 %v361
    %489 = vmatprep.subr.mxu0 0.0
    %490 = vmatpush2.msra.mxu0 %v360
    %491 = vmatprep.subr.mxu0 0.0
    %492 = vmatpush2.msra.mxu0 %v359
    %493 = vmatprep.subr.mxu0 0.0
    %494 = vmatpush2.msra.mxu0 %v358
    %495 = vmatprep.mubr.f32.mxu0 %v416
    %496 = vmatmul.mubr.f32.gmra.mxu0 %v415
    %v497 = vpop.f32.mrf.mxu0
    %v498 = vadd.f32 0.0, %v497
    %v499 = vpop.f32.mrf.mxu0
    %500 = vmatprep.mubr.f32.mxu0 %v418
    %501 = vmatmul.mubr.f32.gmra.mxu0 %v417
    %v502 = vpop.f32.mrf.mxu0
    %v503 = vadd.f32 0.0, %v502
    %v504 = vpop.f32.mrf.mxu0
    %505 = vmatprep.mubr.f32.mxu0 %v420
    %506 = vmatmul.mubr.f32.gmra.mxu0 %v419
    %v507 = vpop.f32.mrf.mxu0
    %v508 = vadd.f32 0.0, %v507
    %v509 = vpop.f32.mrf.mxu0
    %510 = vmatprep.mubr.f32.mxu0 %v422
    %511 = vmatmul.mubr.f32.gmra.mxu0 %v421
    %v512 = vpop.f32.mrf.mxu0
    %v513 = vadd.f32 0.0, %v512
    %v514 = vpop.f32.mrf.mxu0
    %515 = vmatprep.mubr.f32.mxu0 %v424
    %516 = vmatmul.mubr.f32.gmra.mxu0 %v423
    %v517 = vpop.f32.mrf.mxu0
    %v518 = vadd.f32 0.0, %v517
    %v519 = vpop.f32.mrf.mxu0
    %520 = vmatprep.mubr.f32.mxu0 %v426
    %521 = vmatmul.mubr.f32.gmra.mxu0 %v425
    %v522 = vpop.f32.mrf.mxu0
    %v523 = vadd.f32 0.0, %v522
    %v524 = vpop.f32.mrf.mxu0
    %525 = vmatprep.mubr.f32.mxu0 %v428
    %526 = vmatmul.mubr.f32.gmra.mxu0 %v427
    %v527 = vpop.f32.mrf.mxu0
    %v528 = vadd.f32 0.0, %v527
    %v529 = vpop.f32.mrf.mxu0
    %530 = vmatprep.mubr.f32.mxu0 %v430
    %531 = vmatmul.mubr.f32.gmra.mxu0 %v429
    %v532 = vpop.f32.mrf.mxu0
    %v533 = vadd.f32 0.0, %v532
    %v534 = vpop.f32.mrf.mxu0
    %535 = vdwg.mxu0
    %vm536 = vcmp.eq.s32.totalorder %v142, %v140
    %vm537 = vcmp.eq.s32.totalorder %v143, %v140
    %vm538 = vcmp.eq.s32.totalorder %v144, %v140
    %vm539 = vcmp.eq.s32.totalorder %v145, %v140
    %vm540 = vcmp.eq.s32.totalorder %v146, %v140
    %vm541 = vcmp.eq.s32.totalorder %v147, %v140
    %vm542 = vcmp.eq.s32.totalorder %v148, %v140
    %vm543 = vcmp.eq.s32.totalorder %v149, %v140
    %v544 = vsel %vm536, 1, 0
    %v545 = vsel %vm537, 1, 0
    %v546 = vsel %vm538, 1, 0
    %v547 = vsel %vm539, 1, 0
    %v548 = vsel %vm540, 1, 0
    %v549 = vsel %vm541, 1, 0
    %v550 = vsel %vm542, 1, 0
    %v551 = vsel %vm543, 1, 0
    %v552 = vcvt.s32.f32 %v544
    %v553 = vcvt.s32.f32 %v545
    %v554 = vcvt.s32.f32 %v546
    %v555 = vcvt.s32.f32 %v547
    %v556 = vcvt.s32.f32 %v548
    %v557 = vcvt.s32.f32 %v549
    %v558 = vcvt.s32.f32 %v550
    %v559 = vcvt.s32.f32 %v551
    %v560 = vsub.f32 1.0, %v552
    %v561 = vsub.f32 1.0, %v553
    %v562 = vsub.f32 1.0, %v554
    %v563 = vsub.f32 1.0, %v555
    %v564 = vsub.f32 1.0, %v556
    %v565 = vsub.f32 1.0, %v557
    %v566 = vsub.f32 1.0, %v558
    %v567 = vsub.f32 1.0, %v559
    %v568 = vmul.f32 %v498, %v560
    %v569 = vmul.f32 %v503, %v561
    %v570 = vmul.f32 %v508, %v562
    %v571 = vmul.f32 %v513, %v563
    %v572 = vmul.f32 %v518, %v564
    %v573 = vmul.f32 %v523, %v565
    %v574 = vmul.f32 %v528, %v566
    %v575 = vmul.f32 %v533, %v567
    %v576 = vadd.f32 %v568, %v552
    %v577 = vadd.f32 %v569, %v553
    %v578 = vadd.f32 %v570, %v554
    %v579 = vadd.f32 %v571, %v555
    %v580 = vadd.f32 %v572, %v556
    %v581 = vadd.f32 %v573, %v557
    %v582 = vadd.f32 %v574, %v558
    %v583 = vadd.f32 %v575, %v559
    %vm584 = vcmask 523264
    %v585 = vsel %vm584, %v576, 0.0
    %586 = vadd.xlane.f32.xlu0 %v585
    %v587 = vpop.xlane.xlu0 %586
    %v588 = vsel %vm584, %v577, 0.0
    %589 = vadd.xlane.f32.xlu0 %v588
    %v590 = vpop.xlane.xlu0 %589
    %v591 = vsel %vm584, %v578, 0.0
    %592 = vadd.xlane.f32.xlu0 %v591
    %v593 = vpop.xlane.xlu0 %592
    %v594 = vsel %vm584, %v579, 0.0
    %595 = vadd.xlane.f32.xlu0 %v594
    %v596 = vpop.xlane.xlu0 %595
    %v597 = vsel %vm584, %v580, 0.0
    %598 = vadd.xlane.f32.xlu0 %v597
    %v599 = vpop.xlane.xlu0 %598
    %v600 = vsel %vm584, %v581, 0.0
    %601 = vadd.xlane.f32.xlu0 %v600
    %v602 = vpop.xlane.xlu0 %601
    %v603 = vsel %vm584, %v582, 0.0
    %604 = vadd.xlane.f32.xlu0 %v603
    %v605 = vpop.xlane.xlu0 %604
    %v606 = vsel %vm584, %v583, 0.0
    %607 = vadd.xlane.f32.xlu0 %v606
    %v608 = vpop.xlane.xlu0 %607
    %v609 = vrsqrt.pop %v587
    %v610 = vrsqrt.pop %v590
    %v611 = vrsqrt.pop %v593
    %v612 = vrsqrt.pop %v596
    %v613 = vrsqrt.pop %v599
    %v614 = vrsqrt.pop %v602
    %v615 = vrsqrt.pop %v605
    %v616 = vrsqrt.pop %v608
    %v617 = vld [vmem:[%s2] sm:$0xff]
    %v618 = vld [vmem:[%s2 + $0x8] sm:$0xff]
    %v619 = vld [vmem:[%s2 + $0x10] sm:$0xff]
    %v620 = vld [vmem:[%s2 + $0x18] sm:$0xff]
    %v621 = vld [vmem:[%s2 + $0x20] sm:$0xff]
    %v622 = vld [vmem:[%s2 + $0x28] sm:$0xff]
    %v623 = vld [vmem:[%s2 + $0x30] sm:$0xff]
    %v624 = vld [vmem:[%s2 + $0x38] sm:$0xff]
    %v625 = vmul.f32 %v609, %v617
    %v626 = vmul.f32 %v610, %v618
    %v627 = vmul.f32 %v611, %v619
    %v628 = vmul.f32 %v612, %v620
    %v629 = vmul.f32 %v613, %v621
    %v630 = vmul.f32 %v614, %v622
    %v631 = vmul.f32 %v615, %v623
    %v632 = vmul.f32 %v616, %v624
    %v634 = vsel %vm584, %v576, 0
    %v637 = vsel %vm584, %v577, 0
    %v640 = vsel %vm584, %v578, 0
    %v643 = vsel %vm584, %v579, 0
    %v646 = vsel %vm584, %v580, 0
    %v649 = vsel %vm584, %v581, 0
    %v652 = vsel %vm584, %v582, 0
    %v655 = vsel %vm584, %v583, 0
    %657 = vmatprep.subr.mxu0 0.0
    %658 = vmatpush1.msra.mxu0 0.0
    %659 = vmatprep.subr.mxu0 0.0
    %660 = vmatpush1.msra.mxu0 0.0
    %661 = vmatprep.subr.mxu0 0.0
    %662 = vmatpush1.msra.mxu0 0.0
    %663 = vmatprep.subr.mxu0 0.0
    %664 = vmatpush1.msra.mxu0 0.0
    %665 = vmatprep.subr.mxu0 0.0
    %666 = vmatpush1.msra.mxu0 0.0
    %667 = vmatprep.subr.mxu0 0.0
    %668 = vmatpush1.msra.mxu0 0.0
    %669 = vmatprep.subr.mxu0 0.0
    %670 = vmatpush1.msra.mxu0 0.0
    %671 = vmatprep.subr.mxu0 0.0
    %672 = vmatpush1.msra.mxu0 0.0
    %673 = vmatprep.subr.mxu0 0.0
    %674 = vmatpush1.msra.mxu0 %v632
    %675 = vmatprep.subr.mxu0 0.0
    %676 = vmatpush1.msra.mxu0 %v631
    %677 = vmatprep.subr.mxu0 0.0
    %678 = vmatpush1.msra.mxu0 %v630
    %679 = vmatprep.subr.mxu0 0.0
    %680 = vmatpush1.msra.mxu0 %v629
    %681 = vmatprep.subr.mxu0 0.0
    %682 = vmatpush1.msra.mxu0 %v628
    %683 = vmatprep.subr.mxu0 0.0
    %684 = vmatpush1.msra.mxu0 %v627
    %685 = vmatprep.subr.mxu0 0.0
    %686 = vmatpush1.msra.mxu0 %v626
    %687 = vmatprep.subr.mxu0 0.0
    %688 = vmatpush1.msra.mxu0 %v625
    %689 = vmatprep.subr.mxu0 0.0
    %690 = vmatpush2.msra.mxu0 0.0
    %691 = vmatprep.subr.mxu0 0.0
    %692 = vmatpush2.msra.mxu0 0.0
    %693 = vmatprep.subr.mxu0 0.0
    %694 = vmatpush2.msra.mxu0 0.0
    %695 = vmatprep.subr.mxu0 0.0
    %696 = vmatpush2.msra.mxu0 0.0
    %697 = vmatprep.subr.mxu0 0.0
    %698 = vmatpush2.msra.mxu0 0.0
    %699 = vmatprep.subr.mxu0 0.0
    %700 = vmatpush2.msra.mxu0 0.0
    %701 = vmatprep.subr.mxu0 0.0
    %702 = vmatpush2.msra.mxu0 0.0
    %703 = vmatprep.subr.mxu0 0.0
    %704 = vmatpush2.msra.mxu0 0.0
    %705 = vmatprep.subr.mxu0 0.0
    %706 = vmatpush2.msra.mxu0 0.0
    %707 = vmatprep.subr.mxu0 0.0
    %708 = vmatpush2.msra.mxu0 0.0
    %709 = vmatprep.subr.mxu0 0.0
    %710 = vmatpush2.msra.mxu0 0.0
    %711 = vmatprep.subr.mxu0 0.0
    %712 = vmatpush2.msra.mxu0 0.0
    %713 = vmatprep.subr.mxu0 0.0
    %714 = vmatpush2.msra.mxu0 0.0
    %715 = vmatprep.subr.mxu0 0.0
    %716 = vmatpush2.msra.mxu0 0.0
    %717 = vmatprep.subr.mxu0 0.0
    %718 = vmatpush2.msra.mxu0 0.0
    %719 = vmatprep.subr.mxu0 0.0
    %720 = vmatpush2.msra.mxu0 0.0
    %721 = vmatprep.mubr.f32.mxu0 0.0
    %722 = vmatmul.mubr.f32.gmra.mxu0 %v634
    %v723 = vpop.f32.mrf.mxu0
    %v724 = vadd.f32 0.0, %v723
    %v725 = vpop.f32.mrf.mxu0
    %726 = vmatprep.mubr.f32.mxu0 0.0
    %727 = vmatmul.mubr.f32.gmra.mxu0 %v637
    %v728 = vpop.f32.mrf.mxu0
    %v729 = vadd.f32 0.0, %v728
    %v730 = vpop.f32.mrf.mxu0
    %731 = vmatprep.mubr.f32.mxu0 0.0
    %732 = vmatmul.mubr.f32.gmra.mxu0 %v640
    %v733 = vpop.f32.mrf.mxu0
    %v734 = vadd.f32 0.0, %v733
    %v735 = vpop.f32.mrf.mxu0
    %736 = vmatprep.mubr.f32.mxu0 0.0
    %737 = vmatmul.mubr.f32.gmra.mxu0 %v643
    %v738 = vpop.f32.mrf.mxu0
    %v739 = vadd.f32 0.0, %v738
    %v740 = vpop.f32.mrf.mxu0
    %741 = vmatprep.mubr.f32.mxu0 0.0
    %742 = vmatmul.mubr.f32.gmra.mxu0 %v646
    %v743 = vpop.f32.mrf.mxu0
    %v744 = vadd.f32 0.0, %v743
    %v745 = vpop.f32.mrf.mxu0
    %746 = vmatprep.mubr.f32.mxu0 0.0
    %747 = vmatmul.mubr.f32.gmra.mxu0 %v649
    %v748 = vpop.f32.mrf.mxu0
    %v749 = vadd.f32 0.0, %v748
    %v750 = vpop.f32.mrf.mxu0
    %751 = vmatprep.mubr.f32.mxu0 0.0
    %752 = vmatmul.mubr.f32.gmra.mxu0 %v652
    %v753 = vpop.f32.mrf.mxu0
    %v754 = vadd.f32 0.0, %v753
    %v755 = vpop.f32.mrf.mxu0
    %756 = vmatprep.mubr.f32.mxu0 0.0
    %757 = vmatmul.mubr.f32.gmra.mxu0 %v655
    %v758 = vpop.f32.mrf.mxu0
    %v759 = vadd.f32 0.0, %v758
    %v760 = vpop.f32.mrf.mxu0
    %761 = vdwg.mxu0
    %v762 = vmul.f32 %v609, %v724
    %v763 = vmul.f32 %v610, %v729
    %v764 = vmul.f32 %v611, %v734
    %v765 = vmul.f32 %v612, %v739
    %v766 = vmul.f32 %v613, %v744
    %v767 = vmul.f32 %v614, %v749
    %v768 = vmul.f32 %v615, %v754
    %v769 = vmul.f32 %v616, %v759
    %v770 = vld [vmem:[#allocation2] sm:$0xff]
    %v771 = vld [vmem:[#allocation2 + $0x8] sm:$0xff]
    %v772 = vld [vmem:[#allocation2 + $0x10] sm:$0xff]
    %v773 = vld [vmem:[#allocation2 + $0x18] sm:$0xff]
    %v774 = vld [vmem:[#allocation2 + $0x20] sm:$0xff]
    %v775 = vld [vmem:[#allocation2 + $0x28] sm:$0xff]
    %v776 = vld [vmem:[#allocation2 + $0x30] sm:$0xff]
    %v777 = vld [vmem:[#allocation2 + $0x38] sm:$0xff]
    %v778 = vld [vmem:[#allocation2 + $0x40] sm:$0xff]
    %v779 = vld [vmem:[#allocation2 + $0x48] sm:$0xff]
    %v780 = vld [vmem:[#allocation2 + $0x50] sm:$0xff]
    %v781 = vld [vmem:[#allocation2 + $0x58] sm:$0xff]
    %v782 = vld [vmem:[#allocation2 + $0x60] sm:$0xff]
    %v783 = vld [vmem:[#allocation2 + $0x68] sm:$0xff]
    %v784 = vld [vmem:[#allocation2 + $0x70] sm:$0xff]
    %v785 = vld [vmem:[#allocation2 + $0x78] sm:$0xff]
    %v786 = vld [vmem:[#allocation2 + $0x80] sm:$0xff]
    %v787 = vld [vmem:[#allocation2 + $0x88] sm:$0xff]
    %v788 = vld [vmem:[#allocation2 + $0x90] sm:$0xff]
    %v789 = vld [vmem:[#allocation2 + $0x98] sm:$0xff]
    %v790 = vld [vmem:[#allocation2 + $0xa0] sm:$0xff]
    %v791 = vld [vmem:[#allocation2 + $0xa8] sm:$0xff]
    %v792 = vld [vmem:[#allocation2 + $0xb0] sm:$0xff]
    %v793 = vld [vmem:[#allocation2 + $0xb8] sm:$0xff]
    %v794 = vld [vmem:[#allocation2 + $0xc0] sm:$0xff]
    %v795 = vld [vmem:[#allocation2 + $0xc8] sm:$0xff]
    %v796 = vld [vmem:[#allocation2 + $0xd0] sm:$0xff]
    %v797 = vld [vmem:[#allocation2 + $0xd8] sm:$0xff]
    %v798 = vld [vmem:[#allocation2 + $0xe0] sm:$0xff]
    %v799 = vld [vmem:[#allocation2 + $0xe8] sm:$0xff]
    %v800 = vld [vmem:[#allocation2 + $0xf0] sm:$0xff]
    %v801 = vld [vmem:[#allocation2 + $0xf8] sm:$0xff]
    %v802 = vld [vmem:[#allocation4] sm:$0xff]
    %v804 = vlaneseq
    %v805 = vshrl.u32 %v804, 7
    %v806 = vsub.s32 0, %v805
    %v807 = vrot.slane %v802, %v806
    %v808 = vlaneseq
    %v809 = vshrl.u32 %v808, 7
    %v810 = vsub.s32 1, %v809
    %v811 = vrot.slane %v802, %v810
    %v812 = vlaneseq
    %v813 = vshrl.u32 %v812, 7
    %v814 = vsub.s32 2, %v813
    %v815 = vrot.slane %v802, %v814
    %v816 = vlaneseq
    %v817 = vshrl.u32 %v816, 7
    %v818 = vsub.s32 3, %v817
    %v819 = vrot.slane %v802, %v818
    %v820 = vlaneseq
    %v821 = vshrl.u32 %v820, 7
    %v822 = vsub.s32 4, %v821
    %v823 = vrot.slane %v802, %v822
    %v824 = vlaneseq
    %v825 = vshrl.u32 %v824, 7
    %v826 = vsub.s32 5, %v825
    %v827 = vrot.slane %v802, %v826
    %v828 = vlaneseq
    %v829 = vshrl.u32 %v828, 7
    %v830 = vsub.s32 6, %v829
    %v831 = vrot.slane %v802, %v830
    %v832 = vlaneseq
    %v833 = vshrl.u32 %v832, 7
    %v834 = vsub.s32 7, %v833
    %v835 = vrot.slane %v802, %v834
    %vm844 = vcmask 261120
    %v846 = vsel %vm844, %v762, 0
    %v849 = vsel %vm844, %v763, 0
    %v852 = vsel %vm844, %v764, 0
    %v855 = vsel %vm844, %v765, 0
    %v858 = vsel %vm844, %v766, 0
    %v861 = vsel %vm844, %v767, 0
    %v864 = vsel %vm844, %v768, 0
    %v867 = vsel %vm844, %v769, 0
    %869 = vmatprep.subr.mxu0 0.0
    %870 = vmatpush1.msra.mxu0 0.0
    %871 = vmatprep.subr.mxu0 0.0
    %872 = vmatpush1.msra.mxu0 0.0
    %873 = vmatprep.subr.mxu0 0.0
    %874 = vmatpush1.msra.mxu0 0.0
    %875 = vmatprep.subr.mxu0 0.0
    %876 = vmatpush1.msra.mxu0 0.0
    %877 = vmatprep.subr.mxu0 0.0
    %878 = vmatpush1.msra.mxu0 0.0
    %879 = vmatprep.subr.mxu0 0.0
    %880 = vmatpush1.msra.mxu0 0.0
    %881 = vmatprep.subr.mxu0 0.0
    %882 = vmatpush1.msra.mxu0 0.0
    %883 = vmatprep.subr.mxu0 0.0
    %884 = vmatpush1.msra.mxu0 0.0
    %885 = vmatprep.subr.mxu0 0.0
    %886 = vmatpush1.msra.mxu0 0.0
    %887 = vmatprep.subr.mxu0 0.0
    %888 = vmatpush1.msra.mxu0 0.0
    %889 = vmatprep.subr.mxu0 0.0
    %890 = vmatpush1.msra.mxu0 0.0
    %891 = vmatprep.subr.mxu0 0.0
    %892 = vmatpush1.msra.mxu0 0.0
    %893 = vmatprep.subr.mxu0 %v795
    %894 = vmatpush1.msra.mxu0 %v794
    %895 = vmatprep.subr.mxu0 %v787
    %896 = vmatpush1.msra.mxu0 %v786
    %897 = vmatprep.subr.mxu0 %v779
    %898 = vmatpush1.msra.mxu0 %v778
    %899 = vmatprep.subr.mxu0 %v771
    %900 = vmatpush1.msra.mxu0 %v770
    %901 = vmatprep.subr.mxu0 0.0
    %902 = vmatpush2.msra.mxu0 0.0
    %903 = vmatprep.subr.mxu0 0.0
    %904 = vmatpush2.msra.mxu0 0.0
    %905 = vmatprep.subr.mxu0 0.0
    %906 = vmatpush2.msra.mxu0 0.0
    %907 = vmatprep.subr.mxu0 0.0
    %908 = vmatpush2.msra.mxu0 0.0
    %909 = vmatprep.subr.mxu0 0.0
    %910 = vmatpush2.msra.mxu0 0.0
    %911 = vmatprep.subr.mxu0 0.0
    %912 = vmatpush2.msra.mxu0 0.0
    %913 = vmatprep.subr.mxu0 0.0
    %914 = vmatpush2.msra.mxu0 0.0
    %915 = vmatprep.subr.mxu0 0.0
    %916 = vmatpush2.msra.mxu0 0.0
    %917 = vmatprep.subr.mxu0 0.0
    %918 = vmatpush2.msra.mxu0 0.0
    %919 = vmatprep.subr.mxu0 0.0
    %920 = vmatpush2.msra.mxu0 0.0
    %921 = vmatprep.subr.mxu0 0.0
    %922 = vmatpush2.msra.mxu0 0.0
    %923 = vmatprep.subr.mxu0 0.0
    %924 = vmatpush2.msra.mxu0 0.0
    %925 = vmatprep.subr.mxu0 0.0
    %926 = vmatpush2.msra.mxu0 0.0
    %927 = vmatprep.subr.mxu0 0.0
    %928 = vmatpush2.msra.mxu0 0.0
    %929 = vmatprep.subr.mxu0 0.0
    %930 = vmatpush2.msra.mxu0 0.0
    %931 = vmatprep.subr.mxu0 0.0
    %932 = vmatpush2.msra.mxu0 0.0
    %933 = vmatprep.mubr.f32.mxu0 0.0
    %934 = vmatmul.mubr.f32.gmra.mxu0 %v846
    %v935 = vpop.f32.mrf.mxu0
    %v936 = vadd.f32 %v807, %v935
    %v937 = vpop.f32.mrf.mxu0
    %v938 = vadd.f32 %v811, %v937
    %939 = vmatprep.mubr.f32.mxu0 0.0
    %940 = vmatmul.mubr.f32.gmra.mxu0 %v849
    %v941 = vpop.f32.mrf.mxu0
    %v942 = vadd.f32 %v807, %v941
    %v943 = vpop.f32.mrf.mxu0
    %v944 = vadd.f32 %v811, %v943
    %945 = vmatprep.mubr.f32.mxu0 0.0
    %946 = vmatmul.mubr.f32.gmra.mxu0 %v852
    %v947 = vpop.f32.mrf.mxu0
    %v948 = vadd.f32 %v807, %v947
    %v949 = vpop.f32.mrf.mxu0
    %v950 = vadd.f32 %v811, %v949
    %951 = vmatprep.mubr.f32.mxu0 0.0
    %952 = vmatmul.mubr.f32.gmra.mxu0 %v855
    %v953 = vpop.f32.mrf.mxu0
    %v954 = vadd.f32 %v807, %v953
    %v955 = vpop.f32.mrf.mxu0
    %v956 = vadd.f32 %v811, %v955
    %957 = vmatprep.mubr.f32.mxu0 0.0
    %958 = vmatmul.mubr.f32.gmra.mxu0 %v858
    %v959 = vpop.f32.mrf.mxu0
    %v960 = vadd.f32 %v807, %v959
    %v961 = vpop.f32.mrf.mxu0
    %v962 = vadd.f32 %v811, %v961
    %963 = vmatprep.mubr.f32.mxu0 0.0
    %964 = vmatmul.mubr.f32.gmra.mxu0 %v861
    %v965 = vpop.f32.mrf.mxu0
    %v966 = vadd.f32 %v807, %v965
    %v967 = vpop.f32.mrf.mxu0
    %v968 = vadd.f32 %v811, %v967
    %969 = vmatprep.mubr.f32.mxu0 0.0
    %970 = vmatmul.mubr.f32.gmra.mxu0 %v864
    %v971 = vpop.f32.mrf.mxu0
    %v972 = vadd.f32 %v807, %v971
    %v973 = vpop.f32.mrf.mxu0
    %v974 = vadd.f32 %v811, %v973
    %975 = vmatprep.mubr.f32.mxu0 0.0
    %976 = vmatmul.mubr.f32.gmra.mxu0 %v867
    %v977 = vpop.f32.mrf.mxu0
    %v978 = vadd.f32 %v807, %v977
    %v979 = vpop.f32.mrf.mxu0
    %v980 = vadd.f32 %v811, %v979
    %981 = vdwg.mxu0
    %982 = vmatprep.subr.mxu0 0.0
    %983 = vmatpush1.msra.mxu0 0.0
    %984 = vmatprep.subr.mxu0 0.0
    %985 = vmatpush1.msra.mxu0 0.0
    %986 = vmatprep.subr.mxu0 0.0
    %987 = vmatpush1.msra.mxu0 0.0
    %988 = vmatprep.subr.mxu0 0.0
    %989 = vmatpush1.msra.mxu0 0.0
    %990 = vmatprep.subr.mxu0 0.0
    %991 = vmatpush1.msra.mxu0 0.0
    %992 = vmatprep.subr.mxu0 0.0
    %993 = vmatpush1.msra.mxu0 0.0
    %994 = vmatprep.subr.mxu0 0.0
    %995 = vmatpush1.msra.mxu0 0.0
    %996 = vmatprep.subr.mxu0 0.0
    %997 = vmatpush1.msra.mxu0 0.0
    %998 = vmatprep.subr.mxu0 0.0
    %999 = vmatpush1.msra.mxu0 0.0
    %1000 = vmatprep.subr.mxu0 0.0
    %1001 = vmatpush1.msra.mxu0 0.0
    %1002 = vmatprep.subr.mxu0 0.0
    %1003 = vmatpush1.msra.mxu0 0.0
    %1004 = vmatprep.subr.mxu0 0.0
    %1005 = vmatpush1.msra.mxu0 0.0
    %1006 = vmatprep.subr.mxu0 %v797
    %1007 = vmatpush1.msra.mxu0 %v796
    %1008 = vmatprep.subr.mxu0 %v789
    %1009 = vmatpush1.msra.mxu0 %v788
    %1010 = vmatprep.subr.mxu0 %v781
    %1011 = vmatpush1.msra.mxu0 %v780
    %1012 = vmatprep.subr.mxu0 %v773
    %1013 = vmatpush1.msra.mxu0 %v772
    %1014 = vmatprep.subr.mxu0 0.0
    %1015 = vmatpush2.msra.mxu0 0.0
    %1016 = vmatprep.subr.mxu0 0.0
    %1017 = vmatpush2.msra.mxu0 0.0
    %1018 = vmatprep.subr.mxu0 0.0
    %1019 = vmatpush2.msra.mxu0 0.0
    %1020 = vmatprep.subr.mxu0 0.0
    %1021 = vmatpush2.msra.mxu0 0.0
    %1022 = vmatprep.subr.mxu0 0.0
    %1023 = vmatpush2.msra.mxu0 0.0
    %1024 = vmatprep.subr.mxu0 0.0
    %1025 = vmatpush2.msra.mxu0 0.0
    %1026 = vmatprep.subr.mxu0 0.0
    %1027 = vmatpush2.msra.mxu0 0.0
    %1028 = vmatprep.subr.mxu0 0.0
    %1029 = vmatpush2.msra.mxu0 0.0
    %1030 = vmatprep.subr.mxu0 0.0
    %1031 = vmatpush2.msra.mxu0 0.0
    %1032 = vmatprep.subr.mxu0 0.0
    %1033 = vmatpush2.msra.mxu0 0.0
    %1034 = vmatprep.subr.mxu0 0.0
    %1035 = vmatpush2.msra.mxu0 0.0
    %1036 = vmatprep.subr.mxu0 0.0
    %1037 = vmatpush2.msra.mxu0 0.0
    %1038 = vmatprep.subr.mxu0 0.0
    %1039 = vmatpush2.msra.mxu0 0.0
    %1040 = vmatprep.subr.mxu0 0.0
    %1041 = vmatpush2.msra.mxu0 0.0
    %1042 = vmatprep.subr.mxu0 0.0
    %1043 = vmatpush2.msra.mxu0 0.0
    %1044 = vmatprep.subr.mxu0 0.0
    %1045 = vmatpush2.msra.mxu0 0.0
    %1046 = vmatprep.mubr.f32.mxu0 0.0
    %1047 = vmatmul.mubr.f32.gmra.mxu0 %v846
    %v1048 = vpop.f32.mrf.mxu0
    %v1049 = vadd.f32 %v815, %v1048
    %v1050 = vpop.f32.mrf.mxu0
    %v1051 = vadd.f32 %v819, %v1050
    %1052 = vmatprep.mubr.f32.mxu0 0.0
    %1053 = vmatmul.mubr.f32.gmra.mxu0 %v849
    %v1054 = vpop.f32.mrf.mxu0
    %v1055 = vadd.f32 %v815, %v1054
    %v1056 = vpop.f32.mrf.mxu0
    %v1057 = vadd.f32 %v819, %v1056
    %1058 = vmatprep.mubr.f32.mxu0 0.0
    %1059 = vmatmul.mubr.f32.gmra.mxu0 %v852
    %v1060 = vpop.f32.mrf.mxu0
    %v1061 = vadd.f32 %v815, %v1060
    %v1062 = vpop.f32.mrf.mxu0
    %v1063 = vadd.f32 %v819, %v1062
    %1064 = vmatprep.mubr.f32.mxu0 0.0
    %1065 = vmatmul.mubr.f32.gmra.mxu0 %v855
    %v1066 = vpop.f32.mrf.mxu0
    %v1067 = vadd.f32 %v815, %v1066
    %v1068 = vpop.f32.mrf.mxu0
    %v1069 = vadd.f32 %v819, %v1068
    %1070 = vmatprep.mubr.f32.mxu0 0.0
    %1071 = vmatmul.mubr.f32.gmra.mxu0 %v858
    %v1072 = vpop.f32.mrf.mxu0
    %v1073 = vadd.f32 %v815, %v1072
    %v1074 = vpop.f32.mrf.mxu0
    %v1075 = vadd.f32 %v819, %v1074
    %1076 = vmatprep.mubr.f32.mxu0 0.0
    %1077 = vmatmul.mubr.f32.gmra.mxu0 %v861
    %v1078 = vpop.f32.mrf.mxu0
    %v1079 = vadd.f32 %v815, %v1078
    %v1080 = vpop.f32.mrf.mxu0
    %v1081 = vadd.f32 %v819, %v1080
    %1082 = vmatprep.mubr.f32.mxu0 0.0
    %1083 = vmatmul.mubr.f32.gmra.mxu0 %v864
    %v1084 = vpop.f32.mrf.mxu0
    %v1085 = vadd.f32 %v815, %v1084
    %v1086 = vpop.f32.mrf.mxu0
    %v1087 = vadd.f32 %v819, %v1086
    %1088 = vmatprep.mubr.f32.mxu0 0.0
    %1089 = vmatmul.mubr.f32.gmra.mxu0 %v867
    %v1090 = vpop.f32.mrf.mxu0
    %v1091 = vadd.f32 %v815, %v1090
    %v1092 = vpop.f32.mrf.mxu0
    %v1093 = vadd.f32 %v819, %v1092
    %1094 = vdwg.mxu0
    %1095 = vmatprep.subr.mxu0 0.0
    %1096 = vmatpush1.msra.mxu0 0.0
    %1097 = vmatprep.subr.mxu0 0.0
    %1098 = vmatpush1.msra.mxu0 0.0
    %1099 = vmatprep.subr.mxu0 0.0
    %1100 = vmatpush1.msra.mxu0 0.0
    %1101 = vmatprep.subr.mxu0 0.0
    %1102 = vmatpush1.msra.mxu0 0.0
    %1103 = vmatprep.subr.mxu0 0.0
    %1104 = vmatpush1.msra.mxu0 0.0
    %1105 = vmatprep.subr.mxu0 0.0
    %1106 = vmatpush1.msra.mxu0 0.0
    %1107 = vmatprep.subr.mxu0 0.0
    %1108 = vmatpush1.msra.mxu0 0.0
    %1109 = vmatprep.subr.mxu0 0.0
    %1110 = vmatpush1.msra.mxu0 0.0
    %1111 = vmatprep.subr.mxu0 0.0
    %1112 = vmatpush1.msra.mxu0 0.0
    %1113 = vmatprep.subr.mxu0 0.0
    %1114 = vmatpush1.msra.mxu0 0.0
    %1115 = vmatprep.subr.mxu0 0.0
    %1116 = vmatpush1.msra.mxu0 0.0
    %1117 = vmatprep.subr.mxu0 0.0
    %1118 = vmatpush1.msra.mxu0 0.0
    %1119 = vmatprep.subr.mxu0 %v799
    %1120 = vmatpush1.msra.mxu0 %v798
    %1121 = vmatprep.subr.mxu0 %v791
    %1122 = vmatpush1.msra.mxu0 %v790
    %1123 = vmatprep.subr.mxu0 %v783
    %1124 = vmatpush1.msra.mxu0 %v782
    %1125 = vmatprep.subr.mxu0 %v775
    %1126 = vmatpush1.msra.mxu0 %v774
    %1127 = vmatprep.subr.mxu0 0.0
    %1128 = vmatpush2.msra.mxu0 0.0
    %1129 = vmatprep.subr.mxu0 0.0
    %1130 = vmatpush2.msra.mxu0 0.0
    %1131 = vmatprep.subr.mxu0 0.0
    %1132 = vmatpush2.msra.mxu0 0.0
    %1133 = vmatprep.subr.mxu0 0.0
    %1134 = vmatpush2.msra.mxu0 0.0
    %1135 = vmatprep.subr.mxu0 0.0
    %1136 = vmatpush2.msra.mxu0 0.0
    %1137 = vmatprep.subr.mxu0 0.0
    %1138 = vmatpush2.msra.mxu0 0.0
    %1139 = vmatprep.subr.mxu0 0.0
    %1140 = vmatpush2.msra.mxu0 0.0
    %1141 = vmatprep.subr.mxu0 0.0
    %1142 = vmatpush2.msra.mxu0 0.0
    %1143 = vmatprep.subr.mxu0 0.0
    %1144 = vmatpush2.msra.mxu0 0.0
    %1145 = vmatprep.subr.mxu0 0.0
    %1146 = vmatpush2.msra.mxu0 0.0
    %1147 = vmatprep.subr.mxu0 0.0
    %1148 = vmatpush2.msra.mxu0 0.0
    %1149 = vmatprep.subr.mxu0 0.0
    %1150 = vmatpush2.msra.mxu0 0.0
    %1151 = vmatprep.subr.mxu0 0.0
    %1152 = vmatpush2.msra.mxu0 0.0
    %1153 = vmatprep.subr.mxu0 0.0
    %1154 = vmatpush2.msra.mxu0 0.0
    %1155 = vmatprep.subr.mxu0 0.0
    %1156 = vmatpush2.msra.mxu0 0.0
    %1157 = vmatprep.subr.mxu0 0.0
    %1158 = vmatpush2.msra.mxu0 0.0
    %1159 = vmatprep.mubr.f32.mxu0 0.0
    %1160 = vmatmul.mubr.f32.gmra.mxu0 %v846
    %v1161 = vpop.f32.mrf.mxu0
    %v1162 = vadd.f32 %v823, %v1161
    %v1163 = vpop.f32.mrf.mxu0
    %v1164 = vadd.f32 %v827, %v1163
    %1165 = vmatprep.mubr.f32.mxu0 0.0
    %1166 = vmatmul.mubr.f32.gmra.mxu0 %v849
    %v1167 = vpop.f32.mrf.mxu0
    %v1168 = vadd.f32 %v823, %v1167
    %v1169 = vpop.f32.mrf.mxu0
    %v1170 = vadd.f32 %v827, %v1169
    %1171 = vmatprep.mubr.f32.mxu0 0.0
    %1172 = vmatmul.mubr.f32.gmra.mxu0 %v852
    %v1173 = vpop.f32.mrf.mxu0
    %v1174 = vadd.f32 %v823, %v1173
    %v1175 = vpop.f32.mrf.mxu0
    %v1176 = vadd.f32 %v827, %v1175
    %1177 = vmatprep.mubr.f32.mxu0 0.0
    %1178 = vmatmul.mubr.f32.gmra.mxu0 %v855
    %v1179 = vpop.f32.mrf.mxu0
    %v1180 = vadd.f32 %v823, %v1179
    %v1181 = vpop.f32.mrf.mxu0
    %v1182 = vadd.f32 %v827, %v1181
    %1183 = vmatprep.mubr.f32.mxu0 0.0
    %1184 = vmatmul.mubr.f32.gmra.mxu0 %v858
    %v1185 = vpop.f32.mrf.mxu0
    %v1186 = vadd.f32 %v823, %v1185
    %v1187 = vpop.f32.mrf.mxu0
    %v1188 = vadd.f32 %v827, %v1187
    %1189 = vmatprep.mubr.f32.mxu0 0.0
    %1190 = vmatmul.mubr.f32.gmra.mxu0 %v861
    %v1191 = vpop.f32.mrf.mxu0
    %v1192 = vadd.f32 %v823, %v1191
    %v1193 = vpop.f32.mrf.mxu0
    %v1194 = vadd.f32 %v827, %v1193
    %1195 = vmatprep.mubr.f32.mxu0 0.0
    %1196 = vmatmul.mubr.f32.gmra.mxu0 %v864
    %v1197 = vpop.f32.mrf.mxu0
    %v1198 = vadd.f32 %v823, %v1197
    %v1199 = vpop.f32.mrf.mxu0
    %v1200 = vadd.f32 %v827, %v1199
    %1201 = vmatprep.mubr.f32.mxu0 0.0
    %1202 = vmatmul.mubr.f32.gmra.mxu0 %v867
    %v1203 = vpop.f32.mrf.mxu0
    %v1204 = vadd.f32 %v823, %v1203
    %v1205 = vpop.f32.mrf.mxu0
    %v1206 = vadd.f32 %v827, %v1205
    %1207 = vdwg.mxu0
    %1208 = vmatprep.subr.mxu0 0.0
    %1209 = vmatpush1.msra.mxu0 0.0
    %1210 = vmatprep.subr.mxu0 0.0
    %1211 = vmatpush1.msra.mxu0 0.0
    %1212 = vmatprep.subr.mxu0 0.0
    %1213 = vmatpush1.msra.mxu0 0.0
    %1214 = vmatprep.subr.mxu0 0.0
    %1215 = vmatpush1.msra.mxu0 0.0
    %1216 = vmatprep.subr.mxu0 0.0
    %1217 = vmatpush1.msra.mxu0 0.0
    %1218 = vmatprep.subr.mxu0 0.0
    %1219 = vmatpush1.msra.mxu0 0.0
    %1220 = vmatprep.subr.mxu0 0.0
    %1221 = vmatpush1.msra.mxu0 0.0
    %1222 = vmatprep.subr.mxu0 0.0
    %1223 = vmatpush1.msra.mxu0 0.0
    %1224 = vmatprep.subr.mxu0 0.0
    %1225 = vmatpush1.msra.mxu0 0.0
    %1226 = vmatprep.subr.mxu0 0.0
    %1227 = vmatpush1.msra.mxu0 0.0
    %1228 = vmatprep.subr.mxu0 0.0
    %1229 = vmatpush1.msra.mxu0 0.0
    %1230 = vmatprep.subr.mxu0 0.0
    %1231 = vmatpush1.msra.mxu0 0.0
    %1232 = vmatprep.subr.mxu0 %v801
    %1233 = vmatpush1.msra.mxu0 %v800
    %1234 = vmatprep.subr.mxu0 %v793
    %1235 = vmatpush1.msra.mxu0 %v792
    %1236 = vmatprep.subr.mxu0 %v785
    %1237 = vmatpush1.msra.mxu0 %v784
    %1238 = vmatprep.subr.mxu0 %v777
    %1239 = vmatpush1.msra.mxu0 %v776
    %1240 = vmatprep.subr.mxu0 0.0
    %1241 = vmatpush2.msra.mxu0 0.0
    %1242 = vmatprep.subr.mxu0 0.0
    %1243 = vmatpush2.msra.mxu0 0.0
    %1244 = vmatprep.subr.mxu0 0.0
    %1245 = vmatpush2.msra.mxu0 0.0
    %1246 = vmatprep.subr.mxu0 0.0
    %1247 = vmatpush2.msra.mxu0 0.0
    %1248 = vmatprep.subr.mxu0 0.0
    %1249 = vmatpush2.msra.mxu0 0.0
    %1250 = vmatprep.subr.mxu0 0.0
    %1251 = vmatpush2.msra.mxu0 0.0
    %1252 = vmatprep.subr.mxu0 0.0
    %1253 = vmatpush2.msra.mxu0 0.0
    %1254 = vmatprep.subr.mxu0 0.0
    %1255 = vmatpush2.msra.mxu0 0.0
    %1256 = vmatprep.subr.mxu0 0.0
    %1257 = vmatpush2.msra.mxu0 0.0
    %1258 = vmatprep.subr.mxu0 0.0
    %1259 = vmatpush2.msra.mxu0 0.0
    %1260 = vmatprep.subr.mxu0 0.0
    %1261 = vmatpush2.msra.mxu0 0.0
    %1262 = vmatprep.subr.mxu0 0.0
    %1263 = vmatpush2.msra.mxu0 0.0
    %1264 = vmatprep.subr.mxu0 0.0
    %1265 = vmatpush2.msra.mxu0 0.0
    %1266 = vmatprep.subr.mxu0 0.0
    %1267 = vmatpush2.msra.mxu0 0.0
    %1268 = vmatprep.subr.mxu0 0.0
    %1269 = vmatpush2.msra.mxu0 0.0
    %1270 = vmatprep.subr.mxu0 0.0
    %1271 = vmatpush2.msra.mxu0 0.0
    %1272 = vmatprep.mubr.f32.mxu0 0.0
    %1273 = vmatmul.mubr.f32.gmra.mxu0 %v846
    %v1274 = vpop.f32.mrf.mxu0
    %v1275 = vadd.f32 %v831, %v1274
    %v1276 = vpop.f32.mrf.mxu0
    %v1277 = vadd.f32 %v835, %v1276
    %1278 = vmatprep.mubr.f32.mxu0 0.0
    %1279 = vmatmul.mubr.f32.gmra.mxu0 %v849
    %v1280 = vpop.f32.mrf.mxu0
    %v1281 = vadd.f32 %v831, %v1280
    %v1282 = vpop.f32.mrf.mxu0
    %v1283 = vadd.f32 %v835, %v1282
    %1284 = vmatprep.mubr.f32.mxu0 0.0
    %1285 = vmatmul.mubr.f32.gmra.mxu0 %v852
    %v1286 = vpop.f32.mrf.mxu0
    %v1287 = vadd.f32 %v831, %v1286
    %v1288 = vpop.f32.mrf.mxu0
    %v1289 = vadd.f32 %v835, %v1288
    %1290 = vmatprep.mubr.f32.mxu0 0.0
    %1291 = vmatmul.mubr.f32.gmra.mxu0 %v855
    %v1292 = vpop.f32.mrf.mxu0
    %v1293 = vadd.f32 %v831, %v1292
    %v1294 = vpop.f32.mrf.mxu0
    %v1295 = vadd.f32 %v835, %v1294
    %1296 = vmatprep.mubr.f32.mxu0 0.0
    %1297 = vmatmul.mubr.f32.gmra.mxu0 %v858
    %v1298 = vpop.f32.mrf.mxu0
    %v1299 = vadd.f32 %v831, %v1298
    %v1300 = vpop.f32.mrf.mxu0
    %v1301 = vadd.f32 %v835, %v1300
    %1302 = vmatprep.mubr.f32.mxu0 0.0
    %1303 = vmatmul.mubr.f32.gmra.mxu0 %v861
    %v1304 = vpop.f32.mrf.mxu0
    %v1305 = vadd.f32 %v831, %v1304
    %v1306 = vpop.f32.mrf.mxu0
    %v1307 = vadd.f32 %v835, %v1306
    %1308 = vmatprep.mubr.f32.mxu0 0.0
    %1309 = vmatmul.mubr.f32.gmra.mxu0 %v864
    %v1310 = vpop.f32.mrf.mxu0
    %v1311 = vadd.f32 %v831, %v1310
    %v1312 = vpop.f32.mrf.mxu0
    %v1313 = vadd.f32 %v835, %v1312
    %1314 = vmatprep.mubr.f32.mxu0 0.0
    %1315 = vmatmul.mubr.f32.gmra.mxu0 %v867
    %v1316 = vpop.f32.mrf.mxu0
    %v1317 = vadd.f32 %v831, %v1316
    %v1318 = vpop.f32.mrf.mxu0
    %v1319 = vadd.f32 %v835, %v1318
    %1320 = vdwg.mxu0
    %v1321 = vmax.f32 %v936, 0.0
    %v1322 = vmax.f32 %v938, 0.0
    %v1323 = vmax.f32 %v1049, 0.0
    %v1324 = vmax.f32 %v1051, 0.0
    %v1325 = vmax.f32 %v1162, 0.0
    %v1326 = vmax.f32 %v1164, 0.0
    %v1327 = vmax.f32 %v1275, 0.0
    %v1328 = vmax.f32 %v1277, 0.0
    %v1329 = vmax.f32 %v942, 0.0
    %v1330 = vmax.f32 %v944, 0.0
    %v1331 = vmax.f32 %v1055, 0.0
    %v1332 = vmax.f32 %v1057, 0.0
    %v1333 = vmax.f32 %v1168, 0.0
    %v1334 = vmax.f32 %v1170, 0.0
    %v1335 = vmax.f32 %v1281, 0.0
    %v1336 = vmax.f32 %v1283, 0.0
    %v1337 = vmax.f32 %v948, 0.0
    %v1338 = vmax.f32 %v950, 0.0
    %v1339 = vmax.f32 %v1061, 0.0
    %v1340 = vmax.f32 %v1063, 0.0
    %v1341 = vmax.f32 %v1174, 0.0
    %v1342 = vmax.f32 %v1176, 0.0
    %v1343 = vmax.f32 %v1287, 0.0
    %v1344 = vmax.f32 %v1289, 0.0
    %v1345 = vmax.f32 %v954, 0.0
    %v1346 = vmax.f32 %v956, 0.0
    %v1347 = vmax.f32 %v1067, 0.0
    %v1348 = vmax.f32 %v1069, 0.0
    %v1349 = vmax.f32 %v1180, 0.0
    %v1350 = vmax.f32 %v1182, 0.0
    %v1351 = vmax.f32 %v1293, 0.0
    %v1352 = vmax.f32 %v1295, 0.0
    %v1353 = vmax.f32 %v960, 0.0
    %v1354 = vmax.f32 %v962, 0.0
    %v1355 = vmax.f32 %v1073, 0.0
    %v1356 = vmax.f32 %v1075, 0.0
    %v1357 = vmax.f32 %v1186, 0.0
    %v1358 = vmax.f32 %v1188, 0.0
    %v1359 = vmax.f32 %v1299, 0.0
    %v1360 = vmax.f32 %v1301, 0.0
    %v1361 = vmax.f32 %v966, 0.0
    %v1362 = vmax.f32 %v968, 0.0
    %v1363 = vmax.f32 %v1079, 0.0
    %v1364 = vmax.f32 %v1081, 0.0
    %v1365 = vmax.f32 %v1192, 0.0
    %v1366 = vmax.f32 %v1194, 0.0
    %v1367 = vmax.f32 %v1305, 0.0
    %v1368 = vmax.f32 %v1307, 0.0
    %v1369 = vmax.f32 %v972, 0.0
    %v1370 = vmax.f32 %v974, 0.0
    %v1371 = vmax.f32 %v1085, 0.0
    %v1372 = vmax.f32 %v1087, 0.0
    %v1373 = vmax.f32 %v1198, 0.0
    %v1374 = vmax.f32 %v1200, 0.0
    %v1375 = vmax.f32 %v1311, 0.0
    %v1376 = vmax.f32 %v1313, 0.0
    %v1377 = vmax.f32 %v978, 0.0
    %v1378 = vmax.f32 %v980, 0.0
    %v1379 = vmax.f32 %v1091, 0.0
    %v1380 = vmax.f32 %v1093, 0.0
    %v1381 = vmax.f32 %v1204, 0.0
    %v1382 = vmax.f32 %v1206, 0.0
    %v1383 = vmax.f32 %v1317, 0.0
    %v1384 = vmax.f32 %v1319, 0.0
    %v1385 = vld [vmem:[#allocation6] sm:$0xff]
    %v1386 = vld [vmem:[#allocation6 + $0x8] sm:$0xff]
    %v1387 = vld [vmem:[#allocation6 + $0x10] sm:$0xff]
    %v1388 = vld [vmem:[#allocation6 + $0x18] sm:$0xff]
    %v1389 = vld [vmem:[#allocation6 + $0x20] sm:$0xff]
    %v1390 = vld [vmem:[#allocation6 + $0x28] sm:$0xff]
    %v1391 = vld [vmem:[#allocation6 + $0x30] sm:$0xff]
    %v1392 = vld [vmem:[#allocation6 + $0x38] sm:$0xff]
    %v1393 = vld [vmem:[#allocation6 + $0x40] sm:$0xff]
    %v1394 = vld [vmem:[#allocation6 + $0x48] sm:$0xff]
    %v1395 = vld [vmem:[#allocation6 + $0x50] sm:$0xff]
    %v1396 = vld [vmem:[#allocation6 + $0x58] sm:$0xff]
    %v1397 = vld [vmem:[#allocation6 + $0x60] sm:$0xff]
    %v1398 = vld [vmem:[#allocation6 + $0x68] sm:$0xff]
    %v1399 = vld [vmem:[#allocation6 + $0x70] sm:$0xff]
    %v1400 = vld [vmem:[#allocation6 + $0x78] sm:$0xff]
    %v1401 = vld [vmem:[#allocation6 + $0x80] sm:$0xff]
    %v1402 = vld [vmem:[#allocation6 + $0x88] sm:$0xff]
    %v1403 = vld [vmem:[#allocation6 + $0x90] sm:$0xff]
    %v1404 = vld [vmem:[#allocation6 + $0x98] sm:$0xff]
    %v1405 = vld [vmem:[#allocation6 + $0xa0] sm:$0xff]
    %v1406 = vld [vmem:[#allocation6 + $0xa8] sm:$0xff]
    %v1407 = vld [vmem:[#allocation6 + $0xb0] sm:$0xff]
    %v1408 = vld [vmem:[#allocation6 + $0xb8] sm:$0xff]
    %v1409 = vld [vmem:[#allocation6 + $0xc0] sm:$0xff]
    %v1410 = vld [vmem:[#allocation6 + $0xc8] sm:$0xff]
    %v1411 = vld [vmem:[#allocation6 + $0xd0] sm:$0xff]
    %v1412 = vld [vmem:[#allocation6 + $0xd8] sm:$0xff]
    %v1413 = vld [vmem:[#allocation6 + $0xe0] sm:$0xff]
    %v1414 = vld [vmem:[#allocation6 + $0xe8] sm:$0xff]
    %v1415 = vld [vmem:[#allocation6 + $0xf0] sm:$0xff]
    %v1416 = vld [vmem:[#allocation6 + $0xf8] sm:$0xff]
    %v1417 = vld [vmem:[#allocation6 + $0x100] sm:$0xff]
    %v1418 = vld [vmem:[#allocation6 + $0x108] sm:$0xff]
    %v1419 = vld [vmem:[#allocation6 + $0x110] sm:$0xff]
    %v1420 = vld [vmem:[#allocation6 + $0x118] sm:$0xff]
    %v1421 = vld [vmem:[#allocation6 + $0x120] sm:$0xff]
    %v1422 = vld [vmem:[#allocation6 + $0x128] sm:$0xff]
    %v1423 = vld [vmem:[#allocation6 + $0x130] sm:$0xff]
    %v1424 = vld [vmem:[#allocation6 + $0x138] sm:$0xff]
    %v1425 = vld [vmem:[#allocation6 + $0x140] sm:$0xff]
    %v1426 = vld [vmem:[#allocation6 + $0x148] sm:$0xff]
    %v1427 = vld [vmem:[#allocation6 + $0x150] sm:$0xff]
    %v1428 = vld [vmem:[#allocation6 + $0x158] sm:$0xff]
    %v1429 = vld [vmem:[#allocation6 + $0x160] sm:$0xff]
    %v1430 = vld [vmem:[#allocation6 + $0x168] sm:$0xff]
    %v1431 = vld [vmem:[#allocation6 + $0x170] sm:$0xff]
    %v1432 = vld [vmem:[#allocation6 + $0x178] sm:$0xff]
    %v1433 = vld [vmem:[#allocation6 + $0x180] sm:$0xff]
    %v1434 = vld [vmem:[#allocation6 + $0x188] sm:$0xff]
    %v1435 = vld [vmem:[#allocation6 + $0x190] sm:$0xff]
    %v1436 = vld [vmem:[#allocation6 + $0x198] sm:$0xff]
    %v1437 = vld [vmem:[#allocation6 + $0x1a0] sm:$0xff]
    %v1438 = vld [vmem:[#allocation6 + $0x1a8] sm:$0xff]
    %v1439 = vld [vmem:[#allocation6 + $0x1b0] sm:$0xff]
    %v1440 = vld [vmem:[#allocation6 + $0x1b8] sm:$0xff]
    %v1441 = vld [vmem:[#allocation6 + $0x1c0] sm:$0xff]
    %v1442 = vld [vmem:[#allocation6 + $0x1c8] sm:$0xff]
    %v1443 = vld [vmem:[#allocation6 + $0x1d0] sm:$0xff]
    %v1444 = vld [vmem:[#allocation6 + $0x1d8] sm:$0xff]
    %v1445 = vld [vmem:[#allocation6 + $0x1e0] sm:$0xff]
    %v1446 = vld [vmem:[#allocation6 + $0x1e8] sm:$0xff]
    %v1447 = vld [vmem:[#allocation6 + $0x1f0] sm:$0xff]
    %v1448 = vld [vmem:[#allocation6 + $0x1f8] sm:$0xff]
    %v1449 = vld [vmem:[#allocation6 + $0x200] sm:$0xff]
    %v1450 = vld [vmem:[#allocation6 + $0x208] sm:$0xff]
    %v1451 = vld [vmem:[#allocation6 + $0x210] sm:$0xff]
    %v1452 = vld [vmem:[#allocation6 + $0x218] sm:$0xff]
    %v1453 = vld [vmem:[#allocation6 + $0x220] sm:$0xff]
    %v1454 = vld [vmem:[#allocation6 + $0x228] sm:$0xff]
    %v1455 = vld [vmem:[#allocation6 + $0x230] sm:$0xff]
    %v1456 = vld [vmem:[#allocation6 + $0x238] sm:$0xff]
    %v1457 = vld [vmem:[#allocation6 + $0x240] sm:$0xff]
    %v1458 = vld [vmem:[#allocation6 + $0x248] sm:$0xff]
    %v1459 = vld [vmem:[#allocation6 + $0x250] sm:$0xff]
    %v1460 = vld [vmem:[#allocation6 + $0x258] sm:$0xff]
    %v1461 = vld [vmem:[#allocation6 + $0x260] sm:$0xff]
    %v1462 = vld [vmem:[#allocation6 + $0x268] sm:$0xff]
    %v1463 = vld [vmem:[#allocation6 + $0x270] sm:$0xff]
    %v1464 = vld [vmem:[#allocation6 + $0x278] sm:$0xff]
    %v1465 = vld [vmem:[#allocation6 + $0x280] sm:$0xff]
    %v1466 = vld [vmem:[#allocation6 + $0x288] sm:$0xff]
    %v1467 = vld [vmem:[#allocation6 + $0x290] sm:$0xff]
    %v1468 = vld [vmem:[#allocation6 + $0x298] sm:$0xff]
    %v1469 = vld [vmem:[#allocation6 + $0x2a0] sm:$0xff]
    %v1470 = vld [vmem:[#allocation6 + $0x2a8] sm:$0xff]
    %v1471 = vld [vmem:[#allocation6 + $0x2b0] sm:$0xff]
    %v1472 = vld [vmem:[#allocation6 + $0x2b8] sm:$0xff]
    %v1473 = vld [vmem:[#allocation6 + $0x2c0] sm:$0xff]
    %v1474 = vld [vmem:[#allocation6 + $0x2c8] sm:$0xff]
    %v1475 = vld [vmem:[#allocation6 + $0x2d0] sm:$0xff]
    %v1476 = vld [vmem:[#allocation6 + $0x2d8] sm:$0xff]
    %v1477 = vld [vmem:[#allocation6 + $0x2e0] sm:$0xff]
    %v1478 = vld [vmem:[#allocation6 + $0x2e8] sm:$0xff]
    %v1479 = vld [vmem:[#allocation6 + $0x2f0] sm:$0xff]
    %v1480 = vld [vmem:[#allocation6 + $0x2f8] sm:$0xff]
    %v1481 = vld [vmem:[#allocation6 + $0x300] sm:$0xff]
    %v1482 = vld [vmem:[#allocation6 + $0x308] sm:$0xff]
    %v1483 = vld [vmem:[#allocation6 + $0x310] sm:$0xff]
    %v1484 = vld [vmem:[#allocation6 + $0x318] sm:$0xff]
    %v1485 = vld [vmem:[#allocation6 + $0x320] sm:$0xff]
    %v1486 = vld [vmem:[#allocation6 + $0x328] sm:$0xff]
    %v1487 = vld [vmem:[#allocation6 + $0x330] sm:$0xff]
    %v1488 = vld [vmem:[#allocation6 + $0x338] sm:$0xff]
    %v1489 = vld [vmem:[#allocation6 + $0x340] sm:$0xff]
    %v1490 = vld [vmem:[#allocation6 + $0x348] sm:$0xff]
    %v1491 = vld [vmem:[#allocation6 + $0x350] sm:$0xff]
    %v1492 = vld [vmem:[#allocation6 + $0x358] sm:$0xff]
    %v1493 = vld [vmem:[#allocation6 + $0x360] sm:$0xff]
    %v1494 = vld [vmem:[#allocation6 + $0x368] sm:$0xff]
    %v1495 = vld [vmem:[#allocation6 + $0x370] sm:$0xff]
    %v1496 = vld [vmem:[#allocation6 + $0x378] sm:$0xff]
    %v1497 = vld [vmem:[#allocation6 + $0x380] sm:$0xff]
    %v1498 = vld [vmem:[#allocation6 + $0x388] sm:$0xff]
    %v1499 = vld [vmem:[#allocation6 + $0x390] sm:$0xff]
    %v1500 = vld [vmem:[#allocation6 + $0x398] sm:$0xff]
    %v1501 = vld [vmem:[#allocation6 + $0x3a0] sm:$0xff]
    %v1502 = vld [vmem:[#allocation6 + $0x3a8] sm:$0xff]
    %v1503 = vld [vmem:[#allocation6 + $0x3b0] sm:$0xff]
    %v1504 = vld [vmem:[#allocation6 + $0x3b8] sm:$0xff]
    %v1505 = vld [vmem:[#allocation6 + $0x3c0] sm:$0xff]
    %v1506 = vld [vmem:[#allocation6 + $0x3c8] sm:$0xff]
    %v1507 = vld [vmem:[#allocation6 + $0x3d0] sm:$0xff]
    %v1508 = vld [vmem:[#allocation6 + $0x3d8] sm:$0xff]
    %v1509 = vld [vmem:[#allocation6 + $0x3e0] sm:$0xff]
    %v1510 = vld [vmem:[#allocation6 + $0x3e8] sm:$0xff]
    %v1511 = vld [vmem:[#allocation6 + $0x3f0] sm:$0xff]
    %v1512 = vld [vmem:[#allocation6 + $0x3f8] sm:$0xff]
    %v1513 = vld [vmem:[#allocation6 + $0x400] sm:$0xff]
    %v1514 = vld [vmem:[#allocation6 + $0x408] sm:$0xff]
    %v1515 = vld [vmem:[#allocation6 + $0x410] sm:$0xff]
    %v1516 = vld [vmem:[#allocation6 + $0x418] sm:$0xff]
    %v1517 = vld [vmem:[#allocation6 + $0x420] sm:$0xff]
    %v1518 = vld [vmem:[#allocation6 + $0x428] sm:$0xff]
    %v1519 = vld [vmem:[#allocation6 + $0x430] sm:$0xff]
    %v1520 = vld [vmem:[#allocation6 + $0x438] sm:$0xff]
    %v1521 = vld [vmem:[#allocation6 + $0x440] sm:$0xff]
    %v1522 = vld [vmem:[#allocation6 + $0x448] sm:$0xff]
    %v1523 = vld [vmem:[#allocation6 + $0x450] sm:$0xff]
    %v1524 = vld [vmem:[#allocation6 + $0x458] sm:$0xff]
    %v1525 = vld [vmem:[#allocation6 + $0x460] sm:$0xff]
    %v1526 = vld [vmem:[#allocation6 + $0x468] sm:$0xff]
    %v1527 = vld [vmem:[#allocation6 + $0x470] sm:$0xff]
    %v1528 = vld [vmem:[#allocation6 + $0x478] sm:$0xff]
    %v1529 = vld [vmem:[#allocation6 + $0x480] sm:$0xff]
    %v1530 = vld [vmem:[#allocation6 + $0x488] sm:$0xff]
    %v1531 = vld [vmem:[#allocation6 + $0x490] sm:$0xff]
    %v1532 = vld [vmem:[#allocation6 + $0x498] sm:$0xff]
    %v1533 = vld [vmem:[#allocation6 + $0x4a0] sm:$0xff]
    %v1534 = vld [vmem:[#allocation6 + $0x4a8] sm:$0xff]
    %v1535 = vld [vmem:[#allocation6 + $0x4b0] sm:$0xff]
    %v1536 = vld [vmem:[#allocation6 + $0x4b8] sm:$0xff]
    %v1537 = vld [vmem:[#allocation6 + $0x4c0] sm:$0xff]
    %v1538 = vld [vmem:[#allocation6 + $0x4c8] sm:$0xff]
    %v1539 = vld [vmem:[#allocation6 + $0x4d0] sm:$0xff]
    %v1540 = vld [vmem:[#allocation6 + $0x4d8] sm:$0xff]
    %v1541 = vld [vmem:[#allocation6 + $0x4e0] sm:$0xff]
    %v1542 = vld [vmem:[#allocation6 + $0x4e8] sm:$0xff]
    %v1543 = vld [vmem:[#allocation6 + $0x4f0] sm:$0xff]
    %v1544 = vld [vmem:[#allocation6 + $0x4f8] sm:$0xff]
    %v1545 = vld [vmem:[#allocation6 + $0x500] sm:$0xff]
    %v1546 = vld [vmem:[#allocation6 + $0x508] sm:$0xff]
    %v1547 = vld [vmem:[#allocation6 + $0x510] sm:$0xff]
    %v1548 = vld [vmem:[#allocation6 + $0x518] sm:$0xff]
    %v1549 = vld [vmem:[#allocation6 + $0x520] sm:$0xff]
    %v1550 = vld [vmem:[#allocation6 + $0x528] sm:$0xff]
    %v1551 = vld [vmem:[#allocation6 + $0x530] sm:$0xff]
    %v1552 = vld [vmem:[#allocation6 + $0x538] sm:$0xff]
    %v1553 = vld [vmem:[#allocation6 + $0x540] sm:$0xff]
    %v1554 = vld [vmem:[#allocation6 + $0x548] sm:$0xff]
    %v1555 = vld [vmem:[#allocation6 + $0x550] sm:$0xff]
    %v1556 = vld [vmem:[#allocation6 + $0x558] sm:$0xff]
    %v1557 = vld [vmem:[#allocation6 + $0x560] sm:$0xff]
    %v1558 = vld [vmem:[#allocation6 + $0x568] sm:$0xff]
    %v1559 = vld [vmem:[#allocation6 + $0x570] sm:$0xff]
    %v1560 = vld [vmem:[#allocation6 + $0x578] sm:$0xff]
    %v1561 = vld [vmem:[#allocation6 + $0x580] sm:$0xff]
    %v1562 = vld [vmem:[#allocation6 + $0x588] sm:$0xff]
    %v1563 = vld [vmem:[#allocation6 + $0x590] sm:$0xff]
    %v1564 = vld [vmem:[#allocation6 + $0x598] sm:$0xff]
    %v1565 = vld [vmem:[#allocation6 + $0x5a0] sm:$0xff]
    %v1566 = vld [vmem:[#allocation6 + $0x5a8] sm:$0xff]
    %v1567 = vld [vmem:[#allocation6 + $0x5b0] sm:$0xff]
    %v1568 = vld [vmem:[#allocation6 + $0x5b8] sm:$0xff]
    %v1569 = vld [vmem:[#allocation6 + $0x5c0] sm:$0xff]
    %v1570 = vld [vmem:[#allocation6 + $0x5c8] sm:$0xff]
    %v1571 = vld [vmem:[#allocation6 + $0x5d0] sm:$0xff]
    %v1572 = vld [vmem:[#allocation6 + $0x5d8] sm:$0xff]
    %v1573 = vld [vmem:[#allocation6 + $0x5e0] sm:$0xff]
    %v1574 = vld [vmem:[#allocation6 + $0x5e8] sm:$0xff]
    %v1575 = vld [vmem:[#allocation6 + $0x5f0] sm:$0xff]
    %v1576 = vld [vmem:[#allocation6 + $0x5f8] sm:$0xff]
    %v1577 = vld [vmem:[#allocation6 + $0x600] sm:$0xff]
    %v1578 = vld [vmem:[#allocation6 + $0x608] sm:$0xff]
    %v1579 = vld [vmem:[#allocation6 + $0x610] sm:$0xff]
    %v1580 = vld [vmem:[#allocation6 + $0x618] sm:$0xff]
    %v1581 = vld [vmem:[#allocation6 + $0x620] sm:$0xff]
    %v1582 = vld [vmem:[#allocation6 + $0x628] sm:$0xff]
    %v1583 = vld [vmem:[#allocation6 + $0x630] sm:$0xff]
    %v1584 = vld [vmem:[#allocation6 + $0x638] sm:$0xff]
    %v1585 = vld [vmem:[#allocation6 + $0x640] sm:$0xff]
    %v1586 = vld [vmem:[#allocation6 + $0x648] sm:$0xff]
    %v1587 = vld [vmem:[#allocation6 + $0x650] sm:$0xff]
    %v1588 = vld [vmem:[#allocation6 + $0x658] sm:$0xff]
    %v1589 = vld [vmem:[#allocation6 + $0x660] sm:$0xff]
    %v1590 = vld [vmem:[#allocation6 + $0x668] sm:$0xff]
    %v1591 = vld [vmem:[#allocation6 + $0x670] sm:$0xff]
    %v1592 = vld [vmem:[#allocation6 + $0x678] sm:$0xff]
    %v1593 = vld [vmem:[#allocation6 + $0x680] sm:$0xff]
    %v1594 = vld [vmem:[#allocation6 + $0x688] sm:$0xff]
    %v1595 = vld [vmem:[#allocation6 + $0x690] sm:$0xff]
    %v1596 = vld [vmem:[#allocation6 + $0x698] sm:$0xff]
    %v1597 = vld [vmem:[#allocation6 + $0x6a0] sm:$0xff]
    %v1598 = vld [vmem:[#allocation6 + $0x6a8] sm:$0xff]
    %v1599 = vld [vmem:[#allocation6 + $0x6b0] sm:$0xff]
    %v1600 = vld [vmem:[#allocation6 + $0x6b8] sm:$0xff]
    %v1601 = vld [vmem:[#allocation6 + $0x6c0] sm:$0xff]
    %v1602 = vld [vmem:[#allocation6 + $0x6c8] sm:$0xff]
    %v1603 = vld [vmem:[#allocation6 + $0x6d0] sm:$0xff]
    %v1604 = vld [vmem:[#allocation6 + $0x6d8] sm:$0xff]
    %v1605 = vld [vmem:[#allocation6 + $0x6e0] sm:$0xff]
    %v1606 = vld [vmem:[#allocation6 + $0x6e8] sm:$0xff]
    %v1607 = vld [vmem:[#allocation6 + $0x6f0] sm:$0xff]
    %v1608 = vld [vmem:[#allocation6 + $0x6f8] sm:$0xff]
    %v1609 = vld [vmem:[#allocation6 + $0x700] sm:$0xff]
    %v1610 = vld [vmem:[#allocation6 + $0x708] sm:$0xff]
    %v1611 = vld [vmem:[#allocation6 + $0x710] sm:$0xff]
    %v1612 = vld [vmem:[#allocation6 + $0x718] sm:$0xff]
    %v1613 = vld [vmem:[#allocation6 + $0x720] sm:$0xff]
    %v1614 = vld [vmem:[#allocation6 + $0x728] sm:$0xff]
    %v1615 = vld [vmem:[#allocation6 + $0x730] sm:$0xff]
    %v1616 = vld [vmem:[#allocation6 + $0x738] sm:$0xff]
    %v1617 = vld [vmem:[#allocation6 + $0x740] sm:$0xff]
    %v1618 = vld [vmem:[#allocation6 + $0x748] sm:$0xff]
    %v1619 = vld [vmem:[#allocation6 + $0x750] sm:$0xff]
    %v1620 = vld [vmem:[#allocation6 + $0x758] sm:$0xff]
    %v1621 = vld [vmem:[#allocation6 + $0x760] sm:$0xff]
    %v1622 = vld [vmem:[#allocation6 + $0x768] sm:$0xff]
    %v1623 = vld [vmem:[#allocation6 + $0x770] sm:$0xff]
    %v1624 = vld [vmem:[#allocation6 + $0x778] sm:$0xff]
    %v1625 = vld [vmem:[#allocation6 + $0x780] sm:$0xff]
    %v1626 = vld [vmem:[#allocation6 + $0x788] sm:$0xff]
    %v1627 = vld [vmem:[#allocation6 + $0x790] sm:$0xff]
    %v1628 = vld [vmem:[#allocation6 + $0x798] sm:$0xff]
    %v1629 = vld [vmem:[#allocation6 + $0x7a0] sm:$0xff]
    %v1630 = vld [vmem:[#allocation6 + $0x7a8] sm:$0xff]
    %v1631 = vld [vmem:[#allocation6 + $0x7b0] sm:$0xff]
    %v1632 = vld [vmem:[#allocation6 + $0x7b8] sm:$0xff]
    %v1633 = vld [vmem:[#allocation6 + $0x7c0] sm:$0xff]
    %v1634 = vld [vmem:[#allocation6 + $0x7c8] sm:$0xff]
    %v1635 = vld [vmem:[#allocation6 + $0x7d0] sm:$0xff]
    %v1636 = vld [vmem:[#allocation6 + $0x7d8] sm:$0xff]
    %v1637 = vld [vmem:[#allocation6 + $0x7e0] sm:$0xff]
    %v1638 = vld [vmem:[#allocation6 + $0x7e8] sm:$0xff]
    %v1639 = vld [vmem:[#allocation6 + $0x7f0] sm:$0xff]
    %v1640 = vld [vmem:[#allocation6 + $0x7f8] sm:$0xff]
    %v1641 = vld [vmem:[#allocation6 + $0x800] sm:$0xff]
    %v1642 = vld [vmem:[#allocation6 + $0x808] sm:$0xff]
    %v1643 = vld [vmem:[#allocation6 + $0x810] sm:$0xff]
    %v1644 = vld [vmem:[#allocation6 + $0x818] sm:$0xff]
    %v1645 = vld [vmem:[#allocation6 + $0x820] sm:$0xff]
    %v1646 = vld [vmem:[#allocation6 + $0x828] sm:$0xff]
    %v1647 = vld [vmem:[#allocation6 + $0x830] sm:$0xff]
    %v1648 = vld [vmem:[#allocation6 + $0x838] sm:$0xff]
    %v1649 = vld [vmem:[#allocation6 + $0x840] sm:$0xff]
    %v1650 = vld [vmem:[#allocation6 + $0x848] sm:$0xff]
    %v1651 = vld [vmem:[#allocation6 + $0x850] sm:$0xff]
    %v1652 = vld [vmem:[#allocation6 + $0x858] sm:$0xff]
    %v1653 = vld [vmem:[#allocation6 + $0x860] sm:$0xff]
    %v1654 = vld [vmem:[#allocation6 + $0x868] sm:$0xff]
    %v1655 = vld [vmem:[#allocation6 + $0x870] sm:$0xff]
    %v1656 = vld [vmem:[#allocation6 + $0x878] sm:$0xff]
    %v1657 = vld [vmem:[#allocation6 + $0x880] sm:$0xff]
    %v1658 = vld [vmem:[#allocation6 + $0x888] sm:$0xff]
    %v1659 = vld [vmem:[#allocation6 + $0x890] sm:$0xff]
    %v1660 = vld [vmem:[#allocation6 + $0x898] sm:$0xff]
    %v1661 = vld [vmem:[#allocation6 + $0x8a0] sm:$0xff]
    %v1662 = vld [vmem:[#allocation6 + $0x8a8] sm:$0xff]
    %v1663 = vld [vmem:[#allocation6 + $0x8b0] sm:$0xff]
    %v1664 = vld [vmem:[#allocation6 + $0x8b8] sm:$0xff]
    %v1665 = vld [vmem:[#allocation6 + $0x8c0] sm:$0xff]
    %v1666 = vld [vmem:[#allocation6 + $0x8c8] sm:$0xff]
    %v1667 = vld [vmem:[#allocation6 + $0x8d0] sm:$0xff]
    %v1668 = vld [vmem:[#allocation6 + $0x8d8] sm:$0xff]
    %v1669 = vld [vmem:[#allocation6 + $0x8e0] sm:$0xff]
    %v1670 = vld [vmem:[#allocation6 + $0x8e8] sm:$0xff]
    %v1671 = vld [vmem:[#allocation6 + $0x8f0] sm:$0xff]
    %v1672 = vld [vmem:[#allocation6 + $0x8f8] sm:$0xff]
    %v1673 = vld [vmem:[#allocation6 + $0x900] sm:$0xff]
    %v1674 = vld [vmem:[#allocation6 + $0x908] sm:$0xff]
    %v1675 = vld [vmem:[#allocation6 + $0x910] sm:$0xff]
    %v1676 = vld [vmem:[#allocation6 + $0x918] sm:$0xff]
    %v1677 = vld [vmem:[#allocation6 + $0x920] sm:$0xff]
    %v1678 = vld [vmem:[#allocation6 + $0x928] sm:$0xff]
    %v1679 = vld [vmem:[#allocation6 + $0x930] sm:$0xff]
    %v1680 = vld [vmem:[#allocation6 + $0x938] sm:$0xff]
    %v1681 = vld [vmem:[#allocation6 + $0x940] sm:$0xff]
    %v1682 = vld [vmem:[#allocation6 + $0x948] sm:$0xff]
    %v1683 = vld [vmem:[#allocation6 + $0x950] sm:$0xff]
    %v1684 = vld [vmem:[#allocation6 + $0x958] sm:$0xff]
    %v1685 = vld [vmem:[#allocation6 + $0x960] sm:$0xff]
    %v1686 = vld [vmem:[#allocation6 + $0x968] sm:$0xff]
    %v1687 = vld [vmem:[#allocation6 + $0x970] sm:$0xff]
    %v1688 = vld [vmem:[#allocation6 + $0x978] sm:$0xff]
    %v1689 = vld [vmem:[#allocation6 + $0x980] sm:$0xff]
    %v1690 = vld [vmem:[#allocation6 + $0x988] sm:$0xff]
    %v1691 = vld [vmem:[#allocation6 + $0x990] sm:$0xff]
    %v1692 = vld [vmem:[#allocation6 + $0x998] sm:$0xff]
    %v1693 = vld [vmem:[#allocation6 + $0x9a0] sm:$0xff]
    %v1694 = vld [vmem:[#allocation6 + $0x9a8] sm:$0xff]
    %v1695 = vld [vmem:[#allocation6 + $0x9b0] sm:$0xff]
    %v1696 = vld [vmem:[#allocation6 + $0x9b8] sm:$0xff]
    %v1697 = vld [vmem:[#allocation6 + $0x9c0] sm:$0xff]
    %v1698 = vld [vmem:[#allocation6 + $0x9c8] sm:$0xff]
    %v1699 = vld [vmem:[#allocation6 + $0x9d0] sm:$0xff]
    %v1700 = vld [vmem:[#allocation6 + $0x9d8] sm:$0xff]
    %v1701 = vld [vmem:[#allocation6 + $0x9e0] sm:$0xff]
    %v1702 = vld [vmem:[#allocation6 + $0x9e8] sm:$0xff]
    %v1703 = vld [vmem:[#allocation6 + $0x9f0] sm:$0xff]
    %v1704 = vld [vmem:[#allocation6 + $0x9f8] sm:$0xff]
    %v1705 = vld [vmem:[#allocation6 + $0xa00] sm:$0xff]
    %v1706 = vld [vmem:[#allocation6 + $0xa08] sm:$0xff]
    %v1707 = vld [vmem:[#allocation6 + $0xa10] sm:$0xff]
    %v1708 = vld [vmem:[#allocation6 + $0xa18] sm:$0xff]
    %v1709 = vld [vmem:[#allocation6 + $0xa20] sm:$0xff]
    %v1710 = vld [vmem:[#allocation6 + $0xa28] sm:$0xff]
    %v1711 = vld [vmem:[#allocation6 + $0xa30] sm:$0xff]
    %v1712 = vld [vmem:[#allocation6 + $0xa38] sm:$0xff]
    %v1713 = vld [vmem:[#allocation6 + $0xa40] sm:$0xff]
    %v1714 = vld [vmem:[#allocation6 + $0xa48] sm:$0xff]
    %v1715 = vld [vmem:[#allocation6 + $0xa50] sm:$0xff]
    %v1716 = vld [vmem:[#allocation6 + $0xa58] sm:$0xff]
    %v1717 = vld [vmem:[#allocation6 + $0xa60] sm:$0xff]
    %v1718 = vld [vmem:[#allocation6 + $0xa68] sm:$0xff]
    %v1719 = vld [vmem:[#allocation6 + $0xa70] sm:$0xff]
    %v1720 = vld [vmem:[#allocation6 + $0xa78] sm:$0xff]
    %v1721 = vld [vmem:[#allocation6 + $0xa80] sm:$0xff]
    %v1722 = vld [vmem:[#allocation6 + $0xa88] sm:$0xff]
    %v1723 = vld [vmem:[#allocation6 + $0xa90] sm:$0xff]
    %v1724 = vld [vmem:[#allocation6 + $0xa98] sm:$0xff]
    %v1725 = vld [vmem:[#allocation6 + $0xaa0] sm:$0xff]
    %v1726 = vld [vmem:[#allocation6 + $0xaa8] sm:$0xff]
    %v1727 = vld [vmem:[#allocation6 + $0xab0] sm:$0xff]
    %v1728 = vld [vmem:[#allocation6 + $0xab8] sm:$0xff]
    %v1729 = vld [vmem:[#allocation6 + $0xac0] sm:$0xff]
    %v1730 = vld [vmem:[#allocation6 + $0xac8] sm:$0xff]
    %v1731 = vld [vmem:[#allocation6 + $0xad0] sm:$0xff]
    %v1732 = vld [vmem:[#allocation6 + $0xad8] sm:$0xff]
    %v1733 = vld [vmem:[#allocation6 + $0xae0] sm:$0xff]
    %v1734 = vld [vmem:[#allocation6 + $0xae8] sm:$0xff]
    %v1735 = vld [vmem:[#allocation6 + $0xaf0] sm:$0xff]
    %v1736 = vld [vmem:[#allocation6 + $0xaf8] sm:$0xff]
    %v1737 = vld [vmem:[#allocation6 + $0xb00] sm:$0xff]
    %v1738 = vld [vmem:[#allocation6 + $0xb08] sm:$0xff]
    %v1739 = vld [vmem:[#allocation6 + $0xb10] sm:$0xff]
    %v1740 = vld [vmem:[#allocation6 + $0xb18] sm:$0xff]
    %v1741 = vld [vmem:[#allocation6 + $0xb20] sm:$0xff]
    %v1742 = vld [vmem:[#allocation6 + $0xb28] sm:$0xff]
    %v1743 = vld [vmem:[#allocation6 + $0xb30] sm:$0xff]
    %v1744 = vld [vmem:[#allocation6 + $0xb38] sm:$0xff]
    %v1745 = vld [vmem:[#allocation6 + $0xb40] sm:$0xff]
    %v1746 = vld [vmem:[#allocation6 + $0xb48] sm:$0xff]
    %v1747 = vld [vmem:[#allocation6 + $0xb50] sm:$0xff]
    %v1748 = vld [vmem:[#allocation6 + $0xb58] sm:$0xff]
    %v1749 = vld [vmem:[#allocation6 + $0xb60] sm:$0xff]
    %v1750 = vld [vmem:[#allocation6 + $0xb68] sm:$0xff]
    %v1751 = vld [vmem:[#allocation6 + $0xb70] sm:$0xff]
    %v1752 = vld [vmem:[#allocation6 + $0xb78] sm:$0xff]
    %v1753 = vld [vmem:[#allocation6 + $0xb80] sm:$0xff]
    %v1754 = vld [vmem:[#allocation6 + $0xb88] sm:$0xff]
    %v1755 = vld [vmem:[#allocation6 + $0xb90] sm:$0xff]
    %v1756 = vld [vmem:[#allocation6 + $0xb98] sm:$0xff]
    %v1757 = vld [vmem:[#allocation6 + $0xba0] sm:$0xff]
    %v1758 = vld [vmem:[#allocation6 + $0xba8] sm:$0xff]
    %v1759 = vld [vmem:[#allocation6 + $0xbb0] sm:$0xff]
    %v1760 = vld [vmem:[#allocation6 + $0xbb8] sm:$0xff]
    %v1761 = vld [vmem:[#allocation6 + $0xbc0] sm:$0xff]
    %v1762 = vld [vmem:[#allocation6 + $0xbc8] sm:$0xff]
    %v1763 = vld [vmem:[#allocation6 + $0xbd0] sm:$0xff]
    %v1764 = vld [vmem:[#allocation6 + $0xbd8] sm:$0xff]
    %v1765 = vld [vmem:[#allocation6 + $0xbe0] sm:$0xff]
    %v1766 = vld [vmem:[#allocation6 + $0xbe8] sm:$0xff]
    %v1767 = vld [vmem:[#allocation6 + $0xbf0] sm:$0xff]
    %v1768 = vld [vmem:[#allocation6 + $0xbf8] sm:$0xff]
    %v1769 = vld [vmem:[#allocation6 + $0xc00] sm:$0xff]
    %v1770 = vld [vmem:[#allocation6 + $0xc08] sm:$0xff]
    %v1771 = vld [vmem:[#allocation6 + $0xc10] sm:$0xff]
    %v1772 = vld [vmem:[#allocation6 + $0xc18] sm:$0xff]
    %v1773 = vld [vmem:[#allocation6 + $0xc20] sm:$0xff]
    %v1774 = vld [vmem:[#allocation6 + $0xc28] sm:$0xff]
    %v1775 = vld [vmem:[#allocation6 + $0xc30] sm:$0xff]
    %v1776 = vld [vmem:[#allocation6 + $0xc38] sm:$0xff]
    %v1777 = vld [vmem:[#allocation6 + $0xc40] sm:$0xff]
    %v1778 = vld [vmem:[#allocation6 + $0xc48] sm:$0xff]
    %v1779 = vld [vmem:[#allocation6 + $0xc50] sm:$0xff]
    %v1780 = vld [vmem:[#allocation6 + $0xc58] sm:$0xff]
    %v1781 = vld [vmem:[#allocation6 + $0xc60] sm:$0xff]
    %v1782 = vld [vmem:[#allocation6 + $0xc68] sm:$0xff]
    %v1783 = vld [vmem:[#allocation6 + $0xc70] sm:$0xff]
    %v1784 = vld [vmem:[#allocation6 + $0xc78] sm:$0xff]
    %v1785 = vld [vmem:[#allocation6 + $0xc80] sm:$0xff]
    %v1786 = vld [vmem:[#allocation6 + $0xc88] sm:$0xff]
    %v1787 = vld [vmem:[#allocation6 + $0xc90] sm:$0xff]
    %v1788 = vld [vmem:[#allocation6 + $0xc98] sm:$0xff]
    %v1789 = vld [vmem:[#allocation6 + $0xca0] sm:$0xff]
    %v1790 = vld [vmem:[#allocation6 + $0xca8] sm:$0xff]
    %v1791 = vld [vmem:[#allocation6 + $0xcb0] sm:$0xff]
    %v1792 = vld [vmem:[#allocation6 + $0xcb8] sm:$0xff]
    %v1793 = vld [vmem:[#allocation6 + $0xcc0] sm:$0xff]
    %v1794 = vld [vmem:[#allocation6 + $0xcc8] sm:$0xff]
    %v1795 = vld [vmem:[#allocation6 + $0xcd0] sm:$0xff]
    %v1796 = vld [vmem:[#allocation6 + $0xcd8] sm:$0xff]
    %v1797 = vld [vmem:[#allocation6 + $0xce0] sm:$0xff]
    %v1798 = vld [vmem:[#allocation6 + $0xce8] sm:$0xff]
    %v1799 = vld [vmem:[#allocation6 + $0xcf0] sm:$0xff]
    %v1800 = vld [vmem:[#allocation6 + $0xcf8] sm:$0xff]
    %v1801 = vld [vmem:[#allocation6 + $0xd00] sm:$0xff]
    %v1802 = vld [vmem:[#allocation6 + $0xd08] sm:$0xff]
    %v1803 = vld [vmem:[#allocation6 + $0xd10] sm:$0xff]
    %v1804 = vld [vmem:[#allocation6 + $0xd18] sm:$0xff]
    %v1805 = vld [vmem:[#allocation6 + $0xd20] sm:$0xff]
    %v1806 = vld [vmem:[#allocation6 + $0xd28] sm:$0xff]
    %v1807 = vld [vmem:[#allocation6 + $0xd30] sm:$0xff]
    %v1808 = vld [vmem:[#allocation6 + $0xd38] sm:$0xff]
    %v1809 = vld [vmem:[#allocation6 + $0xd40] sm:$0xff]
    %v1810 = vld [vmem:[#allocation6 + $0xd48] sm:$0xff]
    %v1811 = vld [vmem:[#allocation6 + $0xd50] sm:$0xff]
    %v1812 = vld [vmem:[#allocation6 + $0xd58] sm:$0xff]
    %v1813 = vld [vmem:[#allocation6 + $0xd60] sm:$0xff]
    %v1814 = vld [vmem:[#allocation6 + $0xd68] sm:$0xff]
    %v1815 = vld [vmem:[#allocation6 + $0xd70] sm:$0xff]
    %v1816 = vld [vmem:[#allocation6 + $0xd78] sm:$0xff]
    %v1817 = vld [vmem:[#allocation6 + $0xd80] sm:$0xff]
    %v1818 = vld [vmem:[#allocation6 + $0xd88] sm:$0xff]
    %v1819 = vld [vmem:[#allocation6 + $0xd90] sm:$0xff]
    %v1820 = vld [vmem:[#allocation6 + $0xd98] sm:$0xff]
    %v1821 = vld [vmem:[#allocation6 + $0xda0] sm:$0xff]
    %v1822 = vld [vmem:[#allocation6 + $0xda8] sm:$0xff]
    %v1823 = vld [vmem:[#allocation6 + $0xdb0] sm:$0xff]
    %v1824 = vld [vmem:[#allocation6 + $0xdb8] sm:$0xff]
    %v1825 = vld [vmem:[#allocation6 + $0xdc0] sm:$0xff]
    %v1826 = vld [vmem:[#allocation6 + $0xdc8] sm:$0xff]
    %v1827 = vld [vmem:[#allocation6 + $0xdd0] sm:$0xff]
    %v1828 = vld [vmem:[#allocation6 + $0xdd8] sm:$0xff]
    %v1829 = vld [vmem:[#allocation6 + $0xde0] sm:$0xff]
    %v1830 = vld [vmem:[#allocation6 + $0xde8] sm:$0xff]
    %v1831 = vld [vmem:[#allocation6 + $0xdf0] sm:$0xff]
    %v1832 = vld [vmem:[#allocation6 + $0xdf8] sm:$0xff]
    %v1833 = vld [vmem:[#allocation6 + $0xe00] sm:$0xff]
    %v1834 = vld [vmem:[#allocation6 + $0xe08] sm:$0xff]
    %v1835 = vld [vmem:[#allocation6 + $0xe10] sm:$0xff]
    %v1836 = vld [vmem:[#allocation6 + $0xe18] sm:$0xff]
    %v1837 = vld [vmem:[#allocation6 + $0xe20] sm:$0xff]
    %v1838 = vld [vmem:[#allocation6 + $0xe28] sm:$0xff]
    %v1839 = vld [vmem:[#allocation6 + $0xe30] sm:$0xff]
    %v1840 = vld [vmem:[#allocation6 + $0xe38] sm:$0xff]
    %v1841 = vld [vmem:[#allocation6 + $0xe40] sm:$0xff]
    %v1842 = vld [vmem:[#allocation6 + $0xe48] sm:$0xff]
    %v1843 = vld [vmem:[#allocation6 + $0xe50] sm:$0xff]
    %v1844 = vld [vmem:[#allocation6 + $0xe58] sm:$0xff]
    %v1845 = vld [vmem:[#allocation6 + $0xe60] sm:$0xff]
    %v1846 = vld [vmem:[#allocation6 + $0xe68] sm:$0xff]
    %v1847 = vld [vmem:[#allocation6 + $0xe70] sm:$0xff]
    %v1848 = vld [vmem:[#allocation6 + $0xe78] sm:$0xff]
    %v1849 = vld [vmem:[#allocation6 + $0xe80] sm:$0xff]
    %v1850 = vld [vmem:[#allocation6 + $0xe88] sm:$0xff]
    %v1851 = vld [vmem:[#allocation6 + $0xe90] sm:$0xff]
    %v1852 = vld [vmem:[#allocation6 + $0xe98] sm:$0xff]
    %v1853 = vld [vmem:[#allocation6 + $0xea0] sm:$0xff]
    %v1854 = vld [vmem:[#allocation6 + $0xea8] sm:$0xff]
    %v1855 = vld [vmem:[#allocation6 + $0xeb0] sm:$0xff]
    %v1856 = vld [vmem:[#allocation6 + $0xeb8] sm:$0xff]
    %v1857 = vld [vmem:[#allocation6 + $0xec0] sm:$0xff]
    %v1858 = vld [vmem:[#allocation6 + $0xec8] sm:$0xff]
    %v1859 = vld [vmem:[#allocation6 + $0xed0] sm:$0xff]
    %v1860 = vld [vmem:[#allocation6 + $0xed8] sm:$0xff]
    %v1861 = vld [vmem:[#allocation6 + $0xee0] sm:$0xff]
    %v1862 = vld [vmem:[#allocation6 + $0xee8] sm:$0xff]
    %v1863 = vld [vmem:[#allocation6 + $0xef0] sm:$0xff]
    %v1864 = vld [vmem:[#allocation6 + $0xef8] sm:$0xff]
    %v1865 = vld [vmem:[#allocation6 + $0xf00] sm:$0xff]
    %v1866 = vld [vmem:[#allocation6 + $0xf08] sm:$0xff]
    %v1867 = vld [vmem:[#allocation6 + $0xf10] sm:$0xff]
    %v1868 = vld [vmem:[#allocation6 + $0xf18] sm:$0xff]
    %v1869 = vld [vmem:[#allocation6 + $0xf20] sm:$0xff]
    %v1870 = vld [vmem:[#allocation6 + $0xf28] sm:$0xff]
    %v1871 = vld [vmem:[#allocation6 + $0xf30] sm:$0xff]
    %v1872 = vld [vmem:[#allocation6 + $0xf38] sm:$0xff]
    %v1873 = vld [vmem:[#allocation6 + $0xf40] sm:$0xff]
    %v1874 = vld [vmem:[#allocation6 + $0xf48] sm:$0xff]
    %v1875 = vld [vmem:[#allocation6 + $0xf50] sm:$0xff]
    %v1876 = vld [vmem:[#allocation6 + $0xf58] sm:$0xff]
    %v1877 = vld [vmem:[#allocation6 + $0xf60] sm:$0xff]
    %v1878 = vld [vmem:[#allocation6 + $0xf68] sm:$0xff]
    %v1879 = vld [vmem:[#allocation6 + $0xf70] sm:$0xff]
    %v1880 = vld [vmem:[#allocation6 + $0xf78] sm:$0xff]
    %v1881 = vld [vmem:[#allocation6 + $0xf80] sm:$0xff]
    %v1882 = vld [vmem:[#allocation6 + $0xf88] sm:$0xff]
    %v1883 = vld [vmem:[#allocation6 + $0xf90] sm:$0xff]
    %v1884 = vld [vmem:[#allocation6 + $0xf98] sm:$0xff]
    %v1885 = vld [vmem:[#allocation6 + $0xfa0] sm:$0xff]
    %v1886 = vld [vmem:[#allocation6 + $0xfa8] sm:$0xff]
    %v1887 = vld [vmem:[#allocation6 + $0xfb0] sm:$0xff]
    %v1888 = vld [vmem:[#allocation6 + $0xfb8] sm:$0xff]
    %v1889 = vld [vmem:[#allocation6 + $0xfc0] sm:$0xff]
    %v1890 = vld [vmem:[#allocation6 + $0xfc8] sm:$0xff]
    %v1891 = vld [vmem:[#allocation6 + $0xfd0] sm:$0xff]
    %v1892 = vld [vmem:[#allocation6 + $0xfd8] sm:$0xff]
    %v1893 = vld [vmem:[#allocation6 + $0xfe0] sm:$0xff]
    %v1894 = vld [vmem:[#allocation6 + $0xfe8] sm:$0xff]
    %v1895 = vld [vmem:[#allocation6 + $0xff0] sm:$0xff]
    %v1896 = vld [vmem:[#allocation6 + $0xff8] sm:$0xff]
    %1897 = vmatprep.subr.mxu0 %v1446
    %1898 = vmatpush1.msra.mxu0 %v1445
    %1899 = vmatprep.subr.mxu0 %v1442
    %1900 = vmatpush1.msra.mxu0 %v1441
    %1901 = vmatprep.subr.mxu0 %v1438
    %1902 = vmatpush1.msra.mxu0 %v1437
    %1903 = vmatprep.subr.mxu0 %v1434
    %1904 = vmatpush1.msra.mxu0 %v1433
    %1905 = vmatprep.subr.mxu0 %v1430
    %1906 = vmatpush1.msra.mxu0 %v1429
    %1907 = vmatprep.subr.mxu0 %v1426
    %1908 = vmatpush1.msra.mxu0 %v1425
    %1909 = vmatprep.subr.mxu0 %v1422
    %1910 = vmatpush1.msra.mxu0 %v1421
    %1911 = vmatprep.subr.mxu0 %v1418
    %1912 = vmatpush1.msra.mxu0 %v1417
    %1913 = vmatprep.subr.mxu0 %v1414
    %1914 = vmatpush1.msra.mxu0 %v1413
    %1915 = vmatprep.subr.mxu0 %v1410
    %1916 = vmatpush1.msra.mxu0 %v1409
    %1917 = vmatprep.subr.mxu0 %v1406
    %1918 = vmatpush1.msra.mxu0 %v1405
    %1919 = vmatprep.subr.mxu0 %v1402
    %1920 = vmatpush1.msra.mxu0 %v1401
    %1921 = vmatprep.subr.mxu0 %v1398
    %1922 = vmatpush1.msra.mxu0 %v1397
    %1923 = vmatprep.subr.mxu0 %v1394
    %1924 = vmatpush1.msra.mxu0 %v1393
    %1925 = vmatprep.subr.mxu0 %v1390
    %1926 = vmatpush1.msra.mxu0 %v1389
    %1927 = vmatprep.subr.mxu0 %v1386
    %1928 = vmatpush1.msra.mxu0 %v1385
    %1929 = vmatprep.subr.mxu0 %v1510
    %1930 = vmatpush2.msra.mxu0 %v1509
    %1931 = vmatprep.subr.mxu0 %v1506
    %1932 = vmatpush2.msra.mxu0 %v1505
    %1933 = vmatprep.subr.mxu0 %v1502
    %1934 = vmatpush2.msra.mxu0 %v1501
    %1935 = vmatprep.subr.mxu0 %v1498
    %1936 = vmatpush2.msra.mxu0 %v1497
    %1937 = vmatprep.subr.mxu0 %v1494
    %1938 = vmatpush2.msra.mxu0 %v1493
    %1939 = vmatprep.subr.mxu0 %v1490
    %1940 = vmatpush2.msra.mxu0 %v1489
    %1941 = vmatprep.subr.mxu0 %v1486
    %1942 = vmatpush2.msra.mxu0 %v1485
    %1943 = vmatprep.subr.mxu0 %v1482
    %1944 = vmatpush2.msra.mxu0 %v1481
    %1945 = vmatprep.subr.mxu0 %v1478
    %1946 = vmatpush2.msra.mxu0 %v1477
    %1947 = vmatprep.subr.mxu0 %v1474
    %1948 = vmatpush2.msra.mxu0 %v1473
    %1949 = vmatprep.subr.mxu0 %v1470
    %1950 = vmatpush2.msra.mxu0 %v1469
    %1951 = vmatprep.subr.mxu0 %v1466
    %1952 = vmatpush2.msra.mxu0 %v1465
    %1953 = vmatprep.subr.mxu0 %v1462
    %1954 = vmatpush2.msra.mxu0 %v1461
    %1955 = vmatprep.subr.mxu0 %v1458
    %1956 = vmatpush2.msra.mxu0 %v1457
    %1957 = vmatprep.subr.mxu0 %v1454
    %1958 = vmatpush2.msra.mxu0 %v1453
    %1959 = vmatprep.subr.mxu0 %v1450
    %1960 = vmatpush2.msra.mxu0 %v1449
    %1961 = vmatprep.mubr.f32.mxu0 %v1322
    %1962 = vmatmul.mubr.f32.gmra.mxu0 %v1321
    %v1963 = vpop.f32.mrf.mxu0
    %v1964 = vadd.f32 0.0, %v1963
    %v1965 = vpop.f32.mrf.mxu0
    %v1966 = vadd.f32 0.0, %v1965
    %1967 = vmatprep.mubr.f32.mxu0 %v1330
    %1968 = vmatmul.mubr.f32.gmra.mxu0 %v1329
    %v1969 = vpop.f32.mrf.mxu0
    %v1970 = vadd.f32 0.0, %v1969
    %v1971 = vpop.f32.mrf.mxu0
    %v1972 = vadd.f32 0.0, %v1971
    %1973 = vmatprep.mubr.f32.mxu0 %v1338
    %1974 = vmatmul.mubr.f32.gmra.mxu0 %v1337
    %v1975 = vpop.f32.mrf.mxu0
    %v1976 = vadd.f32 0.0, %v1975
    %v1977 = vpop.f32.mrf.mxu0
    %v1978 = vadd.f32 0.0, %v1977
    %1979 = vmatprep.mubr.f32.mxu0 %v1346
    %1980 = vmatmul.mubr.f32.gmra.mxu0 %v1345
    %v1981 = vpop.f32.mrf.mxu0
    %v1982 = vadd.f32 0.0, %v1981
    %v1983 = vpop.f32.mrf.mxu0
    %v1984 = vadd.f32 0.0, %v1983
    %1985 = vmatprep.mubr.f32.mxu0 %v1354
    %1986 = vmatmul.mubr.f32.gmra.mxu0 %v1353
    %v1987 = vpop.f32.mrf.mxu0
    %v1988 = vadd.f32 0.0, %v1987
    %v1989 = vpop.f32.mrf.mxu0
    %v1990 = vadd.f32 0.0, %v1989
    %1991 = vmatprep.mubr.f32.mxu0 %v1362
    %1992 = vmatmul.mubr.f32.gmra.mxu0 %v1361
    %v1993 = vpop.f32.mrf.mxu0
    %v1994 = vadd.f32 0.0, %v1993
    %v1995 = vpop.f32.mrf.mxu0
    %v1996 = vadd.f32 0.0, %v1995
    %1997 = vmatprep.mubr.f32.mxu0 %v1370
    %1998 = vmatmul.mubr.f32.gmra.mxu0 %v1369
    %v1999 = vpop.f32.mrf.mxu0
    %v2000 = vadd.f32 0.0, %v1999
    %v2001 = vpop.f32.mrf.mxu0
    %v2002 = vadd.f32 0.0, %v2001
    %2003 = vmatprep.mubr.f32.mxu0 %v1378
    %2004 = vmatmul.mubr.f32.gmra.mxu0 %v1377
    %v2005 = vpop.f32.mrf.mxu0
    %v2006 = vadd.f32 0.0, %v2005
    %v2007 = vpop.f32.mrf.mxu0
    %v2008 = vadd.f32 0.0, %v2007
    %2009 = vdwg.mxu0
    %2010 = vmatprep.subr.mxu0 %v1574
    %2011 = vmatpush1.msra.mxu0 %v1573
    %2012 = vmatprep.subr.mxu0 %v1570
    %2013 = vmatpush1.msra.mxu0 %v1569
    %2014 = vmatprep.subr.mxu0 %v1566
    %2015 = vmatpush1.msra.mxu0 %v1565
    %2016 = vmatprep.subr.mxu0 %v1562
    %2017 = vmatpush1.msra.mxu0 %v1561
    %2018 = vmatprep.subr.mxu0 %v1558
    %2019 = vmatpush1.msra.mxu0 %v1557
    %2020 = vmatprep.subr.mxu0 %v1554
    %2021 = vmatpush1.msra.mxu0 %v1553
    %2022 = vmatprep.subr.mxu0 %v1550
    %2023 = vmatpush1.msra.mxu0 %v1549
    %2024 = vmatprep.subr.mxu0 %v1546
    %2025 = vmatpush1.msra.mxu0 %v1545
    %2026 = vmatprep.subr.mxu0 %v1542
    %2027 = vmatpush1.msra.mxu0 %v1541
    %2028 = vmatprep.subr.mxu0 %v1538
    %2029 = vmatpush1.msra.mxu0 %v1537
    %2030 = vmatprep.subr.mxu0 %v1534
    %2031 = vmatpush1.msra.mxu0 %v1533
    %2032 = vmatprep.subr.mxu0 %v1530
    %2033 = vmatpush1.msra.mxu0 %v1529
    %2034 = vmatprep.subr.mxu0 %v1526
    %2035 = vmatpush1.msra.mxu0 %v1525
    %2036 = vmatprep.subr.mxu0 %v1522
    %2037 = vmatpush1.msra.mxu0 %v1521
    %2038 = vmatprep.subr.mxu0 %v1518
    %2039 = vmatpush1.msra.mxu0 %v1517
    %2040 = vmatprep.subr.mxu0 %v1514
    %2041 = vmatpush1.msra.mxu0 %v1513
    %2042 = vmatprep.subr.mxu0 %v1638
    %2043 = vmatpush2.msra.mxu0 %v1637
    %2044 = vmatprep.subr.mxu0 %v1634
    %2045 = vmatpush2.msra.mxu0 %v1633
    %2046 = vmatprep.subr.mxu0 %v1630
    %2047 = vmatpush2.msra.mxu0 %v1629
    %2048 = vmatprep.subr.mxu0 %v1626
    %2049 = vmatpush2.msra.mxu0 %v1625
    %2050 = vmatprep.subr.mxu0 %v1622
    %2051 = vmatpush2.msra.mxu0 %v1621
    %2052 = vmatprep.subr.mxu0 %v1618
    %2053 = vmatpush2.msra.mxu0 %v1617
    %2054 = vmatprep.subr.mxu0 %v1614
    %2055 = vmatpush2.msra.mxu0 %v1613
    %2056 = vmatprep.subr.mxu0 %v1610
    %2057 = vmatpush2.msra.mxu0 %v1609
    %2058 = vmatprep.subr.mxu0 %v1606
    %2059 = vmatpush2.msra.mxu0 %v1605
    %2060 = vmatprep.subr.mxu0 %v1602
    %2061 = vmatpush2.msra.mxu0 %v1601
    %2062 = vmatprep.subr.mxu0 %v1598
    %2063 = vmatpush2.msra.mxu0 %v1597
    %2064 = vmatprep.subr.mxu0 %v1594
    %2065 = vmatpush2.msra.mxu0 %v1593
    %2066 = vmatprep.subr.mxu0 %v1590
    %2067 = vmatpush2.msra.mxu0 %v1589
    %2068 = vmatprep.subr.mxu0 %v1586
    %2069 = vmatpush2.msra.mxu0 %v1585
    %2070 = vmatprep.subr.mxu0 %v1582
    %2071 = vmatpush2.msra.mxu0 %v1581
    %2072 = vmatprep.subr.mxu0 %v1578
    %2073 = vmatpush2.msra.mxu0 %v1577
    %2074 = vmatprep.mubr.f32.mxu0 %v1324
    %2075 = vmatmul.mubr.f32.gmra.mxu0 %v1323
    %v2076 = vpop.f32.mrf.mxu0
    %v2077 = vadd.f32 %v1964, %v2076
    %v2078 = vpop.f32.mrf.mxu0
    %v2079 = vadd.f32 %v1966, %v2078
    %2080 = vmatprep.mubr.f32.mxu0 %v1332
    %2081 = vmatmul.mubr.f32.gmra.mxu0 %v1331
    %v2082 = vpop.f32.mrf.mxu0
    %v2083 = vadd.f32 %v1970, %v2082
    %v2084 = vpop.f32.mrf.mxu0
    %v2085 = vadd.f32 %v1972, %v2084
    %2086 = vmatprep.mubr.f32.mxu0 %v1340
    %2087 = vmatmul.mubr.f32.gmra.mxu0 %v1339
    %v2088 = vpop.f32.mrf.mxu0
    %v2089 = vadd.f32 %v1976, %v2088
    %v2090 = vpop.f32.mrf.mxu0
    %v2091 = vadd.f32 %v1978, %v2090
    %2092 = vmatprep.mubr.f32.mxu0 %v1348
    %2093 = vmatmul.mubr.f32.gmra.mxu0 %v1347
    %v2094 = vpop.f32.mrf.mxu0
    %v2095 = vadd.f32 %v1982, %v2094
    %v2096 = vpop.f32.mrf.mxu0
    %v2097 = vadd.f32 %v1984, %v2096
    %2098 = vmatprep.mubr.f32.mxu0 %v1356
    %2099 = vmatmul.mubr.f32.gmra.mxu0 %v1355
    %v2100 = vpop.f32.mrf.mxu0
    %v2101 = vadd.f32 %v1988, %v2100
    %v2102 = vpop.f32.mrf.mxu0
    %v2103 = vadd.f32 %v1990, %v2102
    %2104 = vmatprep.mubr.f32.mxu0 %v1364
    %2105 = vmatmul.mubr.f32.gmra.mxu0 %v1363
    %v2106 = vpop.f32.mrf.mxu0
    %v2107 = vadd.f32 %v1994, %v2106
    %v2108 = vpop.f32.mrf.mxu0
    %v2109 = vadd.f32 %v1996, %v2108
    %2110 = vmatprep.mubr.f32.mxu0 %v1372
    %2111 = vmatmul.mubr.f32.gmra.mxu0 %v1371
    %v2112 = vpop.f32.mrf.mxu0
    %v2113 = vadd.f32 %v2000, %v2112
    %v2114 = vpop.f32.mrf.mxu0
    %v2115 = vadd.f32 %v2002, %v2114
    %2116 = vmatprep.mubr.f32.mxu0 %v1380
    %2117 = vmatmul.mubr.f32.gmra.mxu0 %v1379
    %v2118 = vpop.f32.mrf.mxu0
    %v2119 = vadd.f32 %v2006, %v2118
    %v2120 = vpop.f32.mrf.mxu0
    %v2121 = vadd.f32 %v2008, %v2120
    %2122 = vdwg.mxu0
    %2123 = vmatprep.subr.mxu0 %v1702
    %2124 = vmatpush1.msra.mxu0 %v1701
    %2125 = vmatprep.subr.mxu0 %v1698
    %2126 = vmatpush1.msra.mxu0 %v1697
    %2127 = vmatprep.subr.mxu0 %v1694
    %2128 = vmatpush1.msra.mxu0 %v1693
    %2129 = vmatprep.subr.mxu0 %v1690
    %2130 = vmatpush1.msra.mxu0 %v1689
    %2131 = vmatprep.subr.mxu0 %v1686
    %2132 = vmatpush1.msra.mxu0 %v1685
    %2133 = vmatprep.subr.mxu0 %v1682
    %2134 = vmatpush1.msra.mxu0 %v1681
    %2135 = vmatprep.subr.mxu0 %v1678
    %2136 = vmatpush1.msra.mxu0 %v1677
    %2137 = vmatprep.subr.mxu0 %v1674
    %2138 = vmatpush1.msra.mxu0 %v1673
    %2139 = vmatprep.subr.mxu0 %v1670
    %2140 = vmatpush1.msra.mxu0 %v1669
    %2141 = vmatprep.subr.mxu0 %v1666
    %2142 = vmatpush1.msra.mxu0 %v1665
    %2143 = vmatprep.subr.mxu0 %v1662
    %2144 = vmatpush1.msra.mxu0 %v1661
    %2145 = vmatprep.subr.mxu0 %v1658
    %2146 = vmatpush1.msra.mxu0 %v1657
    %2147 = vmatprep.subr.mxu0 %v1654
    %2148 = vmatpush1.msra.mxu0 %v1653
    %2149 = vmatprep.subr.mxu0 %v1650
    %2150 = vmatpush1.msra.mxu0 %v1649
    %2151 = vmatprep.subr.mxu0 %v1646
    %2152 = vmatpush1.msra.mxu0 %v1645
    %2153 = vmatprep.subr.mxu0 %v1642
    %2154 = vmatpush1.msra.mxu0 %v1641
    %2155 = vmatprep.subr.mxu0 %v1766
    %2156 = vmatpush2.msra.mxu0 %v1765
    %2157 = vmatprep.subr.mxu0 %v1762
    %2158 = vmatpush2.msra.mxu0 %v1761
    %2159 = vmatprep.subr.mxu0 %v1758
    %2160 = vmatpush2.msra.mxu0 %v1757
    %2161 = vmatprep.subr.mxu0 %v1754
    %2162 = vmatpush2.msra.mxu0 %v1753
    %2163 = vmatprep.subr.mxu0 %v1750
    %2164 = vmatpush2.msra.mxu0 %v1749
    %2165 = vmatprep.subr.mxu0 %v1746
    %2166 = vmatpush2.msra.mxu0 %v1745
    %2167 = vmatprep.subr.mxu0 %v1742
    %2168 = vmatpush2.msra.mxu0 %v1741
    %2169 = vmatprep.subr.mxu0 %v1738
    %2170 = vmatpush2.msra.mxu0 %v1737
    %2171 = vmatprep.subr.mxu0 %v1734
    %2172 = vmatpush2.msra.mxu0 %v1733
    %2173 = vmatprep.subr.mxu0 %v1730
    %2174 = vmatpush2.msra.mxu0 %v1729
    %2175 = vmatprep.subr.mxu0 %v1726
    %2176 = vmatpush2.msra.mxu0 %v1725
    %2177 = vmatprep.subr.mxu0 %v1722
    %2178 = vmatpush2.msra.mxu0 %v1721
    %2179 = vmatprep.subr.mxu0 %v1718
    %2180 = vmatpush2.msra.mxu0 %v1717
    %2181 = vmatprep.subr.mxu0 %v1714
    %2182 = vmatpush2.msra.mxu0 %v1713
    %2183 = vmatprep.subr.mxu0 %v1710
    %2184 = vmatpush2.msra.mxu0 %v1709
    %2185 = vmatprep.subr.mxu0 %v1706
    %2186 = vmatpush2.msra.mxu0 %v1705
    %2187 = vmatprep.mubr.f32.mxu0 %v1326
    %2188 = vmatmul.mubr.f32.gmra.mxu0 %v1325
    %v2189 = vpop.f32.mrf.mxu0
    %v2190 = vadd.f32 %v2077, %v2189
    %v2191 = vpop.f32.mrf.mxu0
    %v2192 = vadd.f32 %v2079, %v2191
    %2193 = vmatprep.mubr.f32.mxu0 %v1334
    %2194 = vmatmul.mubr.f32.gmra.mxu0 %v1333
    %v2195 = vpop.f32.mrf.mxu0
    %v2196 = vadd.f32 %v2083, %v2195
    %v2197 = vpop.f32.mrf.mxu0
    %v2198 = vadd.f32 %v2085, %v2197
    %2199 = vmatprep.mubr.f32.mxu0 %v1342
    %2200 = vmatmul.mubr.f32.gmra.mxu0 %v1341
    %v2201 = vpop.f32.mrf.mxu0
    %v2202 = vadd.f32 %v2089, %v2201
    %v2203 = vpop.f32.mrf.mxu0
    %v2204 = vadd.f32 %v2091, %v2203
    %2205 = vmatprep.mubr.f32.mxu0 %v1350
    %2206 = vmatmul.mubr.f32.gmra.mxu0 %v1349
    %v2207 = vpop.f32.mrf.mxu0
    %v2208 = vadd.f32 %v2095, %v2207
    %v2209 = vpop.f32.mrf.mxu0
    %v2210 = vadd.f32 %v2097, %v2209
    %2211 = vmatprep.mubr.f32.mxu0 %v1358
    %2212 = vmatmul.mubr.f32.gmra.mxu0 %v1357
    %v2213 = vpop.f32.mrf.mxu0
    %v2214 = vadd.f32 %v2101, %v2213
    %v2215 = vpop.f32.mrf.mxu0
    %v2216 = vadd.f32 %v2103, %v2215
    %2217 = vmatprep.mubr.f32.mxu0 %v1366
    %2218 = vmatmul.mubr.f32.gmra.mxu0 %v1365
    %v2219 = vpop.f32.mrf.mxu0
    %v2220 = vadd.f32 %v2107, %v2219
    %v2221 = vpop.f32.mrf.mxu0
    %v2222 = vadd.f32 %v2109, %v2221
    %2223 = vmatprep.mubr.f32.mxu0 %v1374
    %2224 = vmatmul.mubr.f32.gmra.mxu0 %v1373
    %v2225 = vpop.f32.mrf.mxu0
    %v2226 = vadd.f32 %v2113, %v2225
    %v2227 = vpop.f32.mrf.mxu0
    %v2228 = vadd.f32 %v2115, %v2227
    %2229 = vmatprep.mubr.f32.mxu0 %v1382
    %2230 = vmatmul.mubr.f32.gmra.mxu0 %v1381
    %v2231 = vpop.f32.mrf.mxu0
    %v2232 = vadd.f32 %v2119, %v2231
    %v2233 = vpop.f32.mrf.mxu0
    %v2234 = vadd.f32 %v2121, %v2233
    %2235 = vdwg.mxu0
    %2236 = vmatprep.subr.mxu0 %v1830
    %2237 = vmatpush1.msra.mxu0 %v1829
    %2238 = vmatprep.subr.mxu0 %v1826
    %2239 = vmatpush1.msra.mxu0 %v1825
    %2240 = vmatprep.subr.mxu0 %v1822
    %2241 = vmatpush1.msra.mxu0 %v1821
    %2242 = vmatprep.subr.mxu0 %v1818
    %2243 = vmatpush1.msra.mxu0 %v1817
    %2244 = vmatprep.subr.mxu0 %v1814
    %2245 = vmatpush1.msra.mxu0 %v1813
    %2246 = vmatprep.subr.mxu0 %v1810
    %2247 = vmatpush1.msra.mxu0 %v1809
    %2248 = vmatprep.subr.mxu0 %v1806
    %2249 = vmatpush1.msra.mxu0 %v1805
    %2250 = vmatprep.subr.mxu0 %v1802
    %2251 = vmatpush1.msra.mxu0 %v1801
    %2252 = vmatprep.subr.mxu0 %v1798
    %2253 = vmatpush1.msra.mxu0 %v1797
    %2254 = vmatprep.subr.mxu0 %v1794
    %2255 = vmatpush1.msra.mxu0 %v1793
    %2256 = vmatprep.subr.mxu0 %v1790
    %2257 = vmatpush1.msra.mxu0 %v1789
    %2258 = vmatprep.subr.mxu0 %v1786
    %2259 = vmatpush1.msra.mxu0 %v1785
    %2260 = vmatprep.subr.mxu0 %v1782
    %2261 = vmatpush1.msra.mxu0 %v1781
    %2262 = vmatprep.subr.mxu0 %v1778
    %2263 = vmatpush1.msra.mxu0 %v1777
    %2264 = vmatprep.subr.mxu0 %v1774
    %2265 = vmatpush1.msra.mxu0 %v1773
    %2266 = vmatprep.subr.mxu0 %v1770
    %2267 = vmatpush1.msra.mxu0 %v1769
    %2268 = vmatprep.subr.mxu0 %v1894
    %2269 = vmatpush2.msra.mxu0 %v1893
    %2270 = vmatprep.subr.mxu0 %v1890
    %2271 = vmatpush2.msra.mxu0 %v1889
    %2272 = vmatprep.subr.mxu0 %v1886
    %2273 = vmatpush2.msra.mxu0 %v1885
    %2274 = vmatprep.subr.mxu0 %v1882
    %2275 = vmatpush2.msra.mxu0 %v1881
    %2276 = vmatprep.subr.mxu0 %v1878
    %2277 = vmatpush2.msra.mxu0 %v1877
    %2278 = vmatprep.subr.mxu0 %v1874
    %2279 = vmatpush2.msra.mxu0 %v1873
    %2280 = vmatprep.subr.mxu0 %v1870
    %2281 = vmatpush2.msra.mxu0 %v1869
    %2282 = vmatprep.subr.mxu0 %v1866
    %2283 = vmatpush2.msra.mxu0 %v1865
    %2284 = vmatprep.subr.mxu0 %v1862
    %2285 = vmatpush2.msra.mxu0 %v1861
    %2286 = vmatprep.subr.mxu0 %v1858
    %2287 = vmatpush2.msra.mxu0 %v1857
    %2288 = vmatprep.subr.mxu0 %v1854
    %2289 = vmatpush2.msra.mxu0 %v1853
    %2290 = vmatprep.subr.mxu0 %v1850
    %2291 = vmatpush2.msra.mxu0 %v1849
    %2292 = vmatprep.subr.mxu0 %v1846
    %2293 = vmatpush2.msra.mxu0 %v1845
    %2294 = vmatprep.subr.mxu0 %v1842
    %2295 = vmatpush2.msra.mxu0 %v1841
    %2296 = vmatprep.subr.mxu0 %v1838
    %2297 = vmatpush2.msra.mxu0 %v1837
    %2298 = vmatprep.subr.mxu0 %v1834
    %2299 = vmatpush2.msra.mxu0 %v1833
    %2300 = vmatprep.mubr.f32.mxu0 %v1328
    %2301 = vmatmul.mubr.f32.gmra.mxu0 %v1327
    %v2302 = vpop.f32.mrf.mxu0
    %v2303 = vadd.f32 %v2190, %v2302
    %v2304 = vpop.f32.mrf.mxu0
    %v2305 = vadd.f32 %v2192, %v2304
    %2306 = vmatprep.mubr.f32.mxu0 %v1336
    %2307 = vmatmul.mubr.f32.gmra.mxu0 %v1335
    %v2308 = vpop.f32.mrf.mxu0
    %v2309 = vadd.f32 %v2196, %v2308
    %v2310 = vpop.f32.mrf.mxu0
    %v2311 = vadd.f32 %v2198, %v2310
    %2312 = vmatprep.mubr.f32.mxu0 %v1344
    %2313 = vmatmul.mubr.f32.gmra.mxu0 %v1343
    %v2314 = vpop.f32.mrf.mxu0
    %v2315 = vadd.f32 %v2202, %v2314
    %v2316 = vpop.f32.mrf.mxu0
    %v2317 = vadd.f32 %v2204, %v2316
    %2318 = vmatprep.mubr.f32.mxu0 %v1352
    %2319 = vmatmul.mubr.f32.gmra.mxu0 %v1351
    %v2320 = vpop.f32.mrf.mxu0
    %v2321 = vadd.f32 %v2208, %v2320
    %v2322 = vpop.f32.mrf.mxu0
    %v2323 = vadd.f32 %v2210, %v2322
    %2324 = vmatprep.mubr.f32.mxu0 %v1360
    %2325 = vmatmul.mubr.f32.gmra.mxu0 %v1359
    %v2326 = vpop.f32.mrf.mxu0
    %v2327 = vadd.f32 %v2214, %v2326
    %v2328 = vpop.f32.mrf.mxu0
    %v2329 = vadd.f32 %v2216, %v2328
    %2330 = vmatprep.mubr.f32.mxu0 %v1368
    %2331 = vmatmul.mubr.f32.gmra.mxu0 %v1367
    %v2332 = vpop.f32.mrf.mxu0
    %v2333 = vadd.f32 %v2220, %v2332
    %v2334 = vpop.f32.mrf.mxu0
    %v2335 = vadd.f32 %v2222, %v2334
    %2336 = vmatprep.mubr.f32.mxu0 %v1376
    %2337 = vmatmul.mubr.f32.gmra.mxu0 %v1375
    %v2338 = vpop.f32.mrf.mxu0
    %v2339 = vadd.f32 %v2226, %v2338
    %v2340 = vpop.f32.mrf.mxu0
    %v2341 = vadd.f32 %v2228, %v2340
    %2342 = vmatprep.mubr.f32.mxu0 %v1384
    %2343 = vmatmul.mubr.f32.gmra.mxu0 %v1383
    %v2344 = vpop.f32.mrf.mxu0
    %v2345 = vadd.f32 %v2232, %v2344
    %v2346 = vpop.f32.mrf.mxu0
    %v2347 = vadd.f32 %v2234, %v2346
    %2348 = vdwg.mxu0
    %2349 = vmatprep.subr.mxu0 %v1448
    %2350 = vmatpush1.msra.mxu0 %v1447
    %2351 = vmatprep.subr.mxu0 %v1444
    %2352 = vmatpush1.msra.mxu0 %v1443
    %2353 = vmatprep.subr.mxu0 %v1440
    %2354 = vmatpush1.msra.mxu0 %v1439
    %2355 = vmatprep.subr.mxu0 %v1436
    %2356 = vmatpush1.msra.mxu0 %v1435
    %2357 = vmatprep.subr.mxu0 %v1432
    %2358 = vmatpush1.msra.mxu0 %v1431
    %2359 = vmatprep.subr.mxu0 %v1428
    %2360 = vmatpush1.msra.mxu0 %v1427
    %2361 = vmatprep.subr.mxu0 %v1424
    %2362 = vmatpush1.msra.mxu0 %v1423
    %2363 = vmatprep.subr.mxu0 %v1420
    %2364 = vmatpush1.msra.mxu0 %v1419
    %2365 = vmatprep.subr.mxu0 %v1416
    %2366 = vmatpush1.msra.mxu0 %v1415
    %2367 = vmatprep.subr.mxu0 %v1412
    %2368 = vmatpush1.msra.mxu0 %v1411
    %2369 = vmatprep.subr.mxu0 %v1408
    %2370 = vmatpush1.msra.mxu0 %v1407
    %2371 = vmatprep.subr.mxu0 %v1404
    %2372 = vmatpush1.msra.mxu0 %v1403
    %2373 = vmatprep.subr.mxu0 %v1400
    %2374 = vmatpush1.msra.mxu0 %v1399
    %2375 = vmatprep.subr.mxu0 %v1396
    %2376 = vmatpush1.msra.mxu0 %v1395
    %2377 = vmatprep.subr.mxu0 %v1392
    %2378 = vmatpush1.msra.mxu0 %v1391
    %2379 = vmatprep.subr.mxu0 %v1388
    %2380 = vmatpush1.msra.mxu0 %v1387
    %2381 = vmatprep.subr.mxu0 %v1512
    %2382 = vmatpush2.msra.mxu0 %v1511
    %2383 = vmatprep.subr.mxu0 %v1508
    %2384 = vmatpush2.msra.mxu0 %v1507
    %2385 = vmatprep.subr.mxu0 %v1504
    %2386 = vmatpush2.msra.mxu0 %v1503
    %2387 = vmatprep.subr.mxu0 %v1500
    %2388 = vmatpush2.msra.mxu0 %v1499
    %2389 = vmatprep.subr.mxu0 %v1496
    %2390 = vmatpush2.msra.mxu0 %v1495
    %2391 = vmatprep.subr.mxu0 %v1492
    %2392 = vmatpush2.msra.mxu0 %v1491
    %2393 = vmatprep.subr.mxu0 %v1488
    %2394 = vmatpush2.msra.mxu0 %v1487
    %2395 = vmatprep.subr.mxu0 %v1484
    %2396 = vmatpush2.msra.mxu0 %v1483
    %2397 = vmatprep.subr.mxu0 %v1480
    %2398 = vmatpush2.msra.mxu0 %v1479
    %2399 = vmatprep.subr.mxu0 %v1476
    %2400 = vmatpush2.msra.mxu0 %v1475
    %2401 = vmatprep.subr.mxu0 %v1472
    %2402 = vmatpush2.msra.mxu0 %v1471
    %2403 = vmatprep.subr.mxu0 %v1468
    %2404 = vmatpush2.msra.mxu0 %v1467
    %2405 = vmatprep.subr.mxu0 %v1464
    %2406 = vmatpush2.msra.mxu0 %v1463
    %2407 = vmatprep.subr.mxu0 %v1460
    %2408 = vmatpush2.msra.mxu0 %v1459
    %2409 = vmatprep.subr.mxu0 %v1456
    %2410 = vmatpush2.msra.mxu0 %v1455
    %2411 = vmatprep.subr.mxu0 %v1452
    %2412 = vmatpush2.msra.mxu0 %v1451
    %2413 = vmatprep.mubr.f32.mxu0 %v1322
    %2414 = vmatmul.mubr.f32.gmra.mxu0 %v1321
    %v2415 = vpop.f32.mrf.mxu0
    %v2416 = vadd.f32 0.0, %v2415
    %v2417 = vpop.f32.mrf.mxu0
    %v2418 = vadd.f32 0.0, %v2417
    %2419 = vmatprep.mubr.f32.mxu0 %v1330
    %2420 = vmatmul.mubr.f32.gmra.mxu0 %v1329
    %v2421 = vpop.f32.mrf.mxu0
    %v2422 = vadd.f32 0.0, %v2421
    %v2423 = vpop.f32.mrf.mxu0
    %v2424 = vadd.f32 0.0, %v2423
    %2425 = vmatprep.mubr.f32.mxu0 %v1338
    %2426 = vmatmul.mubr.f32.gmra.mxu0 %v1337
    %v2427 = vpop.f32.mrf.mxu0
    %v2428 = vadd.f32 0.0, %v2427
    %v2429 = vpop.f32.mrf.mxu0
    %v2430 = vadd.f32 0.0, %v2429
    %2431 = vmatprep.mubr.f32.mxu0 %v1346
    %2432 = vmatmul.mubr.f32.gmra.mxu0 %v1345
    %v2433 = vpop.f32.mrf.mxu0
    %v2434 = vadd.f32 0.0, %v2433
    %v2435 = vpop.f32.mrf.mxu0
    %v2436 = vadd.f32 0.0, %v2435
    %2437 = vmatprep.mubr.f32.mxu0 %v1354
    %2438 = vmatmul.mubr.f32.gmra.mxu0 %v1353
    %v2439 = vpop.f32.mrf.mxu0
    %v2440 = vadd.f32 0.0, %v2439
    %v2441 = vpop.f32.mrf.mxu0
    %v2442 = vadd.f32 0.0, %v2441
    %2443 = vmatprep.mubr.f32.mxu0 %v1362
    %2444 = vmatmul.mubr.f32.gmra.mxu0 %v1361
    %v2445 = vpop.f32.mrf.mxu0
    %v2446 = vadd.f32 0.0, %v2445
    %v2447 = vpop.f32.mrf.mxu0
    %v2448 = vadd.f32 0.0, %v2447
    %2449 = vmatprep.mubr.f32.mxu0 %v1370
    %2450 = vmatmul.mubr.f32.gmra.mxu0 %v1369
    %v2451 = vpop.f32.mrf.mxu0
    %v2452 = vadd.f32 0.0, %v2451
    %v2453 = vpop.f32.mrf.mxu0
    %v2454 = vadd.f32 0.0, %v2453
    %2455 = vmatprep.mubr.f32.mxu0 %v1378
    %2456 = vmatmul.mubr.f32.gmra.mxu0 %v1377
    %v2457 = vpop.f32.mrf.mxu0
    %v2458 = vadd.f32 0.0, %v2457
    %v2459 = vpop.f32.mrf.mxu0
    %v2460 = vadd.f32 0.0, %v2459
    %2461 = vdwg.mxu0
    %2462 = vmatprep.subr.mxu0 %v1576
    %2463 = vmatpush1.msra.mxu0 %v1575
    %2464 = vmatprep.subr.mxu0 %v1572
    %2465 = vmatpush1.msra.mxu0 %v1571
    %2466 = vmatprep.subr.mxu0 %v1568
    %2467 = vmatpush1.msra.mxu0 %v1567
    %2468 = vmatprep.subr.mxu0 %v1564
    %2469 = vmatpush1.msra.mxu0 %v1563
    %2470 = vmatprep.subr.mxu0 %v1560
    %2471 = vmatpush1.msra.mxu0 %v1559
    %2472 = vmatprep.subr.mxu0 %v1556
    %2473 = vmatpush1.msra.mxu0 %v1555
    %2474 = vmatprep.subr.mxu0 %v1552
    %2475 = vmatpush1.msra.mxu0 %v1551
    %2476 = vmatprep.subr.mxu0 %v1548
    %2477 = vmatpush1.msra.mxu0 %v1547
    %2478 = vmatprep.subr.mxu0 %v1544
    %2479 = vmatpush1.msra.mxu0 %v1543
    %2480 = vmatprep.subr.mxu0 %v1540
    %2481 = vmatpush1.msra.mxu0 %v1539
    %2482 = vmatprep.subr.mxu0 %v1536
    %2483 = vmatpush1.msra.mxu0 %v1535
    %2484 = vmatprep.subr.mxu0 %v1532
    %2485 = vmatpush1.msra.mxu0 %v1531
    %2486 = vmatprep.subr.mxu0 %v1528
    %2487 = vmatpush1.msra.mxu0 %v1527
    %2488 = vmatprep.subr.mxu0 %v1524
    %2489 = vmatpush1.msra.mxu0 %v1523
    %2490 = vmatprep.subr.mxu0 %v1520
    %2491 = vmatpush1.msra.mxu0 %v1519
    %2492 = vmatprep.subr.mxu0 %v1516
    %2493 = vmatpush1.msra.mxu0 %v1515
    %2494 = vmatprep.subr.mxu0 %v1640
    %2495 = vmatpush2.msra.mxu0 %v1639
    %2496 = vmatprep.subr.mxu0 %v1636
    %2497 = vmatpush2.msra.mxu0 %v1635
    %2498 = vmatprep.subr.mxu0 %v1632
    %2499 = vmatpush2.msra.mxu0 %v1631
    %2500 = vmatprep.subr.mxu0 %v1628
    %2501 = vmatpush2.msra.mxu0 %v1627
    %2502 = vmatprep.subr.mxu0 %v1624
    %2503 = vmatpush2.msra.mxu0 %v1623
    %2504 = vmatprep.subr.mxu0 %v1620
    %2505 = vmatpush2.msra.mxu0 %v1619
    %2506 = vmatprep.subr.mxu0 %v1616
    %2507 = vmatpush2.msra.mxu0 %v1615
    %2508 = vmatprep.subr.mxu0 %v1612
    %2509 = vmatpush2.msra.mxu0 %v1611
    %2510 = vmatprep.subr.mxu0 %v1608
    %2511 = vmatpush2.msra.mxu0 %v1607
    %2512 = vmatprep.subr.mxu0 %v1604
    %2513 = vmatpush2.msra.mxu0 %v1603
    %2514 = vmatprep.subr.mxu0 %v1600
    %2515 = vmatpush2.msra.mxu0 %v1599
    %2516 = vmatprep.subr.mxu0 %v1596
    %2517 = vmatpush2.msra.mxu0 %v1595
    %2518 = vmatprep.subr.mxu0 %v1592
    %2519 = vmatpush2.msra.mxu0 %v1591
    %2520 = vmatprep.subr.mxu0 %v1588
    %2521 = vmatpush2.msra.mxu0 %v1587
    %2522 = vmatprep.subr.mxu0 %v1584
    %2523 = vmatpush2.msra.mxu0 %v1583
    %2524 = vmatprep.subr.mxu0 %v1580
    %2525 = vmatpush2.msra.mxu0 %v1579
    %2526 = vmatprep.mubr.f32.mxu0 %v1324
    %2527 = vmatmul.mubr.f32.gmra.mxu0 %v1323
    %v2528 = vpop.f32.mrf.mxu0
    %v2529 = vadd.f32 %v2416, %v2528
    %v2530 = vpop.f32.mrf.mxu0
    %v2531 = vadd.f32 %v2418, %v2530
    %2532 = vmatprep.mubr.f32.mxu0 %v1332
    %2533 = vmatmul.mubr.f32.gmra.mxu0 %v1331
    %v2534 = vpop.f32.mrf.mxu0
    %v2535 = vadd.f32 %v2422, %v2534
    %v2536 = vpop.f32.mrf.mxu0
    %v2537 = vadd.f32 %v2424, %v2536
    %2538 = vmatprep.mubr.f32.mxu0 %v1340
    %2539 = vmatmul.mubr.f32.gmra.mxu0 %v1339
    %v2540 = vpop.f32.mrf.mxu0
    %v2541 = vadd.f32 %v2428, %v2540
    %v2542 = vpop.f32.mrf.mxu0
    %v2543 = vadd.f32 %v2430, %v2542
    %2544 = vmatprep.mubr.f32.mxu0 %v1348
    %2545 = vmatmul.mubr.f32.gmra.mxu0 %v1347
    %v2546 = vpop.f32.mrf.mxu0
    %v2547 = vadd.f32 %v2434, %v2546
    %v2548 = vpop.f32.mrf.mxu0
    %v2549 = vadd.f32 %v2436, %v2548
    %2550 = vmatprep.mubr.f32.mxu0 %v1356
    %2551 = vmatmul.mubr.f32.gmra.mxu0 %v1355
    %v2552 = vpop.f32.mrf.mxu0
    %v2553 = vadd.f32 %v2440, %v2552
    %v2554 = vpop.f32.mrf.mxu0
    %v2555 = vadd.f32 %v2442, %v2554
    %2556 = vmatprep.mubr.f32.mxu0 %v1364
    %2557 = vmatmul.mubr.f32.gmra.mxu0 %v1363
    %v2558 = vpop.f32.mrf.mxu0
    %v2559 = vadd.f32 %v2446, %v2558
    %v2560 = vpop.f32.mrf.mxu0
    %v2561 = vadd.f32 %v2448, %v2560
    %2562 = vmatprep.mubr.f32.mxu0 %v1372
    %2563 = vmatmul.mubr.f32.gmra.mxu0 %v1371
    %v2564 = vpop.f32.mrf.mxu0
    %v2565 = vadd.f32 %v2452, %v2564
    %v2566 = vpop.f32.mrf.mxu0
    %v2567 = vadd.f32 %v2454, %v2566
    %2568 = vmatprep.mubr.f32.mxu0 %v1380
    %2569 = vmatmul.mubr.f32.gmra.mxu0 %v1379
    %v2570 = vpop.f32.mrf.mxu0
    %v2571 = vadd.f32 %v2458, %v2570
    %v2572 = vpop.f32.mrf.mxu0
    %v2573 = vadd.f32 %v2460, %v2572
    %2574 = vdwg.mxu0
    %2575 = vmatprep.subr.mxu0 %v1704
    %2576 = vmatpush1.msra.mxu0 %v1703
    %2577 = vmatprep.subr.mxu0 %v1700
    %2578 = vmatpush1.msra.mxu0 %v1699
    %2579 = vmatprep.subr.mxu0 %v1696
    %2580 = vmatpush1.msra.mxu0 %v1695
    %2581 = vmatprep.subr.mxu0 %v1692
    %2582 = vmatpush1.msra.mxu0 %v1691
    %2583 = vmatprep.subr.mxu0 %v1688
    %2584 = vmatpush1.msra.mxu0 %v1687
    %2585 = vmatprep.subr.mxu0 %v1684
    %2586 = vmatpush1.msra.mxu0 %v1683
    %2587 = vmatprep.subr.mxu0 %v1680
    %2588 = vmatpush1.msra.mxu0 %v1679
    %2589 = vmatprep.subr.mxu0 %v1676
    %2590 = vmatpush1.msra.mxu0 %v1675
    %2591 = vmatprep.subr.mxu0 %v1672
    %2592 = vmatpush1.msra.mxu0 %v1671
    %2593 = vmatprep.subr.mxu0 %v1668
    %2594 = vmatpush1.msra.mxu0 %v1667
    %2595 = vmatprep.subr.mxu0 %v1664
    %2596 = vmatpush1.msra.mxu0 %v1663
    %2597 = vmatprep.subr.mxu0 %v1660
    %2598 = vmatpush1.msra.mxu0 %v1659
    %2599 = vmatprep.subr.mxu0 %v1656
    %2600 = vmatpush1.msra.mxu0 %v1655
    %2601 = vmatprep.subr.mxu0 %v1652
    %2602 = vmatpush1.msra.mxu0 %v1651
    %2603 = vmatprep.subr.mxu0 %v1648
    %2604 = vmatpush1.msra.mxu0 %v1647
    %2605 = vmatprep.subr.mxu0 %v1644
    %2606 = vmatpush1.msra.mxu0 %v1643
    %2607 = vmatprep.subr.mxu0 %v1768
    %2608 = vmatpush2.msra.mxu0 %v1767
    %2609 = vmatprep.subr.mxu0 %v1764
    %2610 = vmatpush2.msra.mxu0 %v1763
    %2611 = vmatprep.subr.mxu0 %v1760
    %2612 = vmatpush2.msra.mxu0 %v1759
    %2613 = vmatprep.subr.mxu0 %v1756
    %2614 = vmatpush2.msra.mxu0 %v1755
    %2615 = vmatprep.subr.mxu0 %v1752
    %2616 = vmatpush2.msra.mxu0 %v1751
    %2617 = vmatprep.subr.mxu0 %v1748
    %2618 = vmatpush2.msra.mxu0 %v1747
    %2619 = vmatprep.subr.mxu0 %v1744
    %2620 = vmatpush2.msra.mxu0 %v1743
    %2621 = vmatprep.subr.mxu0 %v1740
    %2622 = vmatpush2.msra.mxu0 %v1739
    %2623 = vmatprep.subr.mxu0 %v1736
    %2624 = vmatpush2.msra.mxu0 %v1735
    %2625 = vmatprep.subr.mxu0 %v1732
    %2626 = vmatpush2.msra.mxu0 %v1731
    %2627 = vmatprep.subr.mxu0 %v1728
    %2628 = vmatpush2.msra.mxu0 %v1727
    %2629 = vmatprep.subr.mxu0 %v1724
    %2630 = vmatpush2.msra.mxu0 %v1723
    %2631 = vmatprep.subr.mxu0 %v1720
    %2632 = vmatpush2.msra.mxu0 %v1719
    %2633 = vmatprep.subr.mxu0 %v1716
    %2634 = vmatpush2.msra.mxu0 %v1715
    %2635 = vmatprep.subr.mxu0 %v1712
    %2636 = vmatpush2.msra.mxu0 %v1711
    %2637 = vmatprep.subr.mxu0 %v1708
    %2638 = vmatpush2.msra.mxu0 %v1707
    %2639 = vmatprep.mubr.f32.mxu0 %v1326
    %2640 = vmatmul.mubr.f32.gmra.mxu0 %v1325
    %v2641 = vpop.f32.mrf.mxu0
    %v2642 = vadd.f32 %v2529, %v2641
    %v2643 = vpop.f32.mrf.mxu0
    %v2644 = vadd.f32 %v2531, %v2643
    %2645 = vmatprep.mubr.f32.mxu0 %v1334
    %2646 = vmatmul.mubr.f32.gmra.mxu0 %v1333
    %v2647 = vpop.f32.mrf.mxu0
    %v2648 = vadd.f32 %v2535, %v2647
    %v2649 = vpop.f32.mrf.mxu0
    %v2650 = vadd.f32 %v2537, %v2649
    %2651 = vmatprep.mubr.f32.mxu0 %v1342
    %2652 = vmatmul.mubr.f32.gmra.mxu0 %v1341
    %v2653 = vpop.f32.mrf.mxu0
    %v2654 = vadd.f32 %v2541, %v2653
    %v2655 = vpop.f32.mrf.mxu0
    %v2656 = vadd.f32 %v2543, %v2655
    %2657 = vmatprep.mubr.f32.mxu0 %v1350
    %2658 = vmatmul.mubr.f32.gmra.mxu0 %v1349
    %v2659 = vpop.f32.mrf.mxu0
    %v2660 = vadd.f32 %v2547, %v2659
    %v2661 = vpop.f32.mrf.mxu0
    %v2662 = vadd.f32 %v2549, %v2661
    %2663 = vmatprep.mubr.f32.mxu0 %v1358
    %2664 = vmatmul.mubr.f32.gmra.mxu0 %v1357
    %v2665 = vpop.f32.mrf.mxu0
    %v2666 = vadd.f32 %v2553, %v2665
    %v2667 = vpop.f32.mrf.mxu0
    %v2668 = vadd.f32 %v2555, %v2667
    %2669 = vmatprep.mubr.f32.mxu0 %v1366
    %2670 = vmatmul.mubr.f32.gmra.mxu0 %v1365
    %v2671 = vpop.f32.mrf.mxu0
    %v2672 = vadd.f32 %v2559, %v2671
    %v2673 = vpop.f32.mrf.mxu0
    %v2674 = vadd.f32 %v2561, %v2673
    %2675 = vmatprep.mubr.f32.mxu0 %v1374
    %2676 = vmatmul.mubr.f32.gmra.mxu0 %v1373
    %v2677 = vpop.f32.mrf.mxu0
    %v2678 = vadd.f32 %v2565, %v2677
    %v2679 = vpop.f32.mrf.mxu0
    %v2680 = vadd.f32 %v2567, %v2679
    %2681 = vmatprep.mubr.f32.mxu0 %v1382
    %2682 = vmatmul.mubr.f32.gmra.mxu0 %v1381
    %v2683 = vpop.f32.mrf.mxu0
    %v2684 = vadd.f32 %v2571, %v2683
    %v2685 = vpop.f32.mrf.mxu0
    %v2686 = vadd.f32 %v2573, %v2685
    %2687 = vdwg.mxu0
    %2688 = vmatprep.subr.mxu0 %v1832
    %2689 = vmatpush1.msra.mxu0 %v1831
    %2690 = vmatprep.subr.mxu0 %v1828
    %2691 = vmatpush1.msra.mxu0 %v1827
    %2692 = vmatprep.subr.mxu0 %v1824
    %2693 = vmatpush1.msra.mxu0 %v1823
    %2694 = vmatprep.subr.mxu0 %v1820
    %2695 = vmatpush1.msra.mxu0 %v1819
    %2696 = vmatprep.subr.mxu0 %v1816
    %2697 = vmatpush1.msra.mxu0 %v1815
    %2698 = vmatprep.subr.mxu0 %v1812
    %2699 = vmatpush1.msra.mxu0 %v1811
    %2700 = vmatprep.subr.mxu0 %v1808
    %2701 = vmatpush1.msra.mxu0 %v1807
    %2702 = vmatprep.subr.mxu0 %v1804
    %2703 = vmatpush1.msra.mxu0 %v1803
    %2704 = vmatprep.subr.mxu0 %v1800
    %2705 = vmatpush1.msra.mxu0 %v1799
    %2706 = vmatprep.subr.mxu0 %v1796
    %2707 = vmatpush1.msra.mxu0 %v1795
    %2708 = vmatprep.subr.mxu0 %v1792
    %2709 = vmatpush1.msra.mxu0 %v1791
    %2710 = vmatprep.subr.mxu0 %v1788
    %2711 = vmatpush1.msra.mxu0 %v1787
    %2712 = vmatprep.subr.mxu0 %v1784
    %2713 = vmatpush1.msra.mxu0 %v1783
    %2714 = vmatprep.subr.mxu0 %v1780
    %2715 = vmatpush1.msra.mxu0 %v1779
    %2716 = vmatprep.subr.mxu0 %v1776
    %2717 = vmatpush1.msra.mxu0 %v1775
    %2718 = vmatprep.subr.mxu0 %v1772
    %2719 = vmatpush1.msra.mxu0 %v1771
    %2720 = vmatprep.subr.mxu0 %v1896
    %2721 = vmatpush2.msra.mxu0 %v1895
    %2722 = vmatprep.subr.mxu0 %v1892
    %2723 = vmatpush2.msra.mxu0 %v1891
    %2724 = vmatprep.subr.mxu0 %v1888
    %2725 = vmatpush2.msra.mxu0 %v1887
    %2726 = vmatprep.subr.mxu0 %v1884
    %2727 = vmatpush2.msra.mxu0 %v1883
    %2728 = vmatprep.subr.mxu0 %v1880
    %2729 = vmatpush2.msra.mxu0 %v1879
    %2730 = vmatprep.subr.mxu0 %v1876
    %2731 = vmatpush2.msra.mxu0 %v1875
    %2732 = vmatprep.subr.mxu0 %v1872
    %2733 = vmatpush2.msra.mxu0 %v1871
    %2734 = vmatprep.subr.mxu0 %v1868
    %2735 = vmatpush2.msra.mxu0 %v1867
    %2736 = vmatprep.subr.mxu0 %v1864
    %2737 = vmatpush2.msra.mxu0 %v1863
    %2738 = vmatprep.subr.mxu0 %v1860
    %2739 = vmatpush2.msra.mxu0 %v1859
    %2740 = vmatprep.subr.mxu0 %v1856
    %2741 = vmatpush2.msra.mxu0 %v1855
    %2742 = vmatprep.subr.mxu0 %v1852
    %2743 = vmatpush2.msra.mxu0 %v1851
    %2744 = vmatprep.subr.mxu0 %v1848
    %2745 = vmatpush2.msra.mxu0 %v1847
    %2746 = vmatprep.subr.mxu0 %v1844
    %2747 = vmatpush2.msra.mxu0 %v1843
    %2748 = vmatprep.subr.mxu0 %v1840
    %2749 = vmatpush2.msra.mxu0 %v1839
    %2750 = vmatprep.subr.mxu0 %v1836
    %2751 = vmatpush2.msra.mxu0 %v1835
    %2752 = vmatprep.mubr.f32.mxu0 %v1328
    %2753 = vmatmul.mubr.f32.gmra.mxu0 %v1327
    %v2754 = vpop.f32.mrf.mxu0
    %v2755 = vadd.f32 %v2642, %v2754
    %v2756 = vpop.f32.mrf.mxu0
    %v2757 = vadd.f32 %v2644, %v2756
    %2758 = vmatprep.mubr.f32.mxu0 %v1336
    %2759 = vmatmul.mubr.f32.gmra.mxu0 %v1335
    %v2760 = vpop.f32.mrf.mxu0
    %v2761 = vadd.f32 %v2648, %v2760
    %v2762 = vpop.f32.mrf.mxu0
    %v2763 = vadd.f32 %v2650, %v2762
    %2764 = vmatprep.mubr.f32.mxu0 %v1344
    %2765 = vmatmul.mubr.f32.gmra.mxu0 %v1343
    %v2766 = vpop.f32.mrf.mxu0
    %v2767 = vadd.f32 %v2654, %v2766
    %v2768 = vpop.f32.mrf.mxu0
    %v2769 = vadd.f32 %v2656, %v2768
    %2770 = vmatprep.mubr.f32.mxu0 %v1352
    %2771 = vmatmul.mubr.f32.gmra.mxu0 %v1351
    %v2772 = vpop.f32.mrf.mxu0
    %v2773 = vadd.f32 %v2660, %v2772
    %v2774 = vpop.f32.mrf.mxu0
    %v2775 = vadd.f32 %v2662, %v2774
    %2776 = vmatprep.mubr.f32.mxu0 %v1360
    %2777 = vmatmul.mubr.f32.gmra.mxu0 %v1359
    %v2778 = vpop.f32.mrf.mxu0
    %v2779 = vadd.f32 %v2666, %v2778
    %v2780 = vpop.f32.mrf.mxu0
    %v2781 = vadd.f32 %v2668, %v2780
    %2782 = vmatprep.mubr.f32.mxu0 %v1368
    %2783 = vmatmul.mubr.f32.gmra.mxu0 %v1367
    %v2784 = vpop.f32.mrf.mxu0
    %v2785 = vadd.f32 %v2672, %v2784
    %v2786 = vpop.f32.mrf.mxu0
    %v2787 = vadd.f32 %v2674, %v2786
    %2788 = vmatprep.mubr.f32.mxu0 %v1376
    %2789 = vmatmul.mubr.f32.gmra.mxu0 %v1375
    %v2790 = vpop.f32.mrf.mxu0
    %v2791 = vadd.f32 %v2678, %v2790
    %v2792 = vpop.f32.mrf.mxu0
    %v2793 = vadd.f32 %v2680, %v2792
    %2794 = vmatprep.mubr.f32.mxu0 %v1384
    %2795 = vmatmul.mubr.f32.gmra.mxu0 %v1383
    %v2796 = vpop.f32.mrf.mxu0
    %v2797 = vadd.f32 %v2684, %v2796
    %v2798 = vpop.f32.mrf.mxu0
    %v2799 = vadd.f32 %v2686, %v2798
    %2800 = vdwg.mxu0
    %v2801 = vmul.f32 %v609, %v2303
    %v2802 = vmul.f32 %v609, %v2305
    %v2803 = vmul.f32 %v609, %v2755
    %v2804 = vmul.f32 %v609, %v2757
    %v2805 = vmul.f32 %v610, %v2309
    %v2806 = vmul.f32 %v610, %v2311
    %v2807 = vmul.f32 %v610, %v2761
    %v2808 = vmul.f32 %v610, %v2763
    %v2809 = vmul.f32 %v611, %v2315
    %v2810 = vmul.f32 %v611, %v2317
    %v2811 = vmul.f32 %v611, %v2767
    %v2812 = vmul.f32 %v611, %v2769
    %v2813 = vmul.f32 %v612, %v2321
    %v2814 = vmul.f32 %v612, %v2323
    %v2815 = vmul.f32 %v612, %v2773
    %v2816 = vmul.f32 %v612, %v2775
    %v2817 = vmul.f32 %v613, %v2327
    %v2818 = vmul.f32 %v613, %v2329
    %v2819 = vmul.f32 %v613, %v2779
    %v2820 = vmul.f32 %v613, %v2781
    %v2821 = vmul.f32 %v614, %v2333
    %v2822 = vmul.f32 %v614, %v2335
    %v2823 = vmul.f32 %v614, %v2785
    %v2824 = vmul.f32 %v614, %v2787
    %v2825 = vmul.f32 %v615, %v2339
    %v2826 = vmul.f32 %v615, %v2341
    %v2827 = vmul.f32 %v615, %v2791
    %v2828 = vmul.f32 %v615, %v2793
    %v2829 = vmul.f32 %v616, %v2345
    %v2830 = vmul.f32 %v616, %v2347
    %v2831 = vmul.f32 %v616, %v2797
    %v2832 = vmul.f32 %v616, %v2799
    %2833 = vmatprep.subr.mxu0 0.0
    %2834 = vmatpush1.msra.mxu0 0.0
    %2835 = vmatprep.subr.mxu0 0.0
    %2836 = vmatpush1.msra.mxu0 0.0
    %2837 = vmatprep.subr.mxu0 0.0
    %2838 = vmatpush1.msra.mxu0 0.0
    %2839 = vmatprep.subr.mxu0 0.0
    %2840 = vmatpush1.msra.mxu0 0.0
    %2841 = vmatprep.subr.mxu0 0.0
    %2842 = vmatpush1.msra.mxu0 0.0
    %2843 = vmatprep.subr.mxu0 0.0
    %2844 = vmatpush1.msra.mxu0 0.0
    %2845 = vmatprep.subr.mxu0 0.0
    %2846 = vmatpush1.msra.mxu0 0.0
    %2847 = vmatprep.subr.mxu0 0.0
    %2848 = vmatpush1.msra.mxu0 0.0
    %2849 = vmatprep.subr.mxu0 %v2830
    %2850 = vmatpush1.msra.mxu0 %v2829
    %2851 = vmatprep.subr.mxu0 %v2826
    %2852 = vmatpush1.msra.mxu0 %v2825
    %2853 = vmatprep.subr.mxu0 %v2822
    %2854 = vmatpush1.msra.mxu0 %v2821
    %2855 = vmatprep.subr.mxu0 %v2818
    %2856 = vmatpush1.msra.mxu0 %v2817
    %2857 = vmatprep.subr.mxu0 %v2814
    %2858 = vmatpush1.msra.mxu0 %v2813
    %2859 = vmatprep.subr.mxu0 %v2810
    %2860 = vmatpush1.msra.mxu0 %v2809
    %2861 = vmatprep.subr.mxu0 %v2806
    %2862 = vmatpush1.msra.mxu0 %v2805
    %2863 = vmatprep.subr.mxu0 %v2802
    %2864 = vmatpush1.msra.mxu0 %v2801
    %2865 = vmatprep.subr.mxu0 0.0
    %2866 = vmatpush2.msra.mxu0 0.0
    %2867 = vmatprep.subr.mxu0 0.0
    %2868 = vmatpush2.msra.mxu0 0.0
    %2869 = vmatprep.subr.mxu0 0.0
    %2870 = vmatpush2.msra.mxu0 0.0
    %2871 = vmatprep.subr.mxu0 0.0
    %2872 = vmatpush2.msra.mxu0 0.0
    %2873 = vmatprep.subr.mxu0 0.0
    %2874 = vmatpush2.msra.mxu0 0.0
    %2875 = vmatprep.subr.mxu0 0.0
    %2876 = vmatpush2.msra.mxu0 0.0
    %2877 = vmatprep.subr.mxu0 0.0
    %2878 = vmatpush2.msra.mxu0 0.0
    %2879 = vmatprep.subr.mxu0 0.0
    %2880 = vmatpush2.msra.mxu0 0.0
    %2881 = vmatprep.subr.mxu0 0.0
    %2882 = vmatpush2.msra.mxu0 0.0
    %2883 = vmatprep.subr.mxu0 0.0
    %2884 = vmatpush2.msra.mxu0 0.0
    %2885 = vmatprep.subr.mxu0 0.0
    %2886 = vmatpush2.msra.mxu0 0.0
    %2887 = vmatprep.subr.mxu0 0.0
    %2888 = vmatpush2.msra.mxu0 0.0
    %2889 = vmatprep.subr.mxu0 0.0
    %2890 = vmatpush2.msra.mxu0 0.0
    %2891 = vmatprep.subr.mxu0 0.0
    %2892 = vmatpush2.msra.mxu0 0.0
    %2893 = vmatprep.subr.mxu0 0.0
    %2894 = vmatpush2.msra.mxu0 0.0
    %2895 = vmatprep.subr.mxu0 0.0
    %2896 = vmatpush2.msra.mxu0 0.0
    %2897 = vmatprep.mubr.f32.mxu0 0.0
    %2898 = vmatmul.mubr.f32.gmra.mxu0 %v634
    %v2899 = vpop.f32.mrf.mxu0
    %v2900 = vadd.f32 0.0, %v2899
    %v2901 = vpop.f32.mrf.mxu0
    %v2902 = vadd.f32 0.0, %v2901
    %2903 = vmatprep.mubr.f32.mxu0 0.0
    %2904 = vmatmul.mubr.f32.gmra.mxu0 %v637
    %v2905 = vpop.f32.mrf.mxu0
    %v2906 = vadd.f32 0.0, %v2905
    %v2907 = vpop.f32.mrf.mxu0
    %v2908 = vadd.f32 0.0, %v2907
    %2909 = vmatprep.mubr.f32.mxu0 0.0
    %2910 = vmatmul.mubr.f32.gmra.mxu0 %v640
    %v2911 = vpop.f32.mrf.mxu0
    %v2912 = vadd.f32 0.0, %v2911
    %v2913 = vpop.f32.mrf.mxu0
    %v2914 = vadd.f32 0.0, %v2913
    %2915 = vmatprep.mubr.f32.mxu0 0.0
    %2916 = vmatmul.mubr.f32.gmra.mxu0 %v643
    %v2917 = vpop.f32.mrf.mxu0
    %v2918 = vadd.f32 0.0, %v2917
    %v2919 = vpop.f32.mrf.mxu0
    %v2920 = vadd.f32 0.0, %v2919
    %2921 = vmatprep.mubr.f32.mxu0 0.0
    %2922 = vmatmul.mubr.f32.gmra.mxu0 %v646
    %v2923 = vpop.f32.mrf.mxu0
    %v2924 = vadd.f32 0.0, %v2923
    %v2925 = vpop.f32.mrf.mxu0
    %v2926 = vadd.f32 0.0, %v2925
    %2927 = vmatprep.mubr.f32.mxu0 0.0
    %2928 = vmatmul.mubr.f32.gmra.mxu0 %v649
    %v2929 = vpop.f32.mrf.mxu0
    %v2930 = vadd.f32 0.0, %v2929
    %v2931 = vpop.f32.mrf.mxu0
    %v2932 = vadd.f32 0.0, %v2931
    %2933 = vmatprep.mubr.f32.mxu0 0.0
    %2934 = vmatmul.mubr.f32.gmra.mxu0 %v652
    %v2935 = vpop.f32.mrf.mxu0
    %v2936 = vadd.f32 0.0, %v2935
    %v2937 = vpop.f32.mrf.mxu0
    %v2938 = vadd.f32 0.0, %v2937
    %2939 = vmatprep.mubr.f32.mxu0 0.0
    %2940 = vmatmul.mubr.f32.gmra.mxu0 %v655
    %v2941 = vpop.f32.mrf.mxu0
    %v2942 = vadd.f32 0.0, %v2941
    %v2943 = vpop.f32.mrf.mxu0
    %v2944 = vadd.f32 0.0, %v2943
    %2945 = vdwg.mxu0
    %2946 = vmatprep.subr.mxu0 0.0
    %2947 = vmatpush1.msra.mxu0 0.0
    %2948 = vmatprep.subr.mxu0 0.0
    %2949 = vmatpush1.msra.mxu0 0.0
    %2950 = vmatprep.subr.mxu0 0.0
    %2951 = vmatpush1.msra.mxu0 0.0
    %2952 = vmatprep.subr.mxu0 0.0
    %2953 = vmatpush1.msra.mxu0 0.0
    %2954 = vmatprep.subr.mxu0 0.0
    %2955 = vmatpush1.msra.mxu0 0.0
    %2956 = vmatprep.subr.mxu0 0.0
    %2957 = vmatpush1.msra.mxu0 0.0
    %2958 = vmatprep.subr.mxu0 0.0
    %2959 = vmatpush1.msra.mxu0 0.0
    %2960 = vmatprep.subr.mxu0 0.0
    %2961 = vmatpush1.msra.mxu0 0.0
    %2962 = vmatprep.subr.mxu0 %v2832
    %2963 = vmatpush1.msra.mxu0 %v2831
    %2964 = vmatprep.subr.mxu0 %v2828
    %2965 = vmatpush1.msra.mxu0 %v2827
    %2966 = vmatprep.subr.mxu0 %v2824
    %2967 = vmatpush1.msra.mxu0 %v2823
    %2968 = vmatprep.subr.mxu0 %v2820
    %2969 = vmatpush1.msra.mxu0 %v2819
    %2970 = vmatprep.subr.mxu0 %v2816
    %2971 = vmatpush1.msra.mxu0 %v2815
    %2972 = vmatprep.subr.mxu0 %v2812
    %2973 = vmatpush1.msra.mxu0 %v2811
    %2974 = vmatprep.subr.mxu0 %v2808
    %2975 = vmatpush1.msra.mxu0 %v2807
    %2976 = vmatprep.subr.mxu0 %v2804
    %2977 = vmatpush1.msra.mxu0 %v2803
    %2978 = vmatprep.subr.mxu0 0.0
    %2979 = vmatpush2.msra.mxu0 0.0
    %2980 = vmatprep.subr.mxu0 0.0
    %2981 = vmatpush2.msra.mxu0 0.0
    %2982 = vmatprep.subr.mxu0 0.0
    %2983 = vmatpush2.msra.mxu0 0.0
    %2984 = vmatprep.subr.mxu0 0.0
    %2985 = vmatpush2.msra.mxu0 0.0
    %2986 = vmatprep.subr.mxu0 0.0
    %2987 = vmatpush2.msra.mxu0 0.0
    %2988 = vmatprep.subr.mxu0 0.0
    %2989 = vmatpush2.msra.mxu0 0.0
    %2990 = vmatprep.subr.mxu0 0.0
    %2991 = vmatpush2.msra.mxu0 0.0
    %2992 = vmatprep.subr.mxu0 0.0
    %2993 = vmatpush2.msra.mxu0 0.0
    %2994 = vmatprep.subr.mxu0 0.0
    %2995 = vmatpush2.msra.mxu0 0.0
    %2996 = vmatprep.subr.mxu0 0.0
    %2997 = vmatpush2.msra.mxu0 0.0
    %2998 = vmatprep.subr.mxu0 0.0
    %2999 = vmatpush2.msra.mxu0 0.0
    %3000 = vmatprep.subr.mxu0 0.0
    %3001 = vmatpush2.msra.mxu0 0.0
    %3002 = vmatprep.subr.mxu0 0.0
    %3003 = vmatpush2.msra.mxu0 0.0
    %3004 = vmatprep.subr.mxu0 0.0
    %3005 = vmatpush2.msra.mxu0 0.0
    %3006 = vmatprep.subr.mxu0 0.0
    %3007 = vmatpush2.msra.mxu0 0.0
    %3008 = vmatprep.subr.mxu0 0.0
    %3009 = vmatpush2.msra.mxu0 0.0
    %3010 = vmatprep.mubr.f32.mxu0 0.0
    %3011 = vmatmul.mubr.f32.gmra.mxu0 %v634
    %v3012 = vpop.f32.mrf.mxu0
    %v3013 = vadd.f32 0.0, %v3012
    %v3014 = vpop.f32.mrf.mxu0
    %v3015 = vadd.f32 0.0, %v3014
    %3016 = vmatprep.mubr.f32.mxu0 0.0
    %3017 = vmatmul.mubr.f32.gmra.mxu0 %v637
    %v3018 = vpop.f32.mrf.mxu0
    %v3019 = vadd.f32 0.0, %v3018
    %v3020 = vpop.f32.mrf.mxu0
    %v3021 = vadd.f32 0.0, %v3020
    %3022 = vmatprep.mubr.f32.mxu0 0.0
    %3023 = vmatmul.mubr.f32.gmra.mxu0 %v640
    %v3024 = vpop.f32.mrf.mxu0
    %v3025 = vadd.f32 0.0, %v3024
    %v3026 = vpop.f32.mrf.mxu0
    %v3027 = vadd.f32 0.0, %v3026
    %3028 = vmatprep.mubr.f32.mxu0 0.0
    %3029 = vmatmul.mubr.f32.gmra.mxu0 %v643
    %v3030 = vpop.f32.mrf.mxu0
    %v3031 = vadd.f32 0.0, %v3030
    %v3032 = vpop.f32.mrf.mxu0
    %v3033 = vadd.f32 0.0, %v3032
    %3034 = vmatprep.mubr.f32.mxu0 0.0
    %3035 = vmatmul.mubr.f32.gmra.mxu0 %v646
    %v3036 = vpop.f32.mrf.mxu0
    %v3037 = vadd.f32 0.0, %v3036
    %v3038 = vpop.f32.mrf.mxu0
    %v3039 = vadd.f32 0.0, %v3038
    %3040 = vmatprep.mubr.f32.mxu0 0.0
    %3041 = vmatmul.mubr.f32.gmra.mxu0 %v649
    %v3042 = vpop.f32.mrf.mxu0
    %v3043 = vadd.f32 0.0, %v3042
    %v3044 = vpop.f32.mrf.mxu0
    %v3045 = vadd.f32 0.0, %v3044
    %3046 = vmatprep.mubr.f32.mxu0 0.0
    %3047 = vmatmul.mubr.f32.gmra.mxu0 %v652
    %v3048 = vpop.f32.mrf.mxu0
    %v3049 = vadd.f32 0.0, %v3048
    %v3050 = vpop.f32.mrf.mxu0
    %v3051 = vadd.f32 0.0, %v3050
    %3052 = vmatprep.mubr.f32.mxu0 0.0
    %3053 = vmatmul.mubr.f32.gmra.mxu0 %v655
    %v3054 = vpop.f32.mrf.mxu0
    %v3055 = vadd.f32 0.0, %v3054
    %v3056 = vpop.f32.mrf.mxu0
    %v3057 = vadd.f32 0.0, %v3056
    %3058 = vdwg.mxu0
    %v3059 = vmul.f32 %v609, %v2900
    %v3060 = vmul.f32 %v609, %v2902
    %v3061 = vmul.f32 %v609, %v3013
    %v3062 = vmul.f32 %v609, %v3015
    %v3063 = vmul.f32 %v610, %v2906
    %v3064 = vmul.f32 %v610, %v2908
    %v3065 = vmul.f32 %v610, %v3019
    %v3066 = vmul.f32 %v610, %v3021
    %v3067 = vmul.f32 %v611, %v2912
    %v3068 = vmul.f32 %v611, %v2914
    %v3069 = vmul.f32 %v611, %v3025
    %v3070 = vmul.f32 %v611, %v3027
    %v3071 = vmul.f32 %v612, %v2918
    %v3072 = vmul.f32 %v612, %v2920
    %v3073 = vmul.f32 %v612, %v3031
    %v3074 = vmul.f32 %v612, %v3033
    %v3075 = vmul.f32 %v613, %v2924
    %v3076 = vmul.f32 %v613, %v2926
    %v3077 = vmul.f32 %v613, %v3037
    %v3078 = vmul.f32 %v613, %v3039
    %v3079 = vmul.f32 %v614, %v2930
    %v3080 = vmul.f32 %v614, %v2932
    %v3081 = vmul.f32 %v614, %v3043
    %v3082 = vmul.f32 %v614, %v3045
    %v3083 = vmul.f32 %v615, %v2936
    %v3084 = vmul.f32 %v615, %v2938
    %v3085 = vmul.f32 %v615, %v3049
    %v3086 = vmul.f32 %v615, %v3051
    %v3087 = vmul.f32 %v616, %v2942
    %v3088 = vmul.f32 %v616, %v2944
    %v3089 = vmul.f32 %v616, %v3055
    %v3090 = vmul.f32 %v616, %v3057
    %v3091 = vld [vmem:[#allocation7] sm:$0xf]
    %v3093 = vlaneseq
    %v3094 = vshrl.u32 %v3093, 7
    %v3095 = vsub.s32 0, %v3094
    %v3096 = vrot.slane %v3091, %v3095
    %v3097 = vlaneseq
    %v3098 = vshrl.u32 %v3097, 7
    %v3099 = vsub.s32 1, %v3098
    %v3100 = vrot.slane %v3091, %v3099
    %v3101 = vlaneseq
    %v3102 = vshrl.u32 %v3101, 7
    %v3103 = vsub.s32 2, %v3102
    %v3104 = vrot.slane %v3091, %v3103
    %v3105 = vlaneseq
    %v3106 = vshrl.u32 %v3105, 7
    %v3107 = vsub.s32 3, %v3106
    %v3108 = vrot.slane %v3091, %v3107
    %v3113 = vadd.f32 %v3059, %v3096
    %v3114 = vadd.f32 %v3060, %v3100
    %v3115 = vadd.f32 %v3061, %v3104
    %v3116 = vadd.f32 %v3062, %v3108
    %v3117 = vadd.f32 %v3063, %v3096
    %v3118 = vadd.f32 %v3064, %v3100
    %v3119 = vadd.f32 %v3065, %v3104
    %v3120 = vadd.f32 %v3066, %v3108
    %v3121 = vadd.f32 %v3067, %v3096
    %v3122 = vadd.f32 %v3068, %v3100
    %v3123 = vadd.f32 %v3069, %v3104
    %v3124 = vadd.f32 %v3070, %v3108
    %v3125 = vadd.f32 %v3071, %v3096
    %v3126 = vadd.f32 %v3072, %v3100
    %v3127 = vadd.f32 %v3073, %v3104
    %v3128 = vadd.f32 %v3074, %v3108
    %v3129 = vadd.f32 %v3075, %v3096
    %v3130 = vadd.f32 %v3076, %v3100
    %v3131 = vadd.f32 %v3077, %v3104
    %v3132 = vadd.f32 %v3078, %v3108
    %v3133 = vadd.f32 %v3079, %v3096
    %v3134 = vadd.f32 %v3080, %v3100
    %v3135 = vadd.f32 %v3081, %v3104
    %v3136 = vadd.f32 %v3082, %v3108
    %v3137 = vadd.f32 %v3083, %v3096
    %v3138 = vadd.f32 %v3084, %v3100
    %v3139 = vadd.f32 %v3085, %v3104
    %v3140 = vadd.f32 %v3086, %v3108
    %v3141 = vadd.f32 %v3087, %v3096
    %v3142 = vadd.f32 %v3088, %v3100
    %v3143 = vadd.f32 %v3089, %v3104
    %v3144 = vadd.f32 %v3090, %v3108
    %v3145 = vmax.f32 %v3113, 0.0
    %v3146 = vmax.f32 %v3114, 0.0
    %v3147 = vmax.f32 %v3115, 0.0
    %v3148 = vmax.f32 %v3116, 0.0
    %v3149 = vmax.f32 %v3117, 0.0
    %v3150 = vmax.f32 %v3118, 0.0
    %v3151 = vmax.f32 %v3119, 0.0
    %v3152 = vmax.f32 %v3120, 0.0
    %v3153 = vmax.f32 %v3121, 0.0
    %v3154 = vmax.f32 %v3122, 0.0
    %v3155 = vmax.f32 %v3123, 0.0
    %v3156 = vmax.f32 %v3124, 0.0
    %v3157 = vmax.f32 %v3125, 0.0
    %v3158 = vmax.f32 %v3126, 0.0
    %v3159 = vmax.f32 %v3127, 0.0
    %v3160 = vmax.f32 %v3128, 0.0
    %v3161 = vmax.f32 %v3129, 0.0
    %v3162 = vmax.f32 %v3130, 0.0
    %v3163 = vmax.f32 %v3131, 0.0
    %v3164 = vmax.f32 %v3132, 0.0
    %v3165 = vmax.f32 %v3133, 0.0
    %v3166 = vmax.f32 %v3134, 0.0
    %v3167 = vmax.f32 %v3135, 0.0
    %v3168 = vmax.f32 %v3136, 0.0
    %v3169 = vmax.f32 %v3137, 0.0
    %v3170 = vmax.f32 %v3138, 0.0
    %v3171 = vmax.f32 %v3139, 0.0
    %v3172 = vmax.f32 %v3140, 0.0
    %v3173 = vmax.f32 %v3141, 0.0
    %v3174 = vmax.f32 %v3142, 0.0
    %v3175 = vmax.f32 %v3143, 0.0
    %v3176 = vmax.f32 %v3144, 0.0
    %v3177 = vld [vmem:[#allocation9] sm:$0xff]
    %v3178 = vld [vmem:[#allocation9 + $0x8] sm:$0xff]
    %v3179 = vld [vmem:[#allocation9 + $0x10] sm:$0xff]
    %v3180 = vld [vmem:[#allocation9 + $0x18] sm:$0xff]
    %v3181 = vld [vmem:[#allocation9 + $0x20] sm:$0xff]
    %v3182 = vld [vmem:[#allocation9 + $0x28] sm:$0xff]
    %v3183 = vld [vmem:[#allocation9 + $0x30] sm:$0xff]
    %v3184 = vld [vmem:[#allocation9 + $0x38] sm:$0xff]
    %v3185 = vld [vmem:[#allocation9 + $0x40] sm:$0xff]
    %v3186 = vld [vmem:[#allocation9 + $0x48] sm:$0xff]
    %v3187 = vld [vmem:[#allocation9 + $0x50] sm:$0xff]
    %v3188 = vld [vmem:[#allocation9 + $0x58] sm:$0xff]
    %v3189 = vld [vmem:[#allocation9 + $0x60] sm:$0xff]
    %v3190 = vld [vmem:[#allocation9 + $0x68] sm:$0xff]
    %v3191 = vld [vmem:[#allocation9 + $0x70] sm:$0xff]
    %v3192 = vld [vmem:[#allocation9 + $0x78] sm:$0xff]
    %v3193 = vld [vmem:[#allocation9 + $0x80] sm:$0xff]
    %v3194 = vld [vmem:[#allocation9 + $0x88] sm:$0xff]
    %v3195 = vld [vmem:[#allocation9 + $0x90] sm:$0xff]
    %v3196 = vld [vmem:[#allocation9 + $0x98] sm:$0xff]
    %v3197 = vld [vmem:[#allocation9 + $0xa0] sm:$0xff]
    %v3198 = vld [vmem:[#allocation9 + $0xa8] sm:$0xff]
    %v3199 = vld [vmem:[#allocation9 + $0xb0] sm:$0xff]
    %v3200 = vld [vmem:[#allocation9 + $0xb8] sm:$0xff]
    %v3201 = vld [vmem:[#allocation9 + $0xc0] sm:$0xff]
    %v3202 = vld [vmem:[#allocation9 + $0xc8] sm:$0xff]
    %v3203 = vld [vmem:[#allocation9 + $0xd0] sm:$0xff]
    %v3204 = vld [vmem:[#allocation9 + $0xd8] sm:$0xff]
    %v3205 = vld [vmem:[#allocation9 + $0xe0] sm:$0xff]
    %v3206 = vld [vmem:[#allocation9 + $0xe8] sm:$0xff]
    %v3207 = vld [vmem:[#allocation9 + $0xf0] sm:$0xff]
    %v3208 = vld [vmem:[#allocation9 + $0xf8] sm:$0xff]
    %v3209 = vld [vmem:[#allocation9 + $0x100] sm:$0xff]
    %v3210 = vld [vmem:[#allocation9 + $0x108] sm:$0xff]
    %v3211 = vld [vmem:[#allocation9 + $0x110] sm:$0xff]
    %v3212 = vld [vmem:[#allocation9 + $0x118] sm:$0xff]
    %v3213 = vld [vmem:[#allocation9 + $0x120] sm:$0xff]
    %v3214 = vld [vmem:[#allocation9 + $0x128] sm:$0xff]
    %v3215 = vld [vmem:[#allocation9 + $0x130] sm:$0xff]
    %v3216 = vld [vmem:[#allocation9 + $0x138] sm:$0xff]
    %v3217 = vld [vmem:[#allocation9 + $0x140] sm:$0xff]
    %v3218 = vld [vmem:[#allocation9 + $0x148] sm:$0xff]
    %v3219 = vld [vmem:[#allocation9 + $0x150] sm:$0xff]
    %v3220 = vld [vmem:[#allocation9 + $0x158] sm:$0xff]
    %v3221 = vld [vmem:[#allocation9 + $0x160] sm:$0xff]
    %v3222 = vld [vmem:[#allocation9 + $0x168] sm:$0xff]
    %v3223 = vld [vmem:[#allocation9 + $0x170] sm:$0xff]
    %v3224 = vld [vmem:[#allocation9 + $0x178] sm:$0xff]
    %v3225 = vld [vmem:[#allocation9 + $0x180] sm:$0xff]
    %v3226 = vld [vmem:[#allocation9 + $0x188] sm:$0xff]
    %v3227 = vld [vmem:[#allocation9 + $0x190] sm:$0xff]
    %v3228 = vld [vmem:[#allocation9 + $0x198] sm:$0xff]
    %v3229 = vld [vmem:[#allocation9 + $0x1a0] sm:$0xff]
    %v3230 = vld [vmem:[#allocation9 + $0x1a8] sm:$0xff]
    %v3231 = vld [vmem:[#allocation9 + $0x1b0] sm:$0xff]
    %v3232 = vld [vmem:[#allocation9 + $0x1b8] sm:$0xff]
    %v3233 = vld [vmem:[#allocation9 + $0x1c0] sm:$0xff]
    %v3234 = vld [vmem:[#allocation9 + $0x1c8] sm:$0xff]
    %v3235 = vld [vmem:[#allocation9 + $0x1d0] sm:$0xff]
    %v3236 = vld [vmem:[#allocation9 + $0x1d8] sm:$0xff]
    %v3237 = vld [vmem:[#allocation9 + $0x1e0] sm:$0xff]
    %v3238 = vld [vmem:[#allocation9 + $0x1e8] sm:$0xff]
    %v3239 = vld [vmem:[#allocation9 + $0x1f0] sm:$0xff]
    %v3240 = vld [vmem:[#allocation9 + $0x1f8] sm:$0xff]
    %3241 = vmatprep.subr.mxu0 0.0
    %3242 = vmatpush1.msra.mxu0 %v3192
    %3243 = vmatprep.subr.mxu0 0.0
    %3244 = vmatpush1.msra.mxu0 %v3191
    %3245 = vmatprep.subr.mxu0 0.0
    %3246 = vmatpush1.msra.mxu0 %v3190
    %3247 = vmatprep.subr.mxu0 0.0
    %3248 = vmatpush1.msra.mxu0 %v3189
    %3249 = vmatprep.subr.mxu0 0.0
    %3250 = vmatpush1.msra.mxu0 %v3188
    %3251 = vmatprep.subr.mxu0 0.0
    %3252 = vmatpush1.msra.mxu0 %v3187
    %3253 = vmatprep.subr.mxu0 0.0
    %3254 = vmatpush1.msra.mxu0 %v3186
    %3255 = vmatprep.subr.mxu0 0.0
    %3256 = vmatpush1.msra.mxu0 %v3185
    %3257 = vmatprep.subr.mxu0 0.0
    %3258 = vmatpush1.msra.mxu0 %v3184
    %3259 = vmatprep.subr.mxu0 0.0
    %3260 = vmatpush1.msra.mxu0 %v3183
    %3261 = vmatprep.subr.mxu0 0.0
    %3262 = vmatpush1.msra.mxu0 %v3182
    %3263 = vmatprep.subr.mxu0 0.0
    %3264 = vmatpush1.msra.mxu0 %v3181
    %3265 = vmatprep.subr.mxu0 0.0
    %3266 = vmatpush1.msra.mxu0 %v3180
    %3267 = vmatprep.subr.mxu0 0.0
    %3268 = vmatpush1.msra.mxu0 %v3179
    %3269 = vmatprep.subr.mxu0 0.0
    %3270 = vmatpush1.msra.mxu0 %v3178
    %3271 = vmatprep.subr.mxu0 0.0
    %3272 = vmatpush1.msra.mxu0 %v3177
    %3273 = vmatprep.subr.mxu0 0.0
    %3274 = vmatpush2.msra.mxu0 %v3208
    %3275 = vmatprep.subr.mxu0 0.0
    %3276 = vmatpush2.msra.mxu0 %v3207
    %3277 = vmatprep.subr.mxu0 0.0
    %3278 = vmatpush2.msra.mxu0 %v3206
    %3279 = vmatprep.subr.mxu0 0.0
    %3280 = vmatpush2.msra.mxu0 %v3205
    %3281 = vmatprep.subr.mxu0 0.0
    %3282 = vmatpush2.msra.mxu0 %v3204
    %3283 = vmatprep.subr.mxu0 0.0
    %3284 = vmatpush2.msra.mxu0 %v3203
    %3285 = vmatprep.subr.mxu0 0.0
    %3286 = vmatpush2.msra.mxu0 %v3202
    %3287 = vmatprep.subr.mxu0 0.0
    %3288 = vmatpush2.msra.mxu0 %v3201
    %3289 = vmatprep.subr.mxu0 0.0
    %3290 = vmatpush2.msra.mxu0 %v3200
    %3291 = vmatprep.subr.mxu0 0.0
    %3292 = vmatpush2.msra.mxu0 %v3199
    %3293 = vmatprep.subr.mxu0 0.0
    %3294 = vmatpush2.msra.mxu0 %v3198
    %3295 = vmatprep.subr.mxu0 0.0
    %3296 = vmatpush2.msra.mxu0 %v3197
    %3297 = vmatprep.subr.mxu0 0.0
    %3298 = vmatpush2.msra.mxu0 %v3196
    %3299 = vmatprep.subr.mxu0 0.0
    %3300 = vmatpush2.msra.mxu0 %v3195
    %3301 = vmatprep.subr.mxu0 0.0
    %3302 = vmatpush2.msra.mxu0 %v3194
    %3303 = vmatprep.subr.mxu0 0.0
    %3304 = vmatpush2.msra.mxu0 %v3193
    %3305 = vmatprep.mubr.f32.mxu0 %v3146
    %3306 = vmatmul.mubr.f32.gmra.mxu0 %v3145
    %v3307 = vpop.f32.mrf.mxu0
    %v3308 = vadd.f32 0.0, %v3307
    %v3309 = vpop.f32.mrf.mxu0
    %3310 = vmatprep.mubr.f32.mxu0 %v3150
    %3311 = vmatmul.mubr.f32.gmra.mxu0 %v3149
    %v3312 = vpop.f32.mrf.mxu0
    %v3313 = vadd.f32 0.0, %v3312
    %v3314 = vpop.f32.mrf.mxu0
    %3315 = vmatprep.mubr.f32.mxu0 %v3154
    %3316 = vmatmul.mubr.f32.gmra.mxu0 %v3153
    %v3317 = vpop.f32.mrf.mxu0
    %v3318 = vadd.f32 0.0, %v3317
    %v3319 = vpop.f32.mrf.mxu0
    %3320 = vmatprep.mubr.f32.mxu0 %v3158
    %3321 = vmatmul.mubr.f32.gmra.mxu0 %v3157
    %v3322 = vpop.f32.mrf.mxu0
    %v3323 = vadd.f32 0.0, %v3322
    %v3324 = vpop.f32.mrf.mxu0
    %3325 = vmatprep.mubr.f32.mxu0 %v3162
    %3326 = vmatmul.mubr.f32.gmra.mxu0 %v3161
    %v3327 = vpop.f32.mrf.mxu0
    %v3328 = vadd.f32 0.0, %v3327
    %v3329 = vpop.f32.mrf.mxu0
    %3330 = vmatprep.mubr.f32.mxu0 %v3166
    %3331 = vmatmul.mubr.f32.gmra.mxu0 %v3165
    %v3332 = vpop.f32.mrf.mxu0
    %v3333 = vadd.f32 0.0, %v3332
    %v3334 = vpop.f32.mrf.mxu0
    %3335 = vmatprep.mubr.f32.mxu0 %v3170
    %3336 = vmatmul.mubr.f32.gmra.mxu0 %v3169
    %v3337 = vpop.f32.mrf.mxu0
    %v3338 = vadd.f32 0.0, %v3337
    %v3339 = vpop.f32.mrf.mxu0
    %3340 = vmatprep.mubr.f32.mxu0 %v3174
    %3341 = vmatmul.mubr.f32.gmra.mxu0 %v3173
    %v3342 = vpop.f32.mrf.mxu0
    %v3343 = vadd.f32 0.0, %v3342
    %v3344 = vpop.f32.mrf.mxu0
    %3345 = vdwg.mxu0
    %3346 = vmatprep.subr.mxu0 0.0
    %3347 = vmatpush1.msra.mxu0 %v3224
    %3348 = vmatprep.subr.mxu0 0.0
    %3349 = vmatpush1.msra.mxu0 %v3223
    %3350 = vmatprep.subr.mxu0 0.0
    %3351 = vmatpush1.msra.mxu0 %v3222
    %3352 = vmatprep.subr.mxu0 0.0
    %3353 = vmatpush1.msra.mxu0 %v3221
    %3354 = vmatprep.subr.mxu0 0.0
    %3355 = vmatpush1.msra.mxu0 %v3220
    %3356 = vmatprep.subr.mxu0 0.0
    %3357 = vmatpush1.msra.mxu0 %v3219
    %3358 = vmatprep.subr.mxu0 0.0
    %3359 = vmatpush1.msra.mxu0 %v3218
    %3360 = vmatprep.subr.mxu0 0.0
    %3361 = vmatpush1.msra.mxu0 %v3217
    %3362 = vmatprep.subr.mxu0 0.0
    %3363 = vmatpush1.msra.mxu0 %v3216
    %3364 = vmatprep.subr.mxu0 0.0
    %3365 = vmatpush1.msra.mxu0 %v3215
    %3366 = vmatprep.subr.mxu0 0.0
    %3367 = vmatpush1.msra.mxu0 %v3214
    %3368 = vmatprep.subr.mxu0 0.0
    %3369 = vmatpush1.msra.mxu0 %v3213
    %3370 = vmatprep.subr.mxu0 0.0
    %3371 = vmatpush1.msra.mxu0 %v3212
    %3372 = vmatprep.subr.mxu0 0.0
    %3373 = vmatpush1.msra.mxu0 %v3211
    %3374 = vmatprep.subr.mxu0 0.0
    %3375 = vmatpush1.msra.mxu0 %v3210
    %3376 = vmatprep.subr.mxu0 0.0
    %3377 = vmatpush1.msra.mxu0 %v3209
    %3378 = vmatprep.subr.mxu0 0.0
    %3379 = vmatpush2.msra.mxu0 %v3240
    %3380 = vmatprep.subr.mxu0 0.0
    %3381 = vmatpush2.msra.mxu0 %v3239
    %3382 = vmatprep.subr.mxu0 0.0
    %3383 = vmatpush2.msra.mxu0 %v3238
    %3384 = vmatprep.subr.mxu0 0.0
    %3385 = vmatpush2.msra.mxu0 %v3237
    %3386 = vmatprep.subr.mxu0 0.0
    %3387 = vmatpush2.msra.mxu0 %v3236
    %3388 = vmatprep.subr.mxu0 0.0
    %3389 = vmatpush2.msra.mxu0 %v3235
    %3390 = vmatprep.subr.mxu0 0.0
    %3391 = vmatpush2.msra.mxu0 %v3234
    %3392 = vmatprep.subr.mxu0 0.0
    %3393 = vmatpush2.msra.mxu0 %v3233
    %3394 = vmatprep.subr.mxu0 0.0
    %3395 = vmatpush2.msra.mxu0 %v3232
    %3396 = vmatprep.subr.mxu0 0.0
    %3397 = vmatpush2.msra.mxu0 %v3231
    %3398 = vmatprep.subr.mxu0 0.0
    %3399 = vmatpush2.msra.mxu0 %v3230
    %3400 = vmatprep.subr.mxu0 0.0
    %3401 = vmatpush2.msra.mxu0 %v3229
    %3402 = vmatprep.subr.mxu0 0.0
    %3403 = vmatpush2.msra.mxu0 %v3228
    %3404 = vmatprep.subr.mxu0 0.0
    %3405 = vmatpush2.msra.mxu0 %v3227
    %3406 = vmatprep.subr.mxu0 0.0
    %3407 = vmatpush2.msra.mxu0 %v3226
    %3408 = vmatprep.subr.mxu0 0.0
    %3409 = vmatpush2.msra.mxu0 %v3225
    %3410 = vmatprep.mubr.f32.mxu0 %v3148
    %3411 = vmatmul.mubr.f32.gmra.mxu0 %v3147
    %v3412 = vpop.f32.mrf.mxu0
    %v3413 = vadd.f32 %v3308, %v3412
    %v3414 = vpop.f32.mrf.mxu0
    %3415 = vmatprep.mubr.f32.mxu0 %v3152
    %3416 = vmatmul.mubr.f32.gmra.mxu0 %v3151
    %v3417 = vpop.f32.mrf.mxu0
    %v3418 = vadd.f32 %v3313, %v3417
    %v3419 = vpop.f32.mrf.mxu0
    %3420 = vmatprep.mubr.f32.mxu0 %v3156
    %3421 = vmatmul.mubr.f32.gmra.mxu0 %v3155
    %v3422 = vpop.f32.mrf.mxu0
    %v3423 = vadd.f32 %v3318, %v3422
    %v3424 = vpop.f32.mrf.mxu0
    %3425 = vmatprep.mubr.f32.mxu0 %v3160
    %3426 = vmatmul.mubr.f32.gmra.mxu0 %v3159
    %v3427 = vpop.f32.mrf.mxu0
    %v3428 = vadd.f32 %v3323, %v3427
    %v3429 = vpop.f32.mrf.mxu0
    %3430 = vmatprep.mubr.f32.mxu0 %v3164
    %3431 = vmatmul.mubr.f32.gmra.mxu0 %v3163
    %v3432 = vpop.f32.mrf.mxu0
    %v3433 = vadd.f32 %v3328, %v3432
    %v3434 = vpop.f32.mrf.mxu0
    %3435 = vmatprep.mubr.f32.mxu0 %v3168
    %3436 = vmatmul.mubr.f32.gmra.mxu0 %v3167
    %v3437 = vpop.f32.mrf.mxu0
    %v3438 = vadd.f32 %v3333, %v3437
    %v3439 = vpop.f32.mrf.mxu0
    %3440 = vmatprep.mubr.f32.mxu0 %v3172
    %3441 = vmatmul.mubr.f32.gmra.mxu0 %v3171
    %v3442 = vpop.f32.mrf.mxu0
    %v3443 = vadd.f32 %v3338, %v3442
    %v3444 = vpop.f32.mrf.mxu0
    %3445 = vmatprep.mubr.f32.mxu0 %v3176
    %3446 = vmatmul.mubr.f32.gmra.mxu0 %v3175
    %v3447 = vpop.f32.mrf.mxu0
    %v3448 = vadd.f32 %v3343, %v3447
    %v3449 = vpop.f32.mrf.mxu0
    %3450 = vdwg.mxu0
    %v3451 = vmul.f32 %v609, %v3413
    %v3452 = vmul.f32 %v610, %v3418
    %v3453 = vmul.f32 %v611, %v3423
    %v3454 = vmul.f32 %v612, %v3428
    %v3455 = vmul.f32 %v613, %v3433
    %v3456 = vmul.f32 %v614, %v3438
    %v3457 = vmul.f32 %v615, %v3443
    %v3458 = vmul.f32 %v616, %v3448
    %3459 = vmatprep.subr.mxu0 0.0
    %3460 = vmatpush1.msra.mxu0 0.0
    %3461 = vmatprep.subr.mxu0 0.0
    %3462 = vmatpush1.msra.mxu0 0.0
    %3463 = vmatprep.subr.mxu0 0.0
    %3464 = vmatpush1.msra.mxu0 0.0
    %3465 = vmatprep.subr.mxu0 0.0
    %3466 = vmatpush1.msra.mxu0 0.0
    %3467 = vmatprep.subr.mxu0 0.0
    %3468 = vmatpush1.msra.mxu0 0.0
    %3469 = vmatprep.subr.mxu0 0.0
    %3470 = vmatpush1.msra.mxu0 0.0
    %3471 = vmatprep.subr.mxu0 0.0
    %3472 = vmatpush1.msra.mxu0 0.0
    %3473 = vmatprep.subr.mxu0 0.0
    %3474 = vmatpush1.msra.mxu0 0.0
    %3475 = vmatprep.subr.mxu0 0.0
    %3476 = vmatpush1.msra.mxu0 %v3458
    %3477 = vmatprep.subr.mxu0 0.0
    %3478 = vmatpush1.msra.mxu0 %v3457
    %3479 = vmatprep.subr.mxu0 0.0
    %3480 = vmatpush1.msra.mxu0 %v3456
    %3481 = vmatprep.subr.mxu0 0.0
    %3482 = vmatpush1.msra.mxu0 %v3455
    %3483 = vmatprep.subr.mxu0 0.0
    %3484 = vmatpush1.msra.mxu0 %v3454
    %3485 = vmatprep.subr.mxu0 0.0
    %3486 = vmatpush1.msra.mxu0 %v3453
    %3487 = vmatprep.subr.mxu0 0.0
    %3488 = vmatpush1.msra.mxu0 %v3452
    %3489 = vmatprep.subr.mxu0 0.0
    %3490 = vmatpush1.msra.mxu0 %v3451
    %3491 = vmatprep.subr.mxu0 0.0
    %3492 = vmatpush2.msra.mxu0 0.0
    %3493 = vmatprep.subr.mxu0 0.0
    %3494 = vmatpush2.msra.mxu0 0.0
    %3495 = vmatprep.subr.mxu0 0.0
    %3496 = vmatpush2.msra.mxu0 0.0
    %3497 = vmatprep.subr.mxu0 0.0
    %3498 = vmatpush2.msra.mxu0 0.0
    %3499 = vmatprep.subr.mxu0 0.0
    %3500 = vmatpush2.msra.mxu0 0.0
    %3501 = vmatprep.subr.mxu0 0.0
    %3502 = vmatpush2.msra.mxu0 0.0
    %3503 = vmatprep.subr.mxu0 0.0
    %3504 = vmatpush2.msra.mxu0 0.0
    %3505 = vmatprep.subr.mxu0 0.0
    %3506 = vmatpush2.msra.mxu0 0.0
    %3507 = vmatprep.subr.mxu0 0.0
    %3508 = vmatpush2.msra.mxu0 0.0
    %3509 = vmatprep.subr.mxu0 0.0
    %3510 = vmatpush2.msra.mxu0 0.0
    %3511 = vmatprep.subr.mxu0 0.0
    %3512 = vmatpush2.msra.mxu0 0.0
    %3513 = vmatprep.subr.mxu0 0.0
    %3514 = vmatpush2.msra.mxu0 0.0
    %3515 = vmatprep.subr.mxu0 0.0
    %3516 = vmatpush2.msra.mxu0 0.0
    %3517 = vmatprep.subr.mxu0 0.0
    %3518 = vmatpush2.msra.mxu0 0.0
    %3519 = vmatprep.subr.mxu0 0.0
    %3520 = vmatpush2.msra.mxu0 0.0
    %3521 = vmatprep.subr.mxu0 0.0
    %3522 = vmatpush2.msra.mxu0 0.0
    %3523 = vmatprep.mubr.f32.mxu0 0.0
    %3524 = vmatmul.mubr.f32.gmra.mxu0 %v634
    %v3525 = vpop.f32.mrf.mxu0
    %v3526 = vadd.f32 0.0, %v3525
    %v3527 = vpop.f32.mrf.mxu0
    %3528 = vmatprep.mubr.f32.mxu0 0.0
    %3529 = vmatmul.mubr.f32.gmra.mxu0 %v637
    %v3530 = vpop.f32.mrf.mxu0
    %v3531 = vadd.f32 0.0, %v3530
    %v3532 = vpop.f32.mrf.mxu0
    %3533 = vmatprep.mubr.f32.mxu0 0.0
    %3534 = vmatmul.mubr.f32.gmra.mxu0 %v640
    %v3535 = vpop.f32.mrf.mxu0
    %v3536 = vadd.f32 0.0, %v3535
    %v3537 = vpop.f32.mrf.mxu0
    %3538 = vmatprep.mubr.f32.mxu0 0.0
    %3539 = vmatmul.mubr.f32.gmra.mxu0 %v643
    %v3540 = vpop.f32.mrf.mxu0
    %v3541 = vadd.f32 0.0, %v3540
    %v3542 = vpop.f32.mrf.mxu0
    %3543 = vmatprep.mubr.f32.mxu0 0.0
    %3544 = vmatmul.mubr.f32.gmra.mxu0 %v646
    %v3545 = vpop.f32.mrf.mxu0
    %v3546 = vadd.f32 0.0, %v3545
    %v3547 = vpop.f32.mrf.mxu0
    %3548 = vmatprep.mubr.f32.mxu0 0.0
    %3549 = vmatmul.mubr.f32.gmra.mxu0 %v649
    %v3550 = vpop.f32.mrf.mxu0
    %v3551 = vadd.f32 0.0, %v3550
    %v3552 = vpop.f32.mrf.mxu0
    %3553 = vmatprep.mubr.f32.mxu0 0.0
    %3554 = vmatmul.mubr.f32.gmra.mxu0 %v652
    %v3555 = vpop.f32.mrf.mxu0
    %v3556 = vadd.f32 0.0, %v3555
    %v3557 = vpop.f32.mrf.mxu0
    %3558 = vmatprep.mubr.f32.mxu0 0.0
    %3559 = vmatmul.mubr.f32.gmra.mxu0 %v655
    %v3560 = vpop.f32.mrf.mxu0
    %v3561 = vadd.f32 0.0, %v3560
    %v3562 = vpop.f32.mrf.mxu0
    %3563 = vdwg.mxu0
    %v3564 = vmul.f32 %v609, %v3526
    %v3565 = vmul.f32 %v610, %v3531
    %v3566 = vmul.f32 %v611, %v3536
    %v3567 = vmul.f32 %v612, %v3541
    %v3568 = vmul.f32 %v613, %v3546
    %v3569 = vmul.f32 %v614, %v3551
    %v3570 = vmul.f32 %v615, %v3556
    %v3571 = vmul.f32 %v616, %v3561
    %v3572 = vld [vmem:[#allocation10] sm:$0x1]
    %v3574 = vlaneseq
    %v3575 = vshrl.u32 %v3574, 7
    %v3576 = vsub.s32 0, %v3575
    %v3577 = vrot.slane %v3572, %v3576
    %v3579 = vadd.f32 %v3564, %v3577
    %v3580 = vadd.f32 %v3565, %v3577
    %v3581 = vadd.f32 %v3566, %v3577
    %v3582 = vadd.f32 %v3567, %v3577
    %v3583 = vadd.f32 %v3568, %v3577
    %v3584 = vadd.f32 %v3569, %v3577
    %v3585 = vadd.f32 %v3570, %v3577
    %v3586 = vadd.f32 %v3571, %v3577
    %v3587 = vmax.f32 %v3579, 0.0
    %v3588 = vmax.f32 %v3580, 0.0
    %v3589 = vmax.f32 %v3581, 0.0
    %v3590 = vmax.f32 %v3582, 0.0
    %v3591 = vmax.f32 %v3583, 0.0
    %v3592 = vmax.f32 %v3584, 0.0
    %v3593 = vmax.f32 %v3585, 0.0
    %v3594 = vmax.f32 %v3586, 0.0
    %v3595 = vld [vmem:[#allocation12] sm:$0xff]
    %v3596 = vld [vmem:[#allocation12 + $0x8] sm:$0xff]
    %v3597 = vld [vmem:[#allocation12 + $0x10] sm:$0xff]
    %v3598 = vld [vmem:[#allocation12 + $0x18] sm:$0xff]
    %v3599 = vld [vmem:[#allocation12 + $0x20] sm:$0xff]
    %v3600 = vld [vmem:[#allocation12 + $0x28] sm:$0xff]
    %v3601 = vld [vmem:[#allocation12 + $0x30] sm:$0xff]
    %v3602 = vld [vmem:[#allocation12 + $0x38] sm:$0xff]
    %v3603 = vld [vmem:[#allocation12 + $0x40] sm:$0xff]
    %v3604 = vld [vmem:[#allocation12 + $0x48] sm:$0xff]
    %v3605 = vld [vmem:[#allocation12 + $0x50] sm:$0xff]
    %v3606 = vld [vmem:[#allocation12 + $0x58] sm:$0xff]
    %v3607 = vld [vmem:[#allocation12 + $0x60] sm:$0xff]
    %v3608 = vld [vmem:[#allocation12 + $0x68] sm:$0xff]
    %v3609 = vld [vmem:[#allocation12 + $0x70] sm:$0xff]
    %v3610 = vld [vmem:[#allocation12 + $0x78] sm:$0xff]
    %v3611 = vld [vmem:[#allocation13] sm:$0x1]
    %v3613 = vlaneseq
    %v3614 = vshrl.u32 %v3613, 7
    %v3615 = vsub.s32 0, %v3614
    %v3616 = vrot.slane %v3611, %v3615
    %3618 = vmatprep.subr.mxu0 0.0
    %3619 = vmatpush1.msra.mxu0 %v3610
    %3620 = vmatprep.subr.mxu0 0.0
    %3621 = vmatpush1.msra.mxu0 %v3609
    %3622 = vmatprep.subr.mxu0 0.0
    %3623 = vmatpush1.msra.mxu0 %v3608
    %3624 = vmatprep.subr.mxu0 0.0
    %3625 = vmatpush1.msra.mxu0 %v3607
    %3626 = vmatprep.subr.mxu0 0.0
    %3627 = vmatpush1.msra.mxu0 %v3606
    %3628 = vmatprep.subr.mxu0 0.0
    %3629 = vmatpush1.msra.mxu0 %v3605
    %3630 = vmatprep.subr.mxu0 0.0
    %3631 = vmatpush1.msra.mxu0 %v3604
    %3632 = vmatprep.subr.mxu0 0.0
    %3633 = vmatpush1.msra.mxu0 %v3603
    %3634 = vmatprep.subr.mxu0 0.0
    %3635 = vmatpush1.msra.mxu0 %v3602
    %3636 = vmatprep.subr.mxu0 0.0
    %3637 = vmatpush1.msra.mxu0 %v3601
    %3638 = vmatprep.subr.mxu0 0.0
    %3639 = vmatpush1.msra.mxu0 %v3600
    %3640 = vmatprep.subr.mxu0 0.0
    %3641 = vmatpush1.msra.mxu0 %v3599
    %3642 = vmatprep.subr.mxu0 0.0
    %3643 = vmatpush1.msra.mxu0 %v3598
    %3644 = vmatprep.subr.mxu0 0.0
    %3645 = vmatpush1.msra.mxu0 %v3597
    %3646 = vmatprep.subr.mxu0 0.0
    %3647 = vmatpush1.msra.mxu0 %v3596
    %3648 = vmatprep.subr.mxu0 0.0
    %3649 = vmatpush1.msra.mxu0 %v3595
    %3650 = vmatprep.subr.mxu0 0.0
    %3651 = vmatpush2.msra.mxu0 0.0
    %3652 = vmatprep.subr.mxu0 0.0
    %3653 = vmatpush2.msra.mxu0 0.0
    %3654 = vmatprep.subr.mxu0 0.0
    %3655 = vmatpush2.msra.mxu0 0.0
    %3656 = vmatprep.subr.mxu0 0.0
    %3657 = vmatpush2.msra.mxu0 0.0
    %3658 = vmatprep.subr.mxu0 0.0
    %3659 = vmatpush2.msra.mxu0 0.0
    %3660 = vmatprep.subr.mxu0 0.0
    %3661 = vmatpush2.msra.mxu0 0.0
    %3662 = vmatprep.subr.mxu0 0.0
    %3663 = vmatpush2.msra.mxu0 0.0
    %3664 = vmatprep.subr.mxu0 0.0
    %3665 = vmatpush2.msra.mxu0 0.0
    %3666 = vmatprep.subr.mxu0 0.0
    %3667 = vmatpush2.msra.mxu0 0.0
    %3668 = vmatprep.subr.mxu0 0.0
    %3669 = vmatpush2.msra.mxu0 0.0
    %3670 = vmatprep.subr.mxu0 0.0
    %3671 = vmatpush2.msra.mxu0 0.0
    %3672 = vmatprep.subr.mxu0 0.0
    %3673 = vmatpush2.msra.mxu0 0.0
    %3674 = vmatprep.subr.mxu0 0.0
    %3675 = vmatpush2.msra.mxu0 0.0
    %3676 = vmatprep.subr.mxu0 0.0
    %3677 = vmatpush2.msra.mxu0 0.0
    %3678 = vmatprep.subr.mxu0 0.0
    %3679 = vmatpush2.msra.mxu0 0.0
    %3680 = vmatprep.subr.mxu0 0.0
    %3681 = vmatpush2.msra.mxu0 0.0
    %3682 = vmatprep.mubr.f32.mxu0 0.0
    %3683 = vmatmul.mubr.f32.gmra.mxu0 %v3587
    %v3684 = vpop.f32.mrf.mxu0
    %v3685 = vadd.f32 %v3616, %v3684
    %v3686 = vpop.f32.mrf.mxu0
    %3687 = vmatprep.mubr.f32.mxu0 0.0
    %3688 = vmatmul.mubr.f32.gmra.mxu0 %v3588
    %v3689 = vpop.f32.mrf.mxu0
    %v3690 = vadd.f32 %v3616, %v3689
    %v3691 = vpop.f32.mrf.mxu0
    %3692 = vmatprep.mubr.f32.mxu0 0.0
    %3693 = vmatmul.mubr.f32.gmra.mxu0 %v3589
    %v3694 = vpop.f32.mrf.mxu0
    %v3695 = vadd.f32 %v3616, %v3694
    %v3696 = vpop.f32.mrf.mxu0
    %3697 = vmatprep.mubr.f32.mxu0 0.0
    %3698 = vmatmul.mubr.f32.gmra.mxu0 %v3590
    %v3699 = vpop.f32.mrf.mxu0
    %v3700 = vadd.f32 %v3616, %v3699
    %v3701 = vpop.f32.mrf.mxu0
    %3702 = vmatprep.mubr.f32.mxu0 0.0
    %3703 = vmatmul.mubr.f32.gmra.mxu0 %v3591
    %v3704 = vpop.f32.mrf.mxu0
    %v3705 = vadd.f32 %v3616, %v3704
    %v3706 = vpop.f32.mrf.mxu0
    %3707 = vmatprep.mubr.f32.mxu0 0.0
    %3708 = vmatmul.mubr.f32.gmra.mxu0 %v3592
    %v3709 = vpop.f32.mrf.mxu0
    %v3710 = vadd.f32 %v3616, %v3709
    %v3711 = vpop.f32.mrf.mxu0
    %3712 = vmatprep.mubr.f32.mxu0 0.0
    %3713 = vmatmul.mubr.f32.gmra.mxu0 %v3593
    %v3714 = vpop.f32.mrf.mxu0
    %v3715 = vadd.f32 %v3616, %v3714
    %v3716 = vpop.f32.mrf.mxu0
    %3717 = vmatprep.mubr.f32.mxu0 0.0
    %3718 = vmatmul.mubr.f32.gmra.mxu0 %v3594
    %v3719 = vpop.f32.mrf.mxu0
    %v3720 = vadd.f32 %v3616, %v3719
    %v3721 = vpop.f32.mrf.mxu0
    %3722 = vdwg.mxu0
    %3723 = vst [vmem:[%s11] sm:$0xff] %v3685
    %3724 = vst [vmem:[%s11 + $0x8] sm:$0xff] %v3690
    %3725 = vst [vmem:[%s11 + $0x10] sm:$0xff] %v3695
    %3726 = vst [vmem:[%s11 + $0x18] sm:$0xff] %v3700
    %3727 = vst [vmem:[%s11 + $0x20] sm:$0xff] %v3705
    %3728 = vst [vmem:[%s11 + $0x28] sm:$0xff] %v3710
    %3729 = vst [vmem:[%s11 + $0x30] sm:$0xff] %v3715
    %3730 = vst [vmem:[%s11 + $0x38] sm:$0xff] %v3720
    // Predicated region
    $region78: #{simple_gcn_forward.1} parent=1 // pred_check
      _
    $region79: #{simple_gcn_forward.1} parent=1 // pred_check_branch
      %3732 = sbr.rel (0) target = $region81
    $region80: #{simple_gcn_forward.1} parent=1 // pred_region
      _
    $region81: #{simple_gcn_forward.1} parent=1 // pred_fallthru
      _
    // Predicated region
    $region82: #{simple_gcn_forward.1} parent=1 // pred_check
      _
    $region83: #{simple_gcn_forward.1} parent=1 // pred_check_branch
      %3734 = sbr.rel (0) target = $region85
    $region84: #{simple_gcn_forward.1} parent=1 // pred_region
      _
    $region85: #{simple_gcn_forward.1} parent=1 // pred_fallthru
      _
    %3735 = vsyncpa [#allocation3], 1
    %3736 = vsyncpa [#allocation5], 1
    %3737 = vsyncpa [#allocation8], 1
    %3738 = vsyncpa [#allocation11], 1
    %3739 = vsyncpa [#allocation14], 1

</llo_original>
